<compile_context>
chip_gen: v5e
topology: v5e:2x2
jax: 0.10.0
libtpu: 0.0.40
codegen_flags: <defaults>
</compile_context>

<pallas_src>
import functools

import jax
import jax.numpy as jnp
from jax.experimental import pallas as pl
from jax.experimental.pallas import tpu as pltpu


# ----------------------------------------------------------------------------
# Fused kernel: one grid step == G graphs (3 RGCN layers + readout + MLP head)
# ----------------------------------------------------------------------------
def _fused_kernel(a_ref, x_ref, w_in_ref, b_in_ref, w_hid_ref, b_hid_ref,
                  w_out_ref, b_out_ref, head1_ref, head2_ref, o_ref, *,
                  num_relations, num_nodes, graphs_per_step, out_dim,
                  num_hidden_layers):
    R = num_relations
    N = num_nodes
    G = graphs_per_step
    D = out_dim

    a = a_ref[...]                 # [G, R*N, N]  bf16 per-relation adjacency (row-stacked)
    h = x_ref[...]                 # [G, N, Din]  f32 node features

    def rgcn(h, w_of_r, bias, apply_relu):
        din = h.shape[-1]
        # Per-graph AH (cheap, K=N), batched over the G graphs in this step.
        ah = jnp.einsum('gmn,gnd->gmd', a, h.astype(jnp.bfloat16),
                        preferred_element_type=jnp.float32)     # [G, R*N, Din] f32
        # sum_r (A[r] @ H) @ W_r + b, row-stacked across graphs: M = G*N rows.
        acc = bias                                               # [1, Dout] f32
        for r in range(R):                                       # unrolled (static R)
            ah_r = ah[:, r * N:(r + 1) * N, :].reshape(G * N, din)
            acc = acc + jnp.dot(ah_r.astype(jnp.bfloat16), w_of_r(r),
                                preferred_element_type=jnp.float32)
        if apply_relu:
            acc = jnp.maximum(acc, 0.0)
        return acc.reshape(G, N, -1)                             # [G, N, Dout]

    # in layer + ReLU (dropout = 0.0 -> identity)
    h = rgcn(h, lambda r: w_in_ref[r], b_in_ref[...], True)
    # hidden layers + ReLU
    for l in range(num_hidden_layers):                           # unrolled (static L)
        h = rgcn(h, lambda r, l=l: w_hid_ref[l, r], b_hid_ref[l], True)
    # out layer (no activation)
    h = rgcn(h, lambda r: w_out_ref[r], b_out_ref[...], False)   # [G, N, D] f32

    # --- unpack the coalesced head parameter slabs (kept f32; weights -> bf16) ---
    head1 = head1_ref[...]                 # [D+1, 101]
    head2 = head2_ref[...]                 # [101, 65]
    w1 = head1[0:D, 0:100].astype(jnp.bfloat16)        # [D, 100]
    b1 = head1[D:D + 1, 0:100]                          # [1, 100]
    wg = head1[0:D, 100:101].astype(jnp.bfloat16)       # [D, 1]   gate_nn weight
    bg = head1[D:D + 1, 100:101]                        # [1, 1]   gate_nn bias
    w2 = head2[0:100, 0:64].astype(jnp.bfloat16)        # [100, 64]
    b2 = head2[100:101, 0:64]                           # [1, 64]
    w3 = head2[0:64, 64:65].astype(jnp.bfloat16)        # [64, 1]
    b3 = head2[100:101, 64:65]                          # [1, 1]

    # --- GlobalAttentionPooling: softmax over each graph's own nodes ---
    h_flat = h.reshape(G * N, D)
    gate = jnp.dot(h_flat.astype(jnp.bfloat16), wg,
                   preferred_element_type=jnp.float32) + bg      # [G*N, 1]
    gate = gate.reshape(G, N, 1)
    gate = gate - jnp.max(gate, axis=1, keepdims=True)
    e = jnp.exp(gate)
    denom = jnp.sum(e, axis=1, keepdims=True)                    # [G, 1, 1]
    alpha = e * pl.reciprocal(denom, approx=True)                # [G, N, 1]
    readout = jnp.sum(h * alpha, axis=1)                         # [G, D]

    # --- MLP head D -> 100 -> 64 -> 1, then sigmoid (all G graphs at once) ---
    x1 = jnp.maximum(jnp.dot(readout.astype(jnp.bfloat16), w1,
                             preferred_element_type=jnp.float32) + b1, 0.0)
    x2 = jnp.maximum(jnp.dot(x1.astype(jnp.bfloat16), w2,
                             preferred_element_type=jnp.float32) + b2, 0.0)
    logit = jnp.dot(x2.astype(jnp.bfloat16), w3,
                    preferred_element_type=jnp.float32) + b3     # [G, 1]

    # numerically safe sigmoid: exp argument is always <= 0, never inf
    z = jnp.exp(-jnp.abs(logit))
    prob = jnp.where(logit >= 0.0, 1.0 / (1.0 + z), z / (1.0 + z))

    o_ref[...] = prob.reshape(1, 1, G).astype(o_ref.dtype)       # lane-dense row store


# ----------------------------------------------------------------------------
# Wrapper: single fused pallas_call, grid over graph-groups ("parallel")
# ----------------------------------------------------------------------------
def rel_graph_conv_model(adj, x, params, graphs_per_step=None):
    """adj: [B, R, N, N] with adj[b, r, dst, src]; x: [B, N, input_dim] -> probs [B]."""
    B, R, N, _ = adj.shape
    Din = x.shape[-1]
    H = params["w_in"].shape[-1]
    O = params["w_out"].shape[-1]
    L = params["w_hid"].shape[0]

    # Group G graphs per grid step.  Default keeps 2 parallel steps (v7x has two
    # TensorCores); v5e/v6e simply execute the steps sequentially.
    if graphs_per_step is None:
        graphs_per_step = max(B // 2, 1)
    G = graphs_per_step
    assert B % G == 0, "batch must be divisible by graphs_per_step"
    num_groups = B // G

    # Rows indexed by (relation, dst) -> single big bf16 adjacency slab per graph.
    a_stack = adj.reshape(B, R * N, N).astype(jnp.bfloat16)
    # Conv weights are pure MXU operands -> store them bf16 (halves HBM bytes);
    # biases stay f32 and are added to the f32 accumulators.
    w_in = params["w_in"].astype(jnp.bfloat16)
    w_hid = params["w_hid"].astype(jnp.bfloat16)
    w_out = params["w_out"].astype(jnp.bfloat16)

    kernel = functools.partial(
        _fused_kernel, num_relations=R, num_nodes=N, graphs_per_step=G,
        out_dim=O, num_hidden_layers=L)

    out = pl.pallas_call(
        kernel,
        out_shape=jax.ShapeDtypeStruct((num_groups, 1, G), jnp.float32),
        grid_spec=pltpu.PrefetchScalarGridSpec(
            num_scalar_prefetch=0,
            grid=(num_groups,),
            in_specs=[
                pl.BlockSpec((G, R * N, N), lambda i: (i, 0, 0)),   # adjacency group
                pl.BlockSpec((G, N, Din), lambda i: (i, 0, 0)),     # feature group
                pl.BlockSpec((R, Din, H), lambda i: (0, 0, 0)),     # w_in (bf16)
                pl.BlockSpec((1, H), lambda i: (0, 0)),             # b_in
                pl.BlockSpec((L, R, H, H), lambda i: (0, 0, 0, 0)), # w_hid (bf16)
                pl.BlockSpec((L, 1, H), lambda i: (0, 0, 0)),       # b_hid
                pl.BlockSpec((R, H, O), lambda i: (0, 0, 0)),       # w_out (bf16)
                pl.BlockSpec((1, O), lambda i: (0, 0)),             # b_out
                pl.BlockSpec((O + 1, 101), lambda i: (0, 0)),       # packed head slab 1
                pl.BlockSpec((101, 65), lambda i: (0, 0)),          # packed head slab 2
            ],
            out_specs=pl.BlockSpec((1, 1, G), lambda i: (i, 0, 0)),
        ),
        compiler_params=pltpu.CompilerParams(
            dimension_semantics=("parallel",),        # shard groups across TCs on v7x
            vmem_limit_bytes=32 * 1024 * 1024),       # explicit, safe on v5e/v6e/v7x
    )(a_stack, x, w_in, params["b_in"], w_hid, params["b_hid"],
      w_out, params["b_out"], params["head1"], params["head2"])
    return out.reshape(B)   # matches .squeeze(dim=-1): one prob per graph


# ----------------------------------------------------------------------------
# Parameters (weights stored [in_dim, out_dim]; head params packed into 2 slabs)
# ----------------------------------------------------------------------------
def init_params(key, input_dim, h_dim, out_dim, num_relations, num_hidden_layers):
    keys = jax.random.split(key, 16)
    s = 0.1
    R, L = num_relations, num_hidden_layers

    p = {
        "w_in": s * jax.random.normal(keys[0], (R, input_dim, h_dim), jnp.float32),
        "b_in": s * jax.random.normal(keys[1], (1, h_dim), jnp.float32),
        "w_hid": s * jax.random.normal(keys[2], (L, R, h_dim, h_dim), jnp.float32),
        "b_hid": s * jax.random.normal(keys[3], (L, 1, h_dim), jnp.float32),
        "w_out": s * jax.random.normal(keys[4], (R, h_dim, out_dim), jnp.float32),
        "b_out": s * jax.random.normal(keys[5], (1, out_dim), jnp.float32),
    }

    # GlobalAttentionPooling gate_nn = Linear(out_dim, 1); MLP: out_dim->100->64->1.
    wg = s * jax.random.normal(keys[6], (out_dim, 1), jnp.float32)
    bg = s * jax.random.normal(keys[7], (1, 1), jnp.float32)
    w1 = s * jax.random.normal(keys[8], (out_dim, 100), jnp.float32)
    b1 = s * jax.random.normal(keys[9], (1, 100), jnp.float32)
    w2 = s * jax.random.normal(keys[10], (100, 64), jnp.float32)
    b2 = s * jax.random.normal(keys[11], (1, 64), jnp.float32)
    w3 = s * jax.random.normal(keys[12], (64, 1), jnp.float32)
    b3 = s * jax.random.normal(keys[13], (1, 1), jnp.float32)

    # Coalesce the 8 tiny head params into 2 packed slabs (one DMA each).
    D = out_dim
    head1 = jnp.zeros((D + 1, 101), jnp.float32)
    head1 = head1.at[:D, 0:100].set(w1)
    head1 = head1.at[D:D + 1, 0:100].set(b1)
    head1 = head1.at[:D, 100:101].set(wg)
    head1 = head1.at[D:D + 1, 100:101].set(bg)

    head2 = jnp.zeros((101, 65), jnp.float32)
    head2 = head2.at[0:100, 0:64].set(w2)
    head2 = head2.at[100:101, 0:64].set(b2)
    head2 = head2.at[0:64, 64:65].set(w3)
    head2 = head2.at[100:101, 64:65].set(b3)

    p["head1"], p["head2"] = head1, head2
    return p


def build_dense_adjacency(num_graphs, num_nodes, num_relations):
    """Deterministic synthetic batch of graphs: node i -> (i+1+g)%N and (i+3)%N."""
    adjs = []
    for g in range(num_graphs):
        src, dst, etype = [], [], []
        for i in range(num_nodes):
            src += [i, i]
            dst += [(i + 1 + g) % num_nodes, (i + 3) % num_nodes]
            etype += [i % num_relations, (i + g + 1) % num_relations]
        a = jnp.zeros((num_relations, num_nodes, num_nodes), jnp.float32)
        a = a.at[jnp.array(etype), jnp.array(dst), jnp.array(src)].add(1.0)
        adjs.append(a)
    return jnp.stack(adjs, axis=0)


if __name__ == "__main__":
    # Small shapes consistent with the module; a batch of graphs (dgl.batch analogue).
    B = 16            # graphs in the batch -> 2 parallel grid steps of 8 graphs each
    N = 16            # nodes per graph (G*N = 128 rows per W-matmul)
    INPUT_DIM = 32
    H_DIM = 32
    OUT_DIM = 32
    NUM_RELATIONS = 4
    NUM_HIDDEN_LAYERS = 1

    key = jax.random.PRNGKey(0)
    k_feat, k_param = jax.random.split(key)

    x = jax.random.normal(k_feat, (B, N, INPUT_DIM), jnp.float32)  # g.ndata['features']
    adj = build_dense_adjacency(B, N, NUM_RELATIONS)               # encodes g.edata['etype']
    params = init_params(k_param, INPUT_DIM, H_DIM, OUT_DIM, NUM_RELATIONS,
                         NUM_HIDDEN_LAYERS)

    out = jax.jit(rel_graph_conv_model)(adj, x, params)            # [B] sigmoid probs
    jax.block_until_ready(out)
    assert out.shape == (B,)
    assert bool(jnp.all(jnp.isfinite(out)))
    assert bool(jnp.all((out >= 0.0) & (out <= 1.0)))
    print("KERNEL_OK")
</pallas_src>

<mosaic_0001>
module attributes {stable_mosaic.version = 11 : i64} {
  func.func @_fused_kernel(%arg0: i32, %arg1: memref<8x64x16xbf16, #tpu.memory_space<vmem>>, %arg2: memref<8x16x32xf32, #tpu.memory_space<vmem>>, %arg3: memref<4x32x32xbf16, #tpu.memory_space<vmem>>, %arg4: memref<1x32xf32, #tpu.memory_space<vmem>>, %arg5: memref<1x4x32x32xbf16, #tpu.memory_space<vmem>>, %arg6: memref<1x1x32xf32, #tpu.memory_space<vmem>>, %arg7: memref<4x32x32xbf16, #tpu.memory_space<vmem>>, %arg8: memref<1x32xf32, #tpu.memory_space<vmem>>, %arg9: memref<33x101xf32, #tpu.memory_space<vmem>>, %arg10: memref<101x65xf32, #tpu.memory_space<vmem>>, %arg11: memref<1x1x8xf32, #tpu.memory_space<vmem>>) attributes {dimension_semantics = [#tpu.dimension_semantics<parallel>], iteration_bounds = array<i64: 2>, scalar_prefetch = 0 : i64, scratch_operands = 0 : i64, tpu.core_type = #tpu.core_type<tc>, window_params = [{transform_indices = @transform_0, window_bounds = array<i64: 8, 64, 16>}, {transform_indices = @transform_1, window_bounds = array<i64: 8, 16, 32>}, {pipeline_mode = #tpu.pipeline_mode<synchronous>, transform_indices = @transform_2, window_bounds = array<i64: 4, 32, 32>}, {pipeline_mode = #tpu.pipeline_mode<synchronous>, transform_indices = @transform_3, window_bounds = array<i64: 1, 32>}, {pipeline_mode = #tpu.pipeline_mode<synchronous>, transform_indices = @transform_4, window_bounds = array<i64: 1, 4, 32, 32>}, {pipeline_mode = #tpu.pipeline_mode<synchronous>, transform_indices = @transform_5, window_bounds = array<i64: 1, 1, 32>}, {pipeline_mode = #tpu.pipeline_mode<synchronous>, transform_indices = @transform_6, window_bounds = array<i64: 4, 32, 32>}, {pipeline_mode = #tpu.pipeline_mode<synchronous>, transform_indices = @transform_7, window_bounds = array<i64: 1, 32>}, {pipeline_mode = #tpu.pipeline_mode<synchronous>, transform_indices = @transform_8, window_bounds = array<i64: 33, 101>}, {pipeline_mode = #tpu.pipeline_mode<synchronous>, transform_indices = @transform_9, window_bounds = array<i64: 101, 65>}, {transform_indices = @transform_10, window_bounds = array<i64: 1, 1, 8>}]} {
    %c0 = arith.constant 0 : index
    %c0_0 = arith.constant 0 : index
    %c0_1 = arith.constant 0 : index
    %0 = vector.load %arg1[%c0, %c0_0, %c0_1] : memref<8x64x16xbf16, #tpu.memory_space<vmem>>, vector<8x64x16xbf16>
    %c0_2 = arith.constant 0 : index
    %c0_3 = arith.constant 0 : index
    %c0_4 = arith.constant 0 : index
    %1 = vector.load %arg2[%c0_2, %c0_3, %c0_4] : memref<8x16x32xf32, #tpu.memory_space<vmem>>, vector<8x16x32xf32>
    %c0_5 = arith.constant 0 : index
    %c0_6 = arith.constant 0 : index
    %2 = vector.load %arg4[%c0_5, %c0_6] : memref<1x32xf32, #tpu.memory_space<vmem>>, vector<1x32xf32>
    %3 = arith.truncf %1 : vector<8x16x32xf32> to vector<8x16x32xbf16>
    "tpu.trace_start"() <{level = 10 : i32, message = "gmn,gnd->gmd"}> : () -> ()
    %cst = arith.constant dense<0.000000e+00> : vector<8x64x32xf32>
    %4 = tpu.matmul %0, %3, %cst {dimension_numbers = #tpu.dot_dimension_numbers<[2], [1], [1], [2], [0, 0, 0, 1, 1, 2], [0], [0]>} : vector<8x64x16xbf16>, vector<8x16x32xbf16>, vector<8x64x32xf32> -> vector<8x64x32xf32>
    "tpu.trace_stop"() : () -> ()
    %5 = vector.extract_strided_slice %4 {offsets = [0, 0, 0], sizes = [8, 16, 32], strides = [1, 1, 1]} : vector<8x64x32xf32> to vector<8x16x32xf32>
    %6 = vector.shape_cast %5 : vector<8x16x32xf32> to vector<128x32xf32>
    %7 = arith.truncf %6 : vector<128x32xf32> to vector<128x32xbf16>
    %c0_7 = arith.constant 0 : index
    %c0_8 = arith.constant 0 : index
    %c0_9 = arith.constant 0 : index
    %8 = vector.load %arg3[%c0_7, %c0_8, %c0_9] : memref<4x32x32xbf16, #tpu.memory_space<vmem>>, vector<1x32x32xbf16>
    %9 = vector.shape_cast %8 : vector<1x32x32xbf16> to vector<32x32xbf16>
    %cst_10 = arith.constant dense<0.000000e+00> : vector<128x32xf32>
    %10 = tpu.matmul %7, %9, %cst_10 {dimension_numbers = #tpu.dot_dimension_numbers<[1], [0], [0], [1], [0, 0, 1, 1], [], []>} : vector<128x32xbf16>, vector<32x32xbf16>, vector<128x32xf32> -> vector<128x32xf32>
    %11 = vector.broadcast %2 : vector<1x32xf32> to vector<128x32xf32>
    %12 = arith.addf %11, %10 : vector<128x32xf32>
    %13 = vector.extract_strided_slice %4 {offsets = [0, 16, 0], sizes = [8, 16, 32], strides = [1, 1, 1]} : vector<8x64x32xf32> to vector<8x16x32xf32>
    %14 = vector.shape_cast %13 : vector<8x16x32xf32> to vector<128x32xf32>
    %15 = arith.truncf %14 : vector<128x32xf32> to vector<128x32xbf16>
    %c1 = arith.constant 1 : index
    %c0_11 = arith.constant 0 : index
    %c0_12 = arith.constant 0 : index
    %16 = vector.load %arg3[%c1, %c0_11, %c0_12] : memref<4x32x32xbf16, #tpu.memory_space<vmem>>, vector<1x32x32xbf16>
    %17 = vector.shape_cast %16 : vector<1x32x32xbf16> to vector<32x32xbf16>
    %cst_13 = arith.constant dense<0.000000e+00> : vector<128x32xf32>
    %18 = tpu.matmul %15, %17, %cst_13 {dimension_numbers = #tpu.dot_dimension_numbers<[1], [0], [0], [1], [0, 0, 1, 1], [], []>} : vector<128x32xbf16>, vector<32x32xbf16>, vector<128x32xf32> -> vector<128x32xf32>
    %19 = arith.addf %12, %18 : vector<128x32xf32>
    %20 = vector.extract_strided_slice %4 {offsets = [0, 32, 0], sizes = [8, 16, 32], strides = [1, 1, 1]} : vector<8x64x32xf32> to vector<8x16x32xf32>
    %21 = vector.shape_cast %20 : vector<8x16x32xf32> to vector<128x32xf32>
    %22 = arith.truncf %21 : vector<128x32xf32> to vector<128x32xbf16>
    %c2 = arith.constant 2 : index
    %c0_14 = arith.constant 0 : index
    %c0_15 = arith.constant 0 : index
    %23 = vector.load %arg3[%c2, %c0_14, %c0_15] : memref<4x32x32xbf16, #tpu.memory_space<vmem>>, vector<1x32x32xbf16>
    %24 = vector.shape_cast %23 : vector<1x32x32xbf16> to vector<32x32xbf16>
    %cst_16 = arith.constant dense<0.000000e+00> : vector<128x32xf32>
    %25 = tpu.matmul %22, %24, %cst_16 {dimension_numbers = #tpu.dot_dimension_numbers<[1], [0], [0], [1], [0, 0, 1, 1], [], []>} : vector<128x32xbf16>, vector<32x32xbf16>, vector<128x32xf32> -> vector<128x32xf32>
    %26 = arith.addf %19, %25 : vector<128x32xf32>
    %27 = vector.extract_strided_slice %4 {offsets = [0, 48, 0], sizes = [8, 16, 32], strides = [1, 1, 1]} : vector<8x64x32xf32> to vector<8x16x32xf32>
    %28 = vector.shape_cast %27 : vector<8x16x32xf32> to vector<128x32xf32>
    %29 = arith.truncf %28 : vector<128x32xf32> to vector<128x32xbf16>
    %c3 = arith.constant 3 : index
    %c0_17 = arith.constant 0 : index
    %c0_18 = arith.constant 0 : index
    %30 = vector.load %arg3[%c3, %c0_17, %c0_18] : memref<4x32x32xbf16, #tpu.memory_space<vmem>>, vector<1x32x32xbf16>
    %31 = vector.shape_cast %30 : vector<1x32x32xbf16> to vector<32x32xbf16>
    %cst_19 = arith.constant dense<0.000000e+00> : vector<128x32xf32>
    %32 = tpu.matmul %29, %31, %cst_19 {dimension_numbers = #tpu.dot_dimension_numbers<[1], [0], [0], [1], [0, 0, 1, 1], [], []>} : vector<128x32xbf16>, vector<32x32xbf16>, vector<128x32xf32> -> vector<128x32xf32>
    %33 = arith.addf %26, %32 : vector<128x32xf32>
    %cst_20 = arith.constant 0.000000e+00 : f32
    %34 = vector.broadcast %cst_20 : f32 to vector<128x32xf32>
    %35 = arith.maximumf %33, %34 : vector<128x32xf32>
    %36 = vector.shape_cast %35 : vector<128x32xf32> to vector<8x16x32xf32>
    %c0_21 = arith.constant 0 : index
    %c0_22 = arith.constant 0 : index
    %c0_23 = arith.constant 0 : index
    %37 = vector.load %arg6[%c0_21, %c0_22, %c0_23] : memref<1x1x32xf32, #tpu.memory_space<vmem>>, vector<1x1x32xf32>
    %38 = vector.shape_cast %37 : vector<1x1x32xf32> to vector<1x32xf32>
    %39 = arith.truncf %36 : vector<8x16x32xf32> to vector<8x16x32xbf16>
    "tpu.trace_start"() <{level = 10 : i32, message = "gmn,gnd->gmd"}> : () -> ()
    %cst_24 = arith.constant dense<0.000000e+00> : vector<8x64x32xf32>
    %40 = tpu.matmul %0, %39, %cst_24 {dimension_numbers = #tpu.dot_dimension_numbers<[2], [1], [1], [2], [0, 0, 0, 1, 1, 2], [0], [0]>} : vector<8x64x16xbf16>, vector<8x16x32xbf16>, vector<8x64x32xf32> -> vector<8x64x32xf32>
    "tpu.trace_stop"() : () -> ()
    %41 = vector.extract_strided_slice %40 {offsets = [0, 0, 0], sizes = [8, 16, 32], strides = [1, 1, 1]} : vector<8x64x32xf32> to vector<8x16x32xf32>
    %42 = vector.shape_cast %41 : vector<8x16x32xf32> to vector<128x32xf32>
    %43 = arith.truncf %42 : vector<128x32xf32> to vector<128x32xbf16>
    %c0_25 = arith.constant 0 : index
    %c0_26 = arith.constant 0 : index
    %c0_27 = arith.constant 0 : index
    %c0_28 = arith.constant 0 : index
    %44 = vector.load %arg5[%c0_25, %c0_26, %c0_27, %c0_28] : memref<1x4x32x32xbf16, #tpu.memory_space<vmem>>, vector<1x1x32x32xbf16>
    %45 = vector.shape_cast %44 : vector<1x1x32x32xbf16> to vector<32x32xbf16>
    %cst_29 = arith.constant dense<0.000000e+00> : vector<128x32xf32>
    %46 = tpu.matmul %43, %45, %cst_29 {dimension_numbers = #tpu.dot_dimension_numbers<[1], [0], [0], [1], [0, 0, 1, 1], [], []>} : vector<128x32xbf16>, vector<32x32xbf16>, vector<128x32xf32> -> vector<128x32xf32>
    %47 = vector.broadcast %38 : vector<1x32xf32> to vector<128x32xf32>
    %48 = arith.addf %47, %46 : vector<128x32xf32>
    %49 = vector.extract_strided_slice %40 {offsets = [0, 16, 0], sizes = [8, 16, 32], strides = [1, 1, 1]} : vector<8x64x32xf32> to vector<8x16x32xf32>
    %50 = vector.shape_cast %49 : vector<8x16x32xf32> to vector<128x32xf32>
    %51 = arith.truncf %50 : vector<128x32xf32> to vector<128x32xbf16>
    %c0_30 = arith.constant 0 : index
    %c1_31 = arith.constant 1 : index
    %c0_32 = arith.constant 0 : index
    %c0_33 = arith.constant 0 : index
    %52 = vector.load %arg5[%c0_30, %c1_31, %c0_32, %c0_33] : memref<1x4x32x32xbf16, #tpu.memory_space<vmem>>, vector<1x1x32x32xbf16>
    %53 = vector.shape_cast %52 : vector<1x1x32x32xbf16> to vector<32x32xbf16>
    %cst_34 = arith.constant dense<0.000000e+00> : vector<128x32xf32>
    %54 = tpu.matmul %51, %53, %cst_34 {dimension_numbers = #tpu.dot_dimension_numbers<[1], [0], [0], [1], [0, 0, 1, 1], [], []>} : vector<128x32xbf16>, vector<32x32xbf16>, vector<128x32xf32> -> vector<128x32xf32>
    %55 = arith.addf %48, %54 : vector<128x32xf32>
    %56 = vector.extract_strided_slice %40 {offsets = [0, 32, 0], sizes = [8, 16, 32], strides = [1, 1, 1]} : vector<8x64x32xf32> to vector<8x16x32xf32>
    %57 = vector.shape_cast %56 : vector<8x16x32xf32> to vector<128x32xf32>
    %58 = arith.truncf %57 : vector<128x32xf32> to vector<128x32xbf16>
    %c0_35 = arith.constant 0 : index
    %c2_36 = arith.constant 2 : index
    %c0_37 = arith.constant 0 : index
    %c0_38 = arith.constant 0 : index
    %59 = vector.load %arg5[%c0_35, %c2_36, %c0_37, %c0_38] : memref<1x4x32x32xbf16, #tpu.memory_space<vmem>>, vector<1x1x32x32xbf16>
    %60 = vector.shape_cast %59 : vector<1x1x32x32xbf16> to vector<32x32xbf16>
    %cst_39 = arith.constant dense<0.000000e+00> : vector<128x32xf32>
    %61 = tpu.matmul %58, %60, %cst_39 {dimension_numbers = #tpu.dot_dimension_numbers<[1], [0], [0], [1], [0, 0, 1, 1], [], []>} : vector<128x32xbf16>, vector<32x32xbf16>, vector<128x32xf32> -> vector<128x32xf32>
    %62 = arith.addf %55, %61 : vector<128x32xf32>
    %63 = vector.extract_strided_slice %40 {offsets = [0, 48, 0], sizes = [8, 16, 32], strides = [1, 1, 1]} : vector<8x64x32xf32> to vector<8x16x32xf32>
    %64 = vector.shape_cast %63 : vector<8x16x32xf32> to vector<128x32xf32>
    %65 = arith.truncf %64 : vector<128x32xf32> to vector<128x32xbf16>
    %c0_40 = arith.constant 0 : index
    %c3_41 = arith.constant 3 : index
    %c0_42 = arith.constant 0 : index
    %c0_43 = arith.constant 0 : index
    %66 = vector.load %arg5[%c0_40, %c3_41, %c0_42, %c0_43] : memref<1x4x32x32xbf16, #tpu.memory_space<vmem>>, vector<1x1x32x32xbf16>
    %67 = vector.shape_cast %66 : vector<1x1x32x32xbf16> to vector<32x32xbf16>
    %cst_44 = arith.constant dense<0.000000e+00> : vector<128x32xf32>
    %68 = tpu.matmul %65, %67, %cst_44 {dimension_numbers = #tpu.dot_dimension_numbers<[1], [0], [0], [1], [0, 0, 1, 1], [], []>} : vector<128x32xbf16>, vector<32x32xbf16>, vector<128x32xf32> -> vector<128x32xf32>
    %69 = arith.addf %62, %68 : vector<128x32xf32>
    %cst_45 = arith.constant 0.000000e+00 : f32
    %70 = vector.broadcast %cst_45 : f32 to vector<128x32xf32>
    %71 = arith.maximumf %69, %70 : vector<128x32xf32>
    %72 = vector.shape_cast %71 : vector<128x32xf32> to vector<8x16x32xf32>
    %c0_46 = arith.constant 0 : index
    %c0_47 = arith.constant 0 : index
    %73 = vector.load %arg8[%c0_46, %c0_47] : memref<1x32xf32, #tpu.memory_space<vmem>>, vector<1x32xf32>
    %74 = arith.truncf %72 : vector<8x16x32xf32> to vector<8x16x32xbf16>
    "tpu.trace_start"() <{level = 10 : i32, message = "gmn,gnd->gmd"}> : () -> ()
    %cst_48 = arith.constant dense<0.000000e+00> : vector<8x64x32xf32>
    %75 = tpu.matmul %0, %74, %cst_48 {dimension_numbers = #tpu.dot_dimension_numbers<[2], [1], [1], [2], [0, 0, 0, 1, 1, 2], [0], [0]>} : vector<8x64x16xbf16>, vector<8x16x32xbf16>, vector<8x64x32xf32> -> vector<8x64x32xf32>
    "tpu.trace_stop"() : () -> ()
    %76 = vector.extract_strided_slice %75 {offsets = [0, 0, 0], sizes = [8, 16, 32], strides = [1, 1, 1]} : vector<8x64x32xf32> to vector<8x16x32xf32>
    %77 = vector.shape_cast %76 : vector<8x16x32xf32> to vector<128x32xf32>
    %78 = arith.truncf %77 : vector<128x32xf32> to vector<128x32xbf16>
    %c0_49 = arith.constant 0 : index
    %c0_50 = arith.constant 0 : index
    %c0_51 = arith.constant 0 : index
    %79 = vector.load %arg7[%c0_49, %c0_50, %c0_51] : memref<4x32x32xbf16, #tpu.memory_space<vmem>>, vector<1x32x32xbf16>
    %80 = vector.shape_cast %79 : vector<1x32x32xbf16> to vector<32x32xbf16>
    %cst_52 = arith.constant dense<0.000000e+00> : vector<128x32xf32>
    %81 = tpu.matmul %78, %80, %cst_52 {dimension_numbers = #tpu.dot_dimension_numbers<[1], [0], [0], [1], [0, 0, 1, 1], [], []>} : vector<128x32xbf16>, vector<32x32xbf16>, vector<128x32xf32> -> vector<128x32xf32>
    %82 = vector.broadcast %73 : vector<1x32xf32> to vector<128x32xf32>
    %83 = arith.addf %82, %81 : vector<128x32xf32>
    %84 = vector.extract_strided_slice %75 {offsets = [0, 16, 0], sizes = [8, 16, 32], strides = [1, 1, 1]} : vector<8x64x32xf32> to vector<8x16x32xf32>
    %85 = vector.shape_cast %84 : vector<8x16x32xf32> to vector<128x32xf32>
    %86 = arith.truncf %85 : vector<128x32xf32> to vector<128x32xbf16>
    %c1_53 = arith.constant 1 : index
    %c0_54 = arith.constant 0 : index
    %c0_55 = arith.constant 0 : index
    %87 = vector.load %arg7[%c1_53, %c0_54, %c0_55] : memref<4x32x32xbf16, #tpu.memory_space<vmem>>, vector<1x32x32xbf16>
    %88 = vector.shape_cast %87 : vector<1x32x32xbf16> to vector<32x32xbf16>
    %cst_56 = arith.constant dense<0.000000e+00> : vector<128x32xf32>
    %89 = tpu.matmul %86, %88, %cst_56 {dimension_numbers = #tpu.dot_dimension_numbers<[1], [0], [0], [1], [0, 0, 1, 1], [], []>} : vector<128x32xbf16>, vector<32x32xbf16>, vector<128x32xf32> -> vector<128x32xf32>
    %90 = arith.addf %83, %89 : vector<128x32xf32>
    %91 = vector.extract_strided_slice %75 {offsets = [0, 32, 0], sizes = [8, 16, 32], strides = [1, 1, 1]} : vector<8x64x32xf32> to vector<8x16x32xf32>
    %92 = vector.shape_cast %91 : vector<8x16x32xf32> to vector<128x32xf32>
    %93 = arith.truncf %92 : vector<128x32xf32> to vector<128x32xbf16>
    %c2_57 = arith.constant 2 : index
    %c0_58 = arith.constant 0 : index
    %c0_59 = arith.constant 0 : index
    %94 = vector.load %arg7[%c2_57, %c0_58, %c0_59] : memref<4x32x32xbf16, #tpu.memory_space<vmem>>, vector<1x32x32xbf16>
    %95 = vector.shape_cast %94 : vector<1x32x32xbf16> to vector<32x32xbf16>
    %cst_60 = arith.constant dense<0.000000e+00> : vector<128x32xf32>
    %96 = tpu.matmul %93, %95, %cst_60 {dimension_numbers = #tpu.dot_dimension_numbers<[1], [0], [0], [1], [0, 0, 1, 1], [], []>} : vector<128x32xbf16>, vector<32x32xbf16>, vector<128x32xf32> -> vector<128x32xf32>
    %97 = arith.addf %90, %96 : vector<128x32xf32>
    %98 = vector.extract_strided_slice %75 {offsets = [0, 48, 0], sizes = [8, 16, 32], strides = [1, 1, 1]} : vector<8x64x32xf32> to vector<8x16x32xf32>
    %99 = vector.shape_cast %98 : vector<8x16x32xf32> to vector<128x32xf32>
    %100 = arith.truncf %99 : vector<128x32xf32> to vector<128x32xbf16>
    %c3_61 = arith.constant 3 : index
    %c0_62 = arith.constant 0 : index
    %c0_63 = arith.constant 0 : index
    %101 = vector.load %arg7[%c3_61, %c0_62, %c0_63] : memref<4x32x32xbf16, #tpu.memory_space<vmem>>, vector<1x32x32xbf16>
    %102 = vector.shape_cast %101 : vector<1x32x32xbf16> to vector<32x32xbf16>
    %cst_64 = arith.constant dense<0.000000e+00> : vector<128x32xf32>
    %103 = tpu.matmul %100, %102, %cst_64 {dimension_numbers = #tpu.dot_dimension_numbers<[1], [0], [0], [1], [0, 0, 1, 1], [], []>} : vector<128x32xbf16>, vector<32x32xbf16>, vector<128x32xf32> -> vector<128x32xf32>
    %104 = arith.addf %97, %103 : vector<128x32xf32>
    %105 = vector.shape_cast %104 : vector<128x32xf32> to vector<8x16x32xf32>
    %c0_65 = arith.constant 0 : index
    %c0_66 = arith.constant 0 : index
    %106 = vector.load %arg9[%c0_65, %c0_66] : memref<33x101xf32, #tpu.memory_space<vmem>>, vector<33x101xf32>
    %c0_67 = arith.constant 0 : index
    %c0_68 = arith.constant 0 : index
    %107 = vector.load %arg10[%c0_67, %c0_68] : memref<101x65xf32, #tpu.memory_space<vmem>>, vector<101x65xf32>
    %108 = vector.extract_strided_slice %106 {offsets = [0, 0], sizes = [32, 100], strides = [1, 1]} : vector<33x101xf32> to vector<32x100xf32>
    %109 = arith.truncf %108 : vector<32x100xf32> to vector<32x100xbf16>
    %110 = vector.extract_strided_slice %106 {offsets = [32, 0], sizes = [1, 100], strides = [1, 1]} : vector<33x101xf32> to vector<1x100xf32>
    %111 = vector.extract_strided_slice %106 {offsets = [0, 100], sizes = [32, 1], strides = [1, 1]} : vector<33x101xf32> to vector<32x1xf32>
    %112 = arith.truncf %111 : vector<32x1xf32> to vector<32x1xbf16>
    %113 = vector.extract_strided_slice %106 {offsets = [32, 100], sizes = [1, 1], strides = [1, 1]} : vector<33x101xf32> to vector<1x1xf32>
    %114 = vector.extract_strided_slice %107 {offsets = [0, 0], sizes = [100, 64], strides = [1, 1]} : vector<101x65xf32> to vector<100x64xf32>
    %115 = arith.truncf %114 : vector<100x64xf32> to vector<100x64xbf16>
    %116 = vector.extract_strided_slice %107 {offsets = [100, 0], sizes = [1, 64], strides = [1, 1]} : vector<101x65xf32> to vector<1x64xf32>
    %117 = vector.extract_strided_slice %107 {offsets = [0, 64], sizes = [64, 1], strides = [1, 1]} : vector<101x65xf32> to vector<64x1xf32>
    %118 = arith.truncf %117 : vector<64x1xf32> to vector<64x1xbf16>
    %119 = vector.extract_strided_slice %107 {offsets = [100, 64], sizes = [1, 1], strides = [1, 1]} : vector<101x65xf32> to vector<1x1xf32>
    %120 = vector.shape_cast %105 : vector<8x16x32xf32> to vector<128x32xf32>
    %121 = arith.truncf %120 : vector<128x32xf32> to vector<128x32xbf16>
    %cst_69 = arith.constant dense<0.000000e+00> : vector<128x1xf32>
    %122 = tpu.matmul %121, %112, %cst_69 {dimension_numbers = #tpu.dot_dimension_numbers<[1], [0], [0], [1], [0, 0, 1, 1], [], []>} : vector<128x32xbf16>, vector<32x1xbf16>, vector<128x1xf32> -> vector<128x1xf32>
    %123 = vector.broadcast %113 : vector<1x1xf32> to vector<128x1xf32>
    %124 = arith.addf %122, %123 : vector<128x1xf32>
    %125 = vector.shape_cast %124 : vector<128x1xf32> to vector<8x16x1xf32>
    %cst_70 = arith.constant dense<0xFF800000> : vector<8x1xf32>
    %126 = vector.multi_reduction <maximumf>, %125, %cst_70 [1] : vector<8x16x1xf32> to vector<8x1xf32>
    %127 = vector.shape_cast %126 : vector<8x1xf32> to vector<8x1x1xf32>
    %128 = vector.broadcast %127 : vector<8x1x1xf32> to vector<8x16x1xf32>
    %129 = arith.subf %125, %128 : vector<8x16x1xf32>
    %130 = math.exp %129 : vector<8x16x1xf32>
    %cst_71 = arith.constant dense<0.000000e+00> : vector<8x1xf32>
    %131 = vector.multi_reduction <add>, %130, %cst_71 [1] : vector<8x16x1xf32> to vector<8x1xf32>
    %132 = vector.shape_cast %131 : vector<8x1xf32> to vector<8x1x1xf32>
    %133 = tpu.reciprocal %132 {approx = true} : vector<8x1x1xf32> -> vector<8x1x1xf32>
    %134 = vector.broadcast %133 : vector<8x1x1xf32> to vector<8x16x1xf32>
    %135 = arith.mulf %130, %134 : vector<8x16x1xf32>
    %136 = vector.broadcast %135 : vector<8x16x1xf32> to vector<8x16x32xf32>
    %137 = arith.mulf %105, %136 : vector<8x16x32xf32>
    %cst_72 = arith.constant dense<0.000000e+00> : vector<8x32xf32>
    %138 = vector.multi_reduction <add>, %137, %cst_72 [1] : vector<8x16x32xf32> to vector<8x32xf32>
    %139 = arith.truncf %138 : vector<8x32xf32> to vector<8x32xbf16>
    %cst_73 = arith.constant dense<0.000000e+00> : vector<8x100xf32>
    %140 = tpu.matmul %139, %109, %cst_73 {dimension_numbers = #tpu.dot_dimension_numbers<[1], [0], [0], [1], [0, 0, 1, 1], [], []>} : vector<8x32xbf16>, vector<32x100xbf16>, vector<8x100xf32> -> vector<8x100xf32>
    %141 = vector.broadcast %110 : vector<1x100xf32> to vector<8x100xf32>
    %142 = arith.addf %140, %141 : vector<8x100xf32>
    %cst_74 = arith.constant 0.000000e+00 : f32
    %143 = vector.broadcast %cst_74 : f32 to vector<8x100xf32>
    %144 = arith.maximumf %142, %143 : vector<8x100xf32>
    %145 = arith.truncf %144 : vector<8x100xf32> to vector<8x100xbf16>
    %cst_75 = arith.constant dense<0.000000e+00> : vector<8x64xf32>
    %146 = tpu.matmul %145, %115, %cst_75 {dimension_numbers = #tpu.dot_dimension_numbers<[1], [0], [0], [1], [0, 0, 1, 1], [], []>} : vector<8x100xbf16>, vector<100x64xbf16>, vector<8x64xf32> -> vector<8x64xf32>
    %147 = vector.broadcast %116 : vector<1x64xf32> to vector<8x64xf32>
    %148 = arith.addf %146, %147 : vector<8x64xf32>
    %cst_76 = arith.constant 0.000000e+00 : f32
    %149 = vector.broadcast %cst_76 : f32 to vector<8x64xf32>
    %150 = arith.maximumf %148, %149 : vector<8x64xf32>
    %151 = arith.truncf %150 : vector<8x64xf32> to vector<8x64xbf16>
    %cst_77 = arith.constant dense<0.000000e+00> : vector<8x1xf32>
    %152 = tpu.matmul %151, %118, %cst_77 {dimension_numbers = #tpu.dot_dimension_numbers<[1], [0], [0], [1], [0, 0, 1, 1], [], []>} : vector<8x64xbf16>, vector<64x1xbf16>, vector<8x1xf32> -> vector<8x1xf32>
    %153 = vector.broadcast %119 : vector<1x1xf32> to vector<8x1xf32>
    %154 = arith.addf %152, %153 : vector<8x1xf32>
    %155 = math.absf %154 : vector<8x1xf32>
    %cst_78 = arith.constant 0.000000e+00 : f32
    %156 = vector.broadcast %cst_78 : f32 to vector<8x1xf32>
    %157 = arith.subf %156, %155 : vector<8x1xf32>
    %158 = math.exp %157 : vector<8x1xf32>
    %cst_79 = arith.constant 0.000000e+00 : f32
    %159 = vector.broadcast %cst_79 : f32 to vector<8x1xf32>
    %160 = arith.cmpf oge, %154, %159 : vector<8x1xf32>
    %cst_80 = arith.constant 1.000000e+00 : f32
    %161 = vector.broadcast %cst_80 : f32 to vector<8x1xf32>
    %162 = arith.addf %161, %158 : vector<8x1xf32>
    %cst_81 = arith.constant 1.000000e+00 : f32
    %163 = vector.broadcast %cst_81 : f32 to vector<8x1xf32>
    %164 = arith.divf %163, %162 : vector<8x1xf32>
    %cst_82 = arith.constant 1.000000e+00 : f32
    %165 = vector.broadcast %cst_82 : f32 to vector<8x1xf32>
    %166 = arith.addf %165, %158 : vector<8x1xf32>
    %167 = arith.divf %158, %166 : vector<8x1xf32>
    %168 = arith.select %160, %164, %167 : vector<8x1xi1>, vector<8x1xf32>
    %169 = vector.shape_cast %168 : vector<8x1xf32> to vector<1x1x8xf32>
    %c0_83 = arith.constant 0 : index
    %c0_84 = arith.constant 0 : index
    %c0_85 = arith.constant 0 : index
    %170 = vector.load %arg11[%c0_83, %c0_84, %c0_85] : memref<1x1x8xf32, #tpu.memory_space<vmem>>, vector<1x1x8xf32>
    tpu.vector_store %arg11[%c0_83, %c0_84, %c0_85], %169 {strides = array<i32>} : memref<1x1x8xf32, #tpu.memory_space<vmem>>, vector<1x1x8xf32>,
    return
  }
  func.func @transform_0(%arg0: i32) -> (i32, i32, i32) {
    %c0_i32 = arith.constant 0 : i32
    %c0_i32_0 = arith.constant 0 : i32
    %c0_i32_1 = arith.constant 0 : i32
    return %arg0, %c0_i32, %c0_i32_0 : i32, i32, i32
  }
  func.func @transform_1(%arg0: i32) -> (i32, i32, i32) {
    %c0_i32 = arith.constant 0 : i32
    %c0_i32_0 = arith.constant 0 : i32
    %c0_i32_1 = arith.constant 0 : i32
    return %arg0, %c0_i32, %c0_i32_0 : i32, i32, i32
  }
  func.func @transform_2(%arg0: i32) -> (i32, i32, i32) {
    %c0_i32 = arith.constant 0 : i32
    %c0_i32_0 = arith.constant 0 : i32
    %c0_i32_1 = arith.constant 0 : i32
    %c0_i32_2 = arith.constant 0 : i32
    return %c0_i32, %c0_i32_0, %c0_i32_1 : i32, i32, i32
  }
  func.func @transform_3(%arg0: i32) -> (i32, i32) {
    %c0_i32 = arith.constant 0 : i32
    %c0_i32_0 = arith.constant 0 : i32
    %c0_i32_1 = arith.constant 0 : i32
    return %c0_i32, %c0_i32_0 : i32, i32
  }
  func.func @transform_4(%arg0: i32) -> (i32, i32, i32, i32) {
    %c0_i32 = arith.constant 0 : i32
    %c0_i32_0 = arith.constant 0 : i32
    %c0_i32_1 = arith.constant 0 : i32
    %c0_i32_2 = arith.constant 0 : i32
    %c0_i32_3 = arith.constant 0 : i32
    return %c0_i32, %c0_i32_0, %c0_i32_1, %c0_i32_2 : i32, i32, i32, i32
  }
  func.func @transform_5(%arg0: i32) -> (i32, i32, i32) {
    %c0_i32 = arith.constant 0 : i32
    %c0_i32_0 = arith.constant 0 : i32
    %c0_i32_1 = arith.constant 0 : i32
    %c0_i32_2 = arith.constant 0 : i32
    return %c0_i32, %c0_i32_0, %c0_i32_1 : i32, i32, i32
  }
  func.func @transform_6(%arg0: i32) -> (i32, i32, i32) {
    %c0_i32 = arith.constant 0 : i32
    %c0_i32_0 = arith.constant 0 : i32
    %c0_i32_1 = arith.constant 0 : i32
    %c0_i32_2 = arith.constant 0 : i32
    return %c0_i32, %c0_i32_0, %c0_i32_1 : i32, i32, i32
  }
  func.func @transform_7(%arg0: i32) -> (i32, i32) {
    %c0_i32 = arith.constant 0 : i32
    %c0_i32_0 = arith.constant 0 : i32
    %c0_i32_1 = arith.constant 0 : i32
    return %c0_i32, %c0_i32_0 : i32, i32
  }
  func.func @transform_8(%arg0: i32) -> (i32, i32) {
    %c0_i32 = arith.constant 0 : i32
    %c0_i32_0 = arith.constant 0 : i32
    %c0_i32_1 = arith.constant 0 : i32
    return %c0_i32, %c0_i32_0 : i32, i32
  }
  func.func @transform_9(%arg0: i32) -> (i32, i32) {
    %c0_i32 = arith.constant 0 : i32
    %c0_i32_0 = arith.constant 0 : i32
    %c0_i32_1 = arith.constant 0 : i32
    return %c0_i32, %c0_i32_0 : i32, i32
  }
  func.func @transform_10(%arg0: i32) -> (i32, i32, i32) {
    %c0_i32 = arith.constant 0 : i32
    %c0_i32_0 = arith.constant 0 : i32
    %c0_i32_1 = arith.constant 0 : i32
    return %arg0, %c0_i32, %c0_i32_0 : i32, i32, i32
  }
}

</mosaic_0001>

<llo_original>
// kernel: rel_graph_conv_model.1
$region0: #{rel_graph_conv_model.1}
  #allocation0 [shape = 'u32[]', space=smem, size = 0x4, offset = 0x4, fixed_abs, tag = 'smem constant byte address 0x4 - core index']
  #allocation1 [shape = 'u32[72,128]{1,0:T(1,128)}', space=vmem, size = 0x9000, scoped, tag = 'internal scratch']
  %s0 = inlined_call_operand.vmem [shape: bf16[16,64,16], index: 0, kind: input, shape index: {}]
  %s1 = inlined_call_operand.vmem [shape: f32[16,16,32], index: 1, kind: input, shape index: {}]
  %s2 = inlined_call_operand.vmem [shape: bf16[4,32,32], index: 2, kind: input, shape index: {}]
  %s3 = inlined_call_operand.vmem [shape: f32[1,32], index: 3, kind: input, shape index: {}]
  %s4 = inlined_call_operand.vmem [shape: bf16[1,4,32,32], index: 4, kind: input, shape index: {}]
  %s5 = inlined_call_operand.vmem [shape: f32[1,1,32], index: 5, kind: input, shape index: {}]
  %s6 = inlined_call_operand.vmem [shape: bf16[4,32,32], index: 6, kind: input, shape index: {}]
  %s7 = inlined_call_operand.vmem [shape: f32[1,32], index: 7, kind: input, shape index: {}]
  %s8 = inlined_call_operand.vmem [shape: f32[33,101], index: 8, kind: input, shape index: {}]
  %s9 = inlined_call_operand.vmem [shape: f32[101,65], index: 9, kind: input, shape index: {}]
  %s10 = inlined_call_operand.vmem [shape: f32[2,1,8], index: 10, kind: output, shape index: {}]
  %s11 = sld [smem:[#allocation0]]
  $region73: #{rel_graph_conv_model.1} parent=0
    _
  %s13 = ssub.s32 1, %s11
  %s14 = scalar_select 0, %s13, %s11
  loop: start=0, step=1, limit=4
  $region2: #{rel_graph_conv_model.1} parent=0 // loop_pre_header
    _
  $region3: #{rel_graph_conv_model.1} parent=0 // loop_header
    %s16 = sphi 0, %s20
    %p17 = scmp.ge.s32.totalorder %s16, 4
    %s26 = sphi 0, %s28
    %s29 = sphi 0, %s26
    %s30 = sphi 0, %s29
    %s46 = sphi 0, %s30
    %s52 = sphi 0, %s54
    %s55 = sphi 0, %s52
    %s56 = sphi 0, %s55
    %s72 = sphi 0, %s56
    %s76 = sphi 0, %s76
    %s78 = sphi 0, %s76
    %s79 = sphi 0, %s78
    %s93 = sphi 0, %s79
    %s97 = sphi 0, %s97
    %s99 = sphi 0, %s97
    %s100 = sphi 0, %s99
    %s114 = sphi 0, %s100
    %s118 = sphi 0, %s118
    %s120 = sphi 0, %s118
    %s121 = sphi 0, %s120
    %s135 = sphi 0, %s121
    %s139 = sphi 0, %s139
    %s141 = sphi 0, %s139
    %s142 = sphi 0, %s141
    %s156 = sphi 0, %s142
    %s160 = sphi 0, %s160
    %s162 = sphi 0, %s160
    %s163 = sphi 0, %s162
    %s177 = sphi 0, %s163
    %s181 = sphi 0, %s181
    %s183 = sphi 0, %s181
    %s184 = sphi 0, %s183
    %s198 = sphi 0, %s184
    %s202 = sphi 0, %s202
    %s204 = sphi 0, %s202
    %s205 = sphi 0, %s204
    %s219 = sphi 0, %s205
    %s223 = sphi 0, %s223
    %s225 = sphi 0, %s223
    %s226 = sphi 0, %s225
    %s240 = sphi 0, %s226
    %s246 = sphi 0, %s248
    %s249 = sphi 0, %s246
    %s250 = sphi 0, %s249
    %s266 = sphi 0, %s250
  $region4: #{rel_graph_conv_model.1} parent=0 // loop_header_branch
    %19 = sbr.rel (%p17) target = $region8
  $region5: #{rel_graph_conv_model.1} parent=0 // loop_body
    %s21 = ssub.s32 %s16, 1
    %s22 = ssub.s32 %s16, 2
    %s23 = sadd.s32 %s16, 1
    %s24 = ssub.s32 %s16, %s23
    %p25 = scmp.eq.s32.totalorder %s24, 0
    %s27 = sadd.s32 %s26, 1
    %s28 = scalar_select %p25, %s26, %s27
    %p31 = pneg %p25
    %p32 = scmp.eq.s32.totalorder %s16, 1
    %p33 = por %p31, %p32
    %p34 = scmp.ne.s32.totalorder %s26, %s29
    %p35 = scmp.eq.s32.totalorder %s16, 0
    %p36 = por %p34, %p35
    %p37 = scmp.ne.s32.totalorder %s26, %s29
    %p38 = scmp.eq.s32.totalorder %s21, 1
    %p39 = por %p37, %p38
    %p40 = scmp.ne.s32.totalorder %s29, %s30
    %p41 = scmp.eq.s32.totalorder %s21, 0
    %p42 = por %p40, %p41
    %p43 = scmp.ne.s32.totalorder %s29, %s30
    %p44 = scmp.eq.s32.totalorder %s22, 1
    %p45 = por %p43, %p44
    %p47 = scmp.ne.s32.totalorder %s30, %s46
    %p48 = scmp.eq.s32.totalorder %s22, 0
    %p49 = por %p47, %p48
    %s50 = ssub.s32 %s16, %s23
    %p51 = scmp.eq.s32.totalorder %s50, 0
    %s53 = sadd.s32 %s52, 1
    %s54 = scalar_select %p51, %s52, %s53
    %p57 = pneg %p51
    %p58 = scmp.eq.s32.totalorder %s16, 1
    %p59 = por %p57, %p58
    %p60 = scmp.ne.s32.totalorder %s52, %s55
    %p61 = scmp.eq.s32.totalorder %s16, 0
    %p62 = por %p60, %p61
    %p63 = scmp.ne.s32.totalorder %s52, %s55
    %p64 = scmp.eq.s32.totalorder %s21, 1
    %p65 = por %p63, %p64
    %p66 = scmp.ne.s32.totalorder %s55, %s56
    %p67 = scmp.eq.s32.totalorder %s21, 0
    %p68 = por %p66, %p67
    %p69 = scmp.ne.s32.totalorder %s55, %s56
    %p70 = scmp.eq.s32.totalorder %s22, 1
    %p71 = por %p69, %p70
    %p73 = scmp.ne.s32.totalorder %s56, %s72
    %p74 = scmp.eq.s32.totalorder %s22, 0
    %p75 = por %p73, %p74
    %s77 = sadd.s32 %s76, 1
    %p80 = scmp.eq.s32.totalorder %s16, 1
    %p81 = scmp.ne.s32.totalorder %s76, %s78
    %p82 = scmp.eq.s32.totalorder %s16, 0
    %p83 = por %p81, %p82
    %p84 = scmp.ne.s32.totalorder %s76, %s78
    %p85 = scmp.eq.s32.totalorder %s21, 1
    %p86 = por %p84, %p85
    %p87 = scmp.ne.s32.totalorder %s78, %s79
    %p88 = scmp.eq.s32.totalorder %s21, 0
    %p89 = por %p87, %p88
    %p90 = scmp.ne.s32.totalorder %s78, %s79
    %p91 = scmp.eq.s32.totalorder %s22, 1
    %p92 = por %p90, %p91
    %p94 = scmp.ne.s32.totalorder %s79, %s93
    %p95 = scmp.eq.s32.totalorder %s22, 0
    %p96 = por %p94, %p95
    %s98 = sadd.s32 %s97, 1
    %p101 = scmp.eq.s32.totalorder %s16, 1
    %p102 = scmp.ne.s32.totalorder %s97, %s99
    %p103 = scmp.eq.s32.totalorder %s16, 0
    %p104 = por %p102, %p103
    %p105 = scmp.ne.s32.totalorder %s97, %s99
    %p106 = scmp.eq.s32.totalorder %s21, 1
    %p107 = por %p105, %p106
    %p108 = scmp.ne.s32.totalorder %s99, %s100
    %p109 = scmp.eq.s32.totalorder %s21, 0
    %p110 = por %p108, %p109
    %p111 = scmp.ne.s32.totalorder %s99, %s100
    %p112 = scmp.eq.s32.totalorder %s22, 1
    %p113 = por %p111, %p112
    %p115 = scmp.ne.s32.totalorder %s100, %s114
    %p116 = scmp.eq.s32.totalorder %s22, 0
    %p117 = por %p115, %p116
    %s119 = sadd.s32 %s118, 1
    %p122 = scmp.eq.s32.totalorder %s16, 1
    %p123 = scmp.ne.s32.totalorder %s118, %s120
    %p124 = scmp.eq.s32.totalorder %s16, 0
    %p125 = por %p123, %p124
    %p126 = scmp.ne.s32.totalorder %s118, %s120
    %p127 = scmp.eq.s32.totalorder %s21, 1
    %p128 = por %p126, %p127
    %p129 = scmp.ne.s32.totalorder %s120, %s121
    %p130 = scmp.eq.s32.totalorder %s21, 0
    %p131 = por %p129, %p130
    %p132 = scmp.ne.s32.totalorder %s120, %s121
    %p133 = scmp.eq.s32.totalorder %s22, 1
    %p134 = por %p132, %p133
    %p136 = scmp.ne.s32.totalorder %s121, %s135
    %p137 = scmp.eq.s32.totalorder %s22, 0
    %p138 = por %p136, %p137
    %s140 = sadd.s32 %s139, 1
    %p143 = scmp.eq.s32.totalorder %s16, 1
    %p144 = scmp.ne.s32.totalorder %s139, %s141
    %p145 = scmp.eq.s32.totalorder %s16, 0
    %p146 = por %p144, %p145
    %p147 = scmp.ne.s32.totalorder %s139, %s141
    %p148 = scmp.eq.s32.totalorder %s21, 1
    %p149 = por %p147, %p148
    %p150 = scmp.ne.s32.totalorder %s141, %s142
    %p151 = scmp.eq.s32.totalorder %s21, 0
    %p152 = por %p150, %p151
    %p153 = scmp.ne.s32.totalorder %s141, %s142
    %p154 = scmp.eq.s32.totalorder %s22, 1
    %p155 = por %p153, %p154
    %p157 = scmp.ne.s32.totalorder %s142, %s156
    %p158 = scmp.eq.s32.totalorder %s22, 0
    %p159 = por %p157, %p158
    %s161 = sadd.s32 %s160, 1
    %p164 = scmp.eq.s32.totalorder %s16, 1
    %p165 = scmp.ne.s32.totalorder %s160, %s162
    %p166 = scmp.eq.s32.totalorder %s16, 0
    %p167 = por %p165, %p166
    %p168 = scmp.ne.s32.totalorder %s160, %s162
    %p169 = scmp.eq.s32.totalorder %s21, 1
    %p170 = por %p168, %p169
    %p171 = scmp.ne.s32.totalorder %s162, %s163
    %p172 = scmp.eq.s32.totalorder %s21, 0
    %p173 = por %p171, %p172
    %p174 = scmp.ne.s32.totalorder %s162, %s163
    %p175 = scmp.eq.s32.totalorder %s22, 1
    %p176 = por %p174, %p175
    %p178 = scmp.ne.s32.totalorder %s163, %s177
    %p179 = scmp.eq.s32.totalorder %s22, 0
    %p180 = por %p178, %p179
    %s182 = sadd.s32 %s181, 1
    %p185 = scmp.eq.s32.totalorder %s16, 1
    %p186 = scmp.ne.s32.totalorder %s181, %s183
    %p187 = scmp.eq.s32.totalorder %s16, 0
    %p188 = por %p186, %p187
    %p189 = scmp.ne.s32.totalorder %s181, %s183
    %p190 = scmp.eq.s32.totalorder %s21, 1
    %p191 = por %p189, %p190
    %p192 = scmp.ne.s32.totalorder %s183, %s184
    %p193 = scmp.eq.s32.totalorder %s21, 0
    %p194 = por %p192, %p193
    %p195 = scmp.ne.s32.totalorder %s183, %s184
    %p196 = scmp.eq.s32.totalorder %s22, 1
    %p197 = por %p195, %p196
    %p199 = scmp.ne.s32.totalorder %s184, %s198
    %p200 = scmp.eq.s32.totalorder %s22, 0
    %p201 = por %p199, %p200
    %s203 = sadd.s32 %s202, 1
    %p206 = scmp.eq.s32.totalorder %s16, 1
    %p207 = scmp.ne.s32.totalorder %s202, %s204
    %p208 = scmp.eq.s32.totalorder %s16, 0
    %p209 = por %p207, %p208
    %p210 = scmp.ne.s32.totalorder %s202, %s204
    %p211 = scmp.eq.s32.totalorder %s21, 1
    %p212 = por %p210, %p211
    %p213 = scmp.ne.s32.totalorder %s204, %s205
    %p214 = scmp.eq.s32.totalorder %s21, 0
    %p215 = por %p213, %p214
    %p216 = scmp.ne.s32.totalorder %s204, %s205
    %p217 = scmp.eq.s32.totalorder %s22, 1
    %p218 = por %p216, %p217
    %p220 = scmp.ne.s32.totalorder %s205, %s219
    %p221 = scmp.eq.s32.totalorder %s22, 0
    %p222 = por %p220, %p221
    %s224 = sadd.s32 %s223, 1
    %p227 = scmp.eq.s32.totalorder %s16, 1
    %p228 = scmp.ne.s32.totalorder %s223, %s225
    %p229 = scmp.eq.s32.totalorder %s16, 0
    %p230 = por %p228, %p229
    %p231 = scmp.ne.s32.totalorder %s223, %s225
    %p232 = scmp.eq.s32.totalorder %s21, 1
    %p233 = por %p231, %p232
    %p234 = scmp.ne.s32.totalorder %s225, %s226
    %p235 = scmp.eq.s32.totalorder %s21, 0
    %p236 = por %p234, %p235
    %p237 = scmp.ne.s32.totalorder %s225, %s226
    %p238 = scmp.eq.s32.totalorder %s22, 1
    %p239 = por %p237, %p238
    %p241 = scmp.ne.s32.totalorder %s226, %s240
    %p242 = scmp.eq.s32.totalorder %s22, 0
    %p243 = por %p241, %p242
    %s244 = ssub.s32 %s16, %s23
    %p245 = scmp.eq.s32.totalorder %s244, 0
    %s247 = sadd.s32 %s246, 1
    %s248 = scalar_select %p245, %s246, %s247
    %p251 = pneg %p245
    %p252 = scmp.eq.s32.totalorder %s16, 1
    %p253 = por %p251, %p252
    %p254 = scmp.ne.s32.totalorder %s246, %s249
    %p255 = scmp.eq.s32.totalorder %s16, 0
    %p256 = por %p254, %p255
    %p257 = scmp.ne.s32.totalorder %s246, %s249
    %p258 = scmp.eq.s32.totalorder %s21, 1
    %p259 = por %p257, %p258
    %p260 = scmp.ne.s32.totalorder %s249, %s250
    %p261 = scmp.eq.s32.totalorder %s21, 0
    %p262 = por %p260, %p261
    %p263 = scmp.ne.s32.totalorder %s249, %s250
    %p264 = scmp.eq.s32.totalorder %s22, 1
    %p265 = por %p263, %p264
    %p267 = scmp.ne.s32.totalorder %s250, %s266
    %p268 = scmp.eq.s32.totalorder %s22, 0
    %p269 = por %p267, %p268
    %p270 = scmp.le.s32.totalorder 1, %s16
    %p271 = scmp.lt.s32.totalorder %s16, 3
    %p272 = pnand %p270, %p271
    %p273 = pneg %p272
    // Predicated region
    $region9: #{rel_graph_conv_model.1} parent=5 // pred_check
      _
    $region10: #{rel_graph_conv_model.1} parent=5 // pred_check_branch
      %275 = sbr.rel (%p272) target = $region12
    $region11: #{rel_graph_conv_model.1} parent=5 // pred_region
      %s276 = ssub.s32 %s16, 1
      // Predicated region
      $region13: #{rel_graph_conv_model.1} parent=11 // pred_check
        %p277 = pneg %p89
      $region14: #{rel_graph_conv_model.1} parent=11 // pred_check_branch
        %279 = sbr.rel (%p277) target = $region16
      $region15: #{rel_graph_conv_model.1} parent=11 // pred_region
        _
      $region16: #{rel_graph_conv_model.1} parent=11 // pred_fallthru
        _
      // Predicated region
      $region17: #{rel_graph_conv_model.1} parent=11 // pred_check
        %p280 = pneg %p110
      $region18: #{rel_graph_conv_model.1} parent=11 // pred_check_branch
        %282 = sbr.rel (%p280) target = $region20
      $region19: #{rel_graph_conv_model.1} parent=11 // pred_region
        _
      $region20: #{rel_graph_conv_model.1} parent=11 // pred_fallthru
        _
      // Predicated region
      $region21: #{rel_graph_conv_model.1} parent=11 // pred_check
        %p283 = pneg %p131
      $region22: #{rel_graph_conv_model.1} parent=11 // pred_check_branch
        %285 = sbr.rel (%p283) target = $region24
      $region23: #{rel_graph_conv_model.1} parent=11 // pred_region
        _
      $region24: #{rel_graph_conv_model.1} parent=11 // pred_fallthru
        _
      // Predicated region
      $region25: #{rel_graph_conv_model.1} parent=11 // pred_check
        %p286 = pneg %p152
      $region26: #{rel_graph_conv_model.1} parent=11 // pred_check_branch
        %288 = sbr.rel (%p286) target = $region28
      $region27: #{rel_graph_conv_model.1} parent=11 // pred_region
        _
      $region28: #{rel_graph_conv_model.1} parent=11 // pred_fallthru
        _
      // Predicated region
      $region29: #{rel_graph_conv_model.1} parent=11 // pred_check
        %p289 = pneg %p173
      $region30: #{rel_graph_conv_model.1} parent=11 // pred_check_branch
        %291 = sbr.rel (%p289) target = $region32
      $region31: #{rel_graph_conv_model.1} parent=11 // pred_region
        _
      $region32: #{rel_graph_conv_model.1} parent=11 // pred_fallthru
        _
      // Predicated region
      $region33: #{rel_graph_conv_model.1} parent=11 // pred_check
        %p292 = pneg %p194
      $region34: #{rel_graph_conv_model.1} parent=11 // pred_check_branch
        %294 = sbr.rel (%p292) target = $region36
      $region35: #{rel_graph_conv_model.1} parent=11 // pred_region
        _
      $region36: #{rel_graph_conv_model.1} parent=11 // pred_fallthru
        _
      // Predicated region
      $region37: #{rel_graph_conv_model.1} parent=11 // pred_check
        %p295 = pneg %p215
      $region38: #{rel_graph_conv_model.1} parent=11 // pred_check_branch
        %297 = sbr.rel (%p295) target = $region40
      $region39: #{rel_graph_conv_model.1} parent=11 // pred_region
        _
      $region40: #{rel_graph_conv_model.1} parent=11 // pred_fallthru
        _
      // Predicated region
      $region41: #{rel_graph_conv_model.1} parent=11 // pred_check
        %p298 = pneg %p236
      $region42: #{rel_graph_conv_model.1} parent=11 // pred_check_branch
        %300 = sbr.rel (%p298) target = $region44
      $region43: #{rel_graph_conv_model.1} parent=11 // pred_region
        _
      $region44: #{rel_graph_conv_model.1} parent=11 // pred_fallthru
        _
    $region12: #{rel_graph_conv_model.1} parent=5 // pred_fallthru
      _
    %p301 = scmp.lt.s32.totalorder %s16, 2
    // Predicated region
    $region45: #{rel_graph_conv_model.1} parent=5 // pred_check
      %p302 = pneg %p301
    $region46: #{rel_graph_conv_model.1} parent=5 // pred_check_branch
      %304 = sbr.rel (%p302) target = $region48
    $region47: #{rel_graph_conv_model.1} parent=5 // pred_region
      // Predicated region
      $region49: #{rel_graph_conv_model.1} parent=47 // pred_check
        %p305 = pneg %p36
      $region50: #{rel_graph_conv_model.1} parent=47 // pred_check_branch
        %307 = sbr.rel (%p305) target = $region52
      $region51: #{rel_graph_conv_model.1} parent=47 // pred_region
        %s308 = smul.u32 8, %s16
        %p309 = scmp.lt.s32.totalorder %s308, 15
        %s310 = scalar_select %p309, %s308, 15
        %s311 = smul.addr %s310, 8
        %s312 = smul.addr %s311, 4
        %s313 = scalar_lea.vmem %s0, %s312
        %s314 = smul.u32 8, %s16
      $region52: #{rel_graph_conv_model.1} parent=47 // pred_fallthru
        _
      // Predicated region
      $region53: #{rel_graph_conv_model.1} parent=47 // pred_check
        %p315 = pneg %p62
      $region54: #{rel_graph_conv_model.1} parent=47 // pred_check_branch
        %317 = sbr.rel (%p315) target = $region56
      $region55: #{rel_graph_conv_model.1} parent=47 // pred_region
        %s318 = smul.u32 8, %s16
        %p319 = scmp.lt.s32.totalorder %s318, 15
        %s320 = scalar_select %p319, %s318, 15
        %s321 = smul.addr %s320, 2
        %s322 = smul.addr %s321, 8
        %s323 = scalar_lea.vmem %s1, %s322
        %s324 = smul.u32 8, %s16
      $region56: #{rel_graph_conv_model.1} parent=47 // pred_fallthru
        _
    $region48: #{rel_graph_conv_model.1} parent=5 // pred_fallthru
      _
    %p325 = scmp.le.s32.totalorder 1, %s16
    %p326 = scmp.lt.s32.totalorder %s16, 3
    %p327 = pnand %p325, %p326
    %p328 = pneg %p327
    // Predicated region
    $region57: #{rel_graph_conv_model.1} parent=5 // pred_check
      _
    $region58: #{rel_graph_conv_model.1} parent=5 // pred_check_branch
      %330 = sbr.rel (%p327) target = $region60
    $region59: #{rel_graph_conv_model.1} parent=5 // pred_region
      %s331 = ssub.s32 %s16, 1
      %s332 = smul.u32 8, %s21
      %p333 = scmp.lt.s32.totalorder %s332, 15
      %s334 = scalar_select %p333, %s332, 15
      %s335 = smul.addr %s334, 8
      %s336 = smul.addr %s335, 4
      %s337 = scalar_lea.vmem %s0, %s336
      %p338 = pneg %p42
      %p339 = pneg %p39
      %s340 = smul.u32 8, %s21
      %p341 = scmp.lt.s32.totalorder %s340, 15
      %s342 = scalar_select %p341, %s340, 15
      %s343 = smul.addr %s342, 2
      %s344 = smul.addr %s343, 8
      %s345 = scalar_lea.vmem %s1, %s344
      %p346 = pneg %p68
      %p347 = pneg %p65
      %p348 = pneg %p89
      %p349 = pneg %p86
      %p350 = pneg %p110
      %p351 = pneg %p107
      %p352 = pneg %p131
      %p353 = pneg %p128
      %p354 = pneg %p152
      %p355 = pneg %p149
      %p356 = pneg %p173
      %p357 = pneg %p170
      %p358 = pneg %p194
      %p359 = pneg %p191
      %p360 = pneg %p215
      %p361 = pneg %p212
      %p362 = pneg %p236
      %p363 = pneg %p233
      %p364 = pneg %p262
      %p365 = pneg %p259
      %p366 = scmp.lt.s32.totalorder %s21, 1
      %s367 = scalar_select %p366, %s21, 1
      %s368 = scalar_lea.vmem %s10, %s367
      %s369 = smul.u32 8, %s21
      %p370 = scmp.lt.s32.totalorder %s369, 15
      %s371 = scalar_select %p370, %s369, 15
      %s372 = smul.addr %s371, 8
      %s373 = smul.addr %s372, 4
      %s374 = scalar_lea.vmem %s0, %s373
      %s375 = smul.u32 8, %s21
      %s376 = smul.u32 8, %s21
      %p377 = scmp.lt.s32.totalorder %s376, 15
      %s378 = scalar_select %p377, %s376, 15
      %s379 = smul.addr %s378, 2
      %s380 = smul.addr %s379, 8
      %s381 = scalar_lea.vmem %s1, %s380
      %s382 = smul.u32 8, %s21
      %p383 = scmp.lt.s32.totalorder %s21, 1
      %s384 = scalar_select %p383, %s21, 1
      %s385 = scalar_lea.vmem %s10, %s384
      %v387 = vld [vmem:[%s374] sm:$0xf]
      %v388 = vld [vmem:[%s374 + $0x4] sm:$0xf]
      %v389 = vld [vmem:[%s374 + $0x8] sm:$0xf]
      %v390 = vld [vmem:[%s374 + $0xc] sm:$0xf]
      %v391 = vld [vmem:[%s374 + $0x10] sm:$0xf]
      %v392 = vld [vmem:[%s374 + $0x14] sm:$0xf]
      %v393 = vld [vmem:[%s374 + $0x18] sm:$0xf]
      %v394 = vld [vmem:[%s374 + $0x1c] sm:$0xf]
      %v395 = vld [vmem:[%s374 + $0x20] sm:$0xf]
      %v396 = vld [vmem:[%s374 + $0x24] sm:$0xf]
      %v397 = vld [vmem:[%s374 + $0x28] sm:$0xf]
      %v398 = vld [vmem:[%s374 + $0x2c] sm:$0xf]
      %v399 = vld [vmem:[%s374 + $0x30] sm:$0xf]
      %v400 = vld [vmem:[%s374 + $0x34] sm:$0xf]
      %v401 = vld [vmem:[%s374 + $0x38] sm:$0xf]
      %v402 = vld [vmem:[%s374 + $0x3c] sm:$0xf]
      %v403 = vld [vmem:[%s374 + $0x40] sm:$0xf]
      %v404 = vld [vmem:[%s374 + $0x44] sm:$0xf]
      %v405 = vld [vmem:[%s374 + $0x48] sm:$0xf]
      %v406 = vld [vmem:[%s374 + $0x4c] sm:$0xf]
      %v407 = vld [vmem:[%s374 + $0x50] sm:$0xf]
      %v408 = vld [vmem:[%s374 + $0x54] sm:$0xf]
      %v409 = vld [vmem:[%s374 + $0x58] sm:$0xf]
      %v410 = vld [vmem:[%s374 + $0x5c] sm:$0xf]
      %v411 = vld [vmem:[%s374 + $0x60] sm:$0xf]
      %v412 = vld [vmem:[%s374 + $0x64] sm:$0xf]
      %v413 = vld [vmem:[%s374 + $0x68] sm:$0xf]
      %v414 = vld [vmem:[%s374 + $0x6c] sm:$0xf]
      %v415 = vld [vmem:[%s374 + $0x70] sm:$0xf]
      %v416 = vld [vmem:[%s374 + $0x74] sm:$0xf]
      %v417 = vld [vmem:[%s374 + $0x78] sm:$0xf]
      %v418 = vld [vmem:[%s374 + $0x7c] sm:$0xf]
      %v419 = vld [vmem:[%s374 + $0x80] sm:$0xf]
      %v420 = vld [vmem:[%s374 + $0x84] sm:$0xf]
      %v421 = vld [vmem:[%s374 + $0x88] sm:$0xf]
      %v422 = vld [vmem:[%s374 + $0x8c] sm:$0xf]
      %v423 = vld [vmem:[%s374 + $0x90] sm:$0xf]
      %v424 = vld [vmem:[%s374 + $0x94] sm:$0xf]
      %v425 = vld [vmem:[%s374 + $0x98] sm:$0xf]
      %v426 = vld [vmem:[%s374 + $0x9c] sm:$0xf]
      %v427 = vld [vmem:[%s374 + $0xa0] sm:$0xf]
      %v428 = vld [vmem:[%s374 + $0xa4] sm:$0xf]
      %v429 = vld [vmem:[%s374 + $0xa8] sm:$0xf]
      %v430 = vld [vmem:[%s374 + $0xac] sm:$0xf]
      %v431 = vld [vmem:[%s374 + $0xb0] sm:$0xf]
      %v432 = vld [vmem:[%s374 + $0xb4] sm:$0xf]
      %v433 = vld [vmem:[%s374 + $0xb8] sm:$0xf]
      %v434 = vld [vmem:[%s374 + $0xbc] sm:$0xf]
      %v435 = vld [vmem:[%s374 + $0xc0] sm:$0xf]
      %v436 = vld [vmem:[%s374 + $0xc4] sm:$0xf]
      %v437 = vld [vmem:[%s374 + $0xc8] sm:$0xf]
      %v438 = vld [vmem:[%s374 + $0xcc] sm:$0xf]
      %v439 = vld [vmem:[%s374 + $0xd0] sm:$0xf]
      %v440 = vld [vmem:[%s374 + $0xd4] sm:$0xf]
      %v441 = vld [vmem:[%s374 + $0xd8] sm:$0xf]
      %v442 = vld [vmem:[%s374 + $0xdc] sm:$0xf]
      %v443 = vld [vmem:[%s374 + $0xe0] sm:$0xf]
      %v444 = vld [vmem:[%s374 + $0xe4] sm:$0xf]
      %v445 = vld [vmem:[%s374 + $0xe8] sm:$0xf]
      %v446 = vld [vmem:[%s374 + $0xec] sm:$0xf]
      %v447 = vld [vmem:[%s374 + $0xf0] sm:$0xf]
      %v448 = vld [vmem:[%s374 + $0xf4] sm:$0xf]
      %v449 = vld [vmem:[%s374 + $0xf8] sm:$0xf]
      %v450 = vld [vmem:[%s374 + $0xfc] sm:$0xf]
      %v451 = vld [vmem:[%s381] sm:$0xff]
      %v452 = vld [vmem:[%s381 + $0x8] sm:$0xff]
      %v453 = vld [vmem:[%s381 + $0x10] sm:$0xff]
      %v454 = vld [vmem:[%s381 + $0x18] sm:$0xff]
      %v455 = vld [vmem:[%s381 + $0x20] sm:$0xff]
      %v456 = vld [vmem:[%s381 + $0x28] sm:$0xff]
      %v457 = vld [vmem:[%s381 + $0x30] sm:$0xff]
      %v458 = vld [vmem:[%s381 + $0x38] sm:$0xff]
      %v459 = vld [vmem:[%s381 + $0x40] sm:$0xff]
      %v460 = vld [vmem:[%s381 + $0x48] sm:$0xff]
      %v461 = vld [vmem:[%s381 + $0x50] sm:$0xff]
      %v462 = vld [vmem:[%s381 + $0x58] sm:$0xff]
      %v463 = vld [vmem:[%s381 + $0x60] sm:$0xff]
      %v464 = vld [vmem:[%s381 + $0x68] sm:$0xff]
      %v465 = vld [vmem:[%s381 + $0x70] sm:$0xff]
      %v466 = vld [vmem:[%s381 + $0x78] sm:$0xff]
      %v467 = vld [vmem:[%s3] sm:$0x1]
      %v468 = vpack.c.bf16 %v451, %v451
      %v469 = vpack.c.bf16 %v452, %v452
      %v470 = vpack.c.bf16 %v453, %v453
      %v471 = vpack.c.bf16 %v454, %v454
      %v472 = vpack.c.bf16 %v455, %v455
      %v473 = vpack.c.bf16 %v456, %v456
      %v474 = vpack.c.bf16 %v457, %v457
      %v475 = vpack.c.bf16 %v458, %v458
      %v476 = vpack.c.bf16 %v459, %v459
      %v477 = vpack.c.bf16 %v460, %v460
      %v478 = vpack.c.bf16 %v461, %v461
      %v479 = vpack.c.bf16 %v462, %v462
      %v480 = vpack.c.bf16 %v463, %v463
      %v481 = vpack.c.bf16 %v464, %v464
      %v482 = vpack.c.bf16 %v465, %v465
      %v483 = vpack.c.bf16 %v466, %v466
      %v492 = vunpack.c.l.b16 %v387
      %v493 = vunpack.c.l.b16 %v388
      %v494 = vunpack.c.l.b16 %v389
      %v495 = vunpack.c.l.b16 %v390
      %v496 = vunpack.c.l.b16 %v391
      %v497 = vunpack.c.l.b16 %v392
      %v498 = vunpack.c.l.b16 %v393
      %v499 = vunpack.c.l.b16 %v394
      %v500 = vpack.c.b16 %v493, %v492
      %v501 = vpack.c.b16 %v495, %v494
      %v502 = vpack.c.b16 %v497, %v496
      %v503 = vpack.c.b16 %v499, %v498
      %v506 = vunpack.c.l.b16 %v468
      %v507 = vunpack.c.l.b16 %v469
      %v508 = vpack.c.b16 %v507, %v506
      %vm510 = vcmask 130048
      %v512 = vsel %vm510, %v500, 0
      %v515 = vsel %vm510, %v501, 0
      %v518 = vsel %vm510, %v502, 0
      %v521 = vsel %vm510, %v503, 0
      %523 = vmatpush.bf16.msra.mxu0 0
      %524 = vmatpush.bf16.msra.mxu0 0
      %525 = vmatpush.bf16.msra.mxu0 0
      %526 = vmatpush.bf16.msra.mxu0 0
      %527 = vmatpush.bf16.msra.mxu0 0
      %528 = vmatpush.bf16.msra.mxu0 0
      %529 = vmatpush.bf16.msra.mxu0 0
      %530 = vmatpush.bf16.msra.mxu0 %v508
      %531 = vmatmul.bf16.gmra.mxu0 %v512
      %v532 = vpop.f32.mrf.mxu0
      %v533 = vadd.f32 0.0, %v532
      %v534 = vpop.f32.mrf.mxu0
      %v535 = vadd.f32 0.0, %v534
      %536 = vmatmul.bf16.gmra.mxu0 %v515
      %v537 = vpop.f32.mrf.mxu0
      %v538 = vadd.f32 0.0, %v537
      %v539 = vpop.f32.mrf.mxu0
      %v540 = vadd.f32 0.0, %v539
      %541 = vmatmul.bf16.gmra.mxu0 %v518
      %v542 = vpop.f32.mrf.mxu0
      %v543 = vadd.f32 0.0, %v542
      %v544 = vpop.f32.mrf.mxu0
      %v545 = vadd.f32 0.0, %v544
      %546 = vmatmul.bf16.gmra.mxu0 %v521
      %v547 = vpop.f32.mrf.mxu0
      %v548 = vadd.f32 0.0, %v547
      %v549 = vpop.f32.mrf.mxu0
      %v550 = vadd.f32 0.0, %v549
      %551 = vdwg.mxu0
      %v560 = vunpack.c.l.b16 %v395
      %v561 = vunpack.c.l.b16 %v396
      %v562 = vunpack.c.l.b16 %v397
      %v563 = vunpack.c.l.b16 %v398
      %v564 = vunpack.c.l.b16 %v399
      %v565 = vunpack.c.l.b16 %v400
      %v566 = vunpack.c.l.b16 %v401
      %v567 = vunpack.c.l.b16 %v402
      %v568 = vpack.c.b16 %v561, %v560
      %v569 = vpack.c.b16 %v563, %v562
      %v570 = vpack.c.b16 %v565, %v564
      %v571 = vpack.c.b16 %v567, %v566
      %v574 = vunpack.c.l.b16 %v470
      %v575 = vunpack.c.l.b16 %v471
      %v576 = vpack.c.b16 %v575, %v574
      %v579 = vsel %vm510, %v568, 0
      %v582 = vsel %vm510, %v569, 0
      %v585 = vsel %vm510, %v570, 0
      %v588 = vsel %vm510, %v571, 0
      %590 = vmatpush.bf16.msra.mxu0 0
      %591 = vmatpush.bf16.msra.mxu0 0
      %592 = vmatpush.bf16.msra.mxu0 0
      %593 = vmatpush.bf16.msra.mxu0 0
      %594 = vmatpush.bf16.msra.mxu0 0
      %595 = vmatpush.bf16.msra.mxu0 0
      %596 = vmatpush.bf16.msra.mxu0 0
      %597 = vmatpush.bf16.msra.mxu0 %v576
      %598 = vmatmul.bf16.gmra.mxu0 %v579
      %v599 = vpop.f32.mrf.mxu0
      %v600 = vadd.f32 0.0, %v599
      %v601 = vpop.f32.mrf.mxu0
      %v602 = vadd.f32 0.0, %v601
      %603 = vmatmul.bf16.gmra.mxu0 %v582
      %v604 = vpop.f32.mrf.mxu0
      %v605 = vadd.f32 0.0, %v604
      %v606 = vpop.f32.mrf.mxu0
      %v607 = vadd.f32 0.0, %v606
      %608 = vmatmul.bf16.gmra.mxu0 %v585
      %v609 = vpop.f32.mrf.mxu0
      %v610 = vadd.f32 0.0, %v609
      %v611 = vpop.f32.mrf.mxu0
      %v612 = vadd.f32 0.0, %v611
      %613 = vmatmul.bf16.gmra.mxu0 %v588
      %v614 = vpop.f32.mrf.mxu0
      %v615 = vadd.f32 0.0, %v614
      %v616 = vpop.f32.mrf.mxu0
      %v617 = vadd.f32 0.0, %v616
      %618 = vdwg.mxu0
      %v627 = vunpack.c.l.b16 %v403
      %v628 = vunpack.c.l.b16 %v404
      %v629 = vunpack.c.l.b16 %v405
      %v630 = vunpack.c.l.b16 %v406
      %v631 = vunpack.c.l.b16 %v407
      %v632 = vunpack.c.l.b16 %v408
      %v633 = vunpack.c.l.b16 %v409
      %v634 = vunpack.c.l.b16 %v410
      %v635 = vpack.c.b16 %v628, %v627
      %v636 = vpack.c.b16 %v630, %v629
      %v637 = vpack.c.b16 %v632, %v631
      %v638 = vpack.c.b16 %v634, %v633
      %v641 = vunpack.c.l.b16 %v472
      %v642 = vunpack.c.l.b16 %v473
      %v643 = vpack.c.b16 %v642, %v641
      %v646 = vsel %vm510, %v635, 0
      %v649 = vsel %vm510, %v636, 0
      %v652 = vsel %vm510, %v637, 0
      %v655 = vsel %vm510, %v638, 0
      %657 = vmatpush.bf16.msra.mxu0 0
      %658 = vmatpush.bf16.msra.mxu0 0
      %659 = vmatpush.bf16.msra.mxu0 0
      %660 = vmatpush.bf16.msra.mxu0 0
      %661 = vmatpush.bf16.msra.mxu0 0
      %662 = vmatpush.bf16.msra.mxu0 0
      %663 = vmatpush.bf16.msra.mxu0 0
      %664 = vmatpush.bf16.msra.mxu0 %v643
      %665 = vmatmul.bf16.gmra.mxu0 %v646
      %v666 = vpop.f32.mrf.mxu0
      %v667 = vadd.f32 0.0, %v666
      %v668 = vpop.f32.mrf.mxu0
      %v669 = vadd.f32 0.0, %v668
      %670 = vmatmul.bf16.gmra.mxu0 %v649
      %v671 = vpop.f32.mrf.mxu0
      %v672 = vadd.f32 0.0, %v671
      %v673 = vpop.f32.mrf.mxu0
      %v674 = vadd.f32 0.0, %v673
      %675 = vmatmul.bf16.gmra.mxu0 %v652
      %v676 = vpop.f32.mrf.mxu0
      %v677 = vadd.f32 0.0, %v676
      %v678 = vpop.f32.mrf.mxu0
      %v679 = vadd.f32 0.0, %v678
      %680 = vmatmul.bf16.gmra.mxu0 %v655
      %v681 = vpop.f32.mrf.mxu0
      %v682 = vadd.f32 0.0, %v681
      %v683 = vpop.f32.mrf.mxu0
      %v684 = vadd.f32 0.0, %v683
      %685 = vdwg.mxu0
      %v694 = vunpack.c.l.b16 %v411
      %v695 = vunpack.c.l.b16 %v412
      %v696 = vunpack.c.l.b16 %v413
      %v697 = vunpack.c.l.b16 %v414
      %v698 = vunpack.c.l.b16 %v415
      %v699 = vunpack.c.l.b16 %v416
      %v700 = vunpack.c.l.b16 %v417
      %v701 = vunpack.c.l.b16 %v418
      %v702 = vpack.c.b16 %v695, %v694
      %v703 = vpack.c.b16 %v697, %v696
      %v704 = vpack.c.b16 %v699, %v698
      %v705 = vpack.c.b16 %v701, %v700
      %v708 = vunpack.c.l.b16 %v474
      %v709 = vunpack.c.l.b16 %v475
      %v710 = vpack.c.b16 %v709, %v708
      %v713 = vsel %vm510, %v702, 0
      %v716 = vsel %vm510, %v703, 0
      %v719 = vsel %vm510, %v704, 0
      %v722 = vsel %vm510, %v705, 0
      %724 = vmatpush.bf16.msra.mxu0 0
      %725 = vmatpush.bf16.msra.mxu0 0
      %726 = vmatpush.bf16.msra.mxu0 0
      %727 = vmatpush.bf16.msra.mxu0 0
      %728 = vmatpush.bf16.msra.mxu0 0
      %729 = vmatpush.bf16.msra.mxu0 0
      %730 = vmatpush.bf16.msra.mxu0 0
      %731 = vmatpush.bf16.msra.mxu0 %v710
      %732 = vmatmul.bf16.gmra.mxu0 %v713
      %v733 = vpop.f32.mrf.mxu0
      %v734 = vadd.f32 0.0, %v733
      %v735 = vpop.f32.mrf.mxu0
      %v736 = vadd.f32 0.0, %v735
      %737 = vmatmul.bf16.gmra.mxu0 %v716
      %v738 = vpop.f32.mrf.mxu0
      %v739 = vadd.f32 0.0, %v738
      %v740 = vpop.f32.mrf.mxu0
      %v741 = vadd.f32 0.0, %v740
      %742 = vmatmul.bf16.gmra.mxu0 %v719
      %v743 = vpop.f32.mrf.mxu0
      %v744 = vadd.f32 0.0, %v743
      %v745 = vpop.f32.mrf.mxu0
      %v746 = vadd.f32 0.0, %v745
      %747 = vmatmul.bf16.gmra.mxu0 %v722
      %v748 = vpop.f32.mrf.mxu0
      %v749 = vadd.f32 0.0, %v748
      %v750 = vpop.f32.mrf.mxu0
      %v751 = vadd.f32 0.0, %v750
      %752 = vdwg.mxu0
      %v761 = vunpack.c.l.b16 %v419
      %v762 = vunpack.c.l.b16 %v420
      %v763 = vunpack.c.l.b16 %v421
      %v764 = vunpack.c.l.b16 %v422
      %v765 = vunpack.c.l.b16 %v423
      %v766 = vunpack.c.l.b16 %v424
      %v767 = vunpack.c.l.b16 %v425
      %v768 = vunpack.c.l.b16 %v426
      %v769 = vpack.c.b16 %v762, %v761
      %v770 = vpack.c.b16 %v764, %v763
      %v771 = vpack.c.b16 %v766, %v765
      %v772 = vpack.c.b16 %v768, %v767
      %v775 = vunpack.c.l.b16 %v476
      %v776 = vunpack.c.l.b16 %v477
      %v777 = vpack.c.b16 %v776, %v775
      %v780 = vsel %vm510, %v769, 0
      %v783 = vsel %vm510, %v770, 0
      %v786 = vsel %vm510, %v771, 0
      %v789 = vsel %vm510, %v772, 0
      %791 = vmatpush.bf16.msra.mxu0 0
      %792 = vmatpush.bf16.msra.mxu0 0
      %793 = vmatpush.bf16.msra.mxu0 0
      %794 = vmatpush.bf16.msra.mxu0 0
      %795 = vmatpush.bf16.msra.mxu0 0
      %796 = vmatpush.bf16.msra.mxu0 0
      %797 = vmatpush.bf16.msra.mxu0 0
      %798 = vmatpush.bf16.msra.mxu0 %v777
      %799 = vmatmul.bf16.gmra.mxu0 %v780
      %v800 = vpop.f32.mrf.mxu0
      %v801 = vadd.f32 0.0, %v800
      %v802 = vpop.f32.mrf.mxu0
      %v803 = vadd.f32 0.0, %v802
      %804 = vmatmul.bf16.gmra.mxu0 %v783
      %v805 = vpop.f32.mrf.mxu0
      %v806 = vadd.f32 0.0, %v805
      %v807 = vpop.f32.mrf.mxu0
      %v808 = vadd.f32 0.0, %v807
      %809 = vmatmul.bf16.gmra.mxu0 %v786
      %v810 = vpop.f32.mrf.mxu0
      %v811 = vadd.f32 0.0, %v810
      %v812 = vpop.f32.mrf.mxu0
      %v813 = vadd.f32 0.0, %v812
      %814 = vmatmul.bf16.gmra.mxu0 %v789
      %v815 = vpop.f32.mrf.mxu0
      %v816 = vadd.f32 0.0, %v815
      %v817 = vpop.f32.mrf.mxu0
      %v818 = vadd.f32 0.0, %v817
      %819 = vdwg.mxu0
      %v828 = vunpack.c.l.b16 %v427
      %v829 = vunpack.c.l.b16 %v428
      %v830 = vunpack.c.l.b16 %v429
      %v831 = vunpack.c.l.b16 %v430
      %v832 = vunpack.c.l.b16 %v431
      %v833 = vunpack.c.l.b16 %v432
      %v834 = vunpack.c.l.b16 %v433
      %v835 = vunpack.c.l.b16 %v434
      %v836 = vpack.c.b16 %v829, %v828
      %v837 = vpack.c.b16 %v831, %v830
      %v838 = vpack.c.b16 %v833, %v832
      %v839 = vpack.c.b16 %v835, %v834
      %v842 = vunpack.c.l.b16 %v478
      %v843 = vunpack.c.l.b16 %v479
      %v844 = vpack.c.b16 %v843, %v842
      %v847 = vsel %vm510, %v836, 0
      %v850 = vsel %vm510, %v837, 0
      %v853 = vsel %vm510, %v838, 0
      %v856 = vsel %vm510, %v839, 0
      %858 = vmatpush.bf16.msra.mxu0 0
      %859 = vmatpush.bf16.msra.mxu0 0
      %860 = vmatpush.bf16.msra.mxu0 0
      %861 = vmatpush.bf16.msra.mxu0 0
      %862 = vmatpush.bf16.msra.mxu0 0
      %863 = vmatpush.bf16.msra.mxu0 0
      %864 = vmatpush.bf16.msra.mxu0 0
      %865 = vmatpush.bf16.msra.mxu0 %v844
      %866 = vmatmul.bf16.gmra.mxu0 %v847
      %v867 = vpop.f32.mrf.mxu0
      %v868 = vadd.f32 0.0, %v867
      %v869 = vpop.f32.mrf.mxu0
      %v870 = vadd.f32 0.0, %v869
      %871 = vmatmul.bf16.gmra.mxu0 %v850
      %v872 = vpop.f32.mrf.mxu0
      %v873 = vadd.f32 0.0, %v872
      %v874 = vpop.f32.mrf.mxu0
      %v875 = vadd.f32 0.0, %v874
      %876 = vmatmul.bf16.gmra.mxu0 %v853
      %v877 = vpop.f32.mrf.mxu0
      %v878 = vadd.f32 0.0, %v877
      %v879 = vpop.f32.mrf.mxu0
      %v880 = vadd.f32 0.0, %v879
      %881 = vmatmul.bf16.gmra.mxu0 %v856
      %v882 = vpop.f32.mrf.mxu0
      %v883 = vadd.f32 0.0, %v882
      %v884 = vpop.f32.mrf.mxu0
      %v885 = vadd.f32 0.0, %v884
      %886 = vdwg.mxu0
      %v895 = vunpack.c.l.b16 %v435
      %v896 = vunpack.c.l.b16 %v436
      %v897 = vunpack.c.l.b16 %v437
      %v898 = vunpack.c.l.b16 %v438
      %v899 = vunpack.c.l.b16 %v439
      %v900 = vunpack.c.l.b16 %v440
      %v901 = vunpack.c.l.b16 %v441
      %v902 = vunpack.c.l.b16 %v442
      %v903 = vpack.c.b16 %v896, %v895
      %v904 = vpack.c.b16 %v898, %v897
      %v905 = vpack.c.b16 %v900, %v899
      %v906 = vpack.c.b16 %v902, %v901
      %v909 = vunpack.c.l.b16 %v480
      %v910 = vunpack.c.l.b16 %v481
      %v911 = vpack.c.b16 %v910, %v909
      %v914 = vsel %vm510, %v903, 0
      %v917 = vsel %vm510, %v904, 0
      %v920 = vsel %vm510, %v905, 0
      %v923 = vsel %vm510, %v906, 0
      %925 = vmatpush.bf16.msra.mxu0 0
      %926 = vmatpush.bf16.msra.mxu0 0
      %927 = vmatpush.bf16.msra.mxu0 0
      %928 = vmatpush.bf16.msra.mxu0 0
      %929 = vmatpush.bf16.msra.mxu0 0
      %930 = vmatpush.bf16.msra.mxu0 0
      %931 = vmatpush.bf16.msra.mxu0 0
      %932 = vmatpush.bf16.msra.mxu0 %v911
      %933 = vmatmul.bf16.gmra.mxu0 %v914
      %v934 = vpop.f32.mrf.mxu0
      %v935 = vadd.f32 0.0, %v934
      %v936 = vpop.f32.mrf.mxu0
      %v937 = vadd.f32 0.0, %v936
      %938 = vmatmul.bf16.gmra.mxu0 %v917
      %v939 = vpop.f32.mrf.mxu0
      %v940 = vadd.f32 0.0, %v939
      %v941 = vpop.f32.mrf.mxu0
      %v942 = vadd.f32 0.0, %v941
      %943 = vmatmul.bf16.gmra.mxu0 %v920
      %v944 = vpop.f32.mrf.mxu0
      %v945 = vadd.f32 0.0, %v944
      %v946 = vpop.f32.mrf.mxu0
      %v947 = vadd.f32 0.0, %v946
      %948 = vmatmul.bf16.gmra.mxu0 %v923
      %v949 = vpop.f32.mrf.mxu0
      %v950 = vadd.f32 0.0, %v949
      %v951 = vpop.f32.mrf.mxu0
      %v952 = vadd.f32 0.0, %v951
      %953 = vdwg.mxu0
      %v962 = vunpack.c.l.b16 %v443
      %v963 = vunpack.c.l.b16 %v444
      %v964 = vunpack.c.l.b16 %v445
      %v965 = vunpack.c.l.b16 %v446
      %v966 = vunpack.c.l.b16 %v447
      %v967 = vunpack.c.l.b16 %v448
      %v968 = vunpack.c.l.b16 %v449
      %v969 = vunpack.c.l.b16 %v450
      %v970 = vpack.c.b16 %v963, %v962
      %v971 = vpack.c.b16 %v965, %v964
      %v972 = vpack.c.b16 %v967, %v966
      %v973 = vpack.c.b16 %v969, %v968
      %v976 = vunpack.c.l.b16 %v482
      %v977 = vunpack.c.l.b16 %v483
      %v978 = vpack.c.b16 %v977, %v976
      %v981 = vsel %vm510, %v970, 0
      %v984 = vsel %vm510, %v971, 0
      %v987 = vsel %vm510, %v972, 0
      %v990 = vsel %vm510, %v973, 0
      %992 = vmatpush.bf16.msra.mxu0 0
      %993 = vmatpush.bf16.msra.mxu0 0
      %994 = vmatpush.bf16.msra.mxu0 0
      %995 = vmatpush.bf16.msra.mxu0 0
      %996 = vmatpush.bf16.msra.mxu0 0
      %997 = vmatpush.bf16.msra.mxu0 0
      %998 = vmatpush.bf16.msra.mxu0 0
      %999 = vmatpush.bf16.msra.mxu0 %v978
      %1000 = vmatmul.bf16.gmra.mxu0 %v981
      %v1001 = vpop.f32.mrf.mxu0
      %v1002 = vadd.f32 0.0, %v1001
      %v1003 = vpop.f32.mrf.mxu0
      %v1004 = vadd.f32 0.0, %v1003
      %1005 = vmatmul.bf16.gmra.mxu0 %v984
      %v1006 = vpop.f32.mrf.mxu0
      %v1007 = vadd.f32 0.0, %v1006
      %v1008 = vpop.f32.mrf.mxu0
      %v1009 = vadd.f32 0.0, %v1008
      %1010 = vmatmul.bf16.gmra.mxu0 %v987
      %v1011 = vpop.f32.mrf.mxu0
      %v1012 = vadd.f32 0.0, %v1011
      %v1013 = vpop.f32.mrf.mxu0
      %v1014 = vadd.f32 0.0, %v1013
      %1015 = vmatmul.bf16.gmra.mxu0 %v990
      %v1016 = vpop.f32.mrf.mxu0
      %v1017 = vadd.f32 0.0, %v1016
      %v1018 = vpop.f32.mrf.mxu0
      %v1019 = vadd.f32 0.0, %v1018
      %1020 = vdwg.mxu0
      %v1021 = vpack.c.bf16 %v535, %v533
      %v1022 = vpack.c.bf16 %v602, %v600
      %v1023 = vpack.c.bf16 %v669, %v667
      %v1024 = vpack.c.bf16 %v736, %v734
      %v1025 = vpack.c.bf16 %v803, %v801
      %v1026 = vpack.c.bf16 %v870, %v868
      %v1027 = vpack.c.bf16 %v937, %v935
      %v1028 = vpack.c.bf16 %v1004, %v1002
      %v1029 = vld [vmem:[%s2] sm:$0xf]
      %v1030 = vld [vmem:[%s2 + $0x4] sm:$0xf]
      %v1031 = vld [vmem:[%s2 + $0x8] sm:$0xf]
      %v1032 = vld [vmem:[%s2 + $0xc] sm:$0xf]
      %v1037 = vunpack.c.l.b16 %v1029
      %v1038 = vunpack.c.l.b16 %v1030
      %v1039 = vunpack.c.l.b16 %v1031
      %v1040 = vunpack.c.l.b16 %v1032
      %v1041 = vpack.c.b16 %v1038, %v1037
      %v1042 = vpack.c.b16 %v1040, %v1039
      %vm1045 = vcmask 261120
      %v1047 = vsel %vm1045, %v1021, 0
      %v1050 = vsel %vm1045, %v1022, 0
      %v1053 = vsel %vm1045, %v1023, 0
      %v1056 = vsel %vm1045, %v1024, 0
      %v1059 = vsel %vm1045, %v1025, 0
      %v1062 = vsel %vm1045, %v1026, 0
      %v1065 = vsel %vm1045, %v1027, 0
      %v1068 = vsel %vm1045, %v1028, 0
      %1070 = vmatpush.bf16.msra.mxu0 0
      %1071 = vmatpush.bf16.msra.mxu0 0
      %1072 = vmatpush.bf16.msra.mxu0 0
      %1073 = vmatpush.bf16.msra.mxu0 0
      %1074 = vmatpush.bf16.msra.mxu0 0
      %1075 = vmatpush.bf16.msra.mxu0 0
      %1076 = vmatpush.bf16.msra.mxu0 %v1042
      %1077 = vmatpush.bf16.msra.mxu0 %v1041
      %1078 = vmatmul.bf16.gmra.mxu0 %v1047
      %v1079 = vpop.f32.mrf.mxu0
      %v1080 = vadd.f32 0.0, %v1079
      %v1081 = vpop.f32.mrf.mxu0
      %v1082 = vadd.f32 0.0, %v1081
      %1083 = vmatmul.bf16.gmra.mxu0 %v1050
      %v1084 = vpop.f32.mrf.mxu0
      %v1085 = vadd.f32 0.0, %v1084
      %v1086 = vpop.f32.mrf.mxu0
      %v1087 = vadd.f32 0.0, %v1086
      %1088 = vmatmul.bf16.gmra.mxu0 %v1053
      %v1089 = vpop.f32.mrf.mxu0
      %v1090 = vadd.f32 0.0, %v1089
      %v1091 = vpop.f32.mrf.mxu0
      %v1092 = vadd.f32 0.0, %v1091
      %1093 = vmatmul.bf16.gmra.mxu0 %v1056
      %v1094 = vpop.f32.mrf.mxu0
      %v1095 = vadd.f32 0.0, %v1094
      %v1096 = vpop.f32.mrf.mxu0
      %v1097 = vadd.f32 0.0, %v1096
      %1098 = vmatmul.bf16.gmra.mxu0 %v1059
      %v1099 = vpop.f32.mrf.mxu0
      %v1100 = vadd.f32 0.0, %v1099
      %v1101 = vpop.f32.mrf.mxu0
      %v1102 = vadd.f32 0.0, %v1101
      %1103 = vmatmul.bf16.gmra.mxu0 %v1062
      %v1104 = vpop.f32.mrf.mxu0
      %v1105 = vadd.f32 0.0, %v1104
      %v1106 = vpop.f32.mrf.mxu0
      %v1107 = vadd.f32 0.0, %v1106
      %1108 = vmatmul.bf16.gmra.mxu0 %v1065
      %v1109 = vpop.f32.mrf.mxu0
      %v1110 = vadd.f32 0.0, %v1109
      %v1111 = vpop.f32.mrf.mxu0
      %v1112 = vadd.f32 0.0, %v1111
      %1113 = vmatmul.bf16.gmra.mxu0 %v1068
      %v1114 = vpop.f32.mrf.mxu0
      %v1115 = vadd.f32 0.0, %v1114
      %v1116 = vpop.f32.mrf.mxu0
      %v1117 = vadd.f32 0.0, %v1116
      %1118 = vdwg.mxu0
      %v1120 = vperm.slane %v467, 0
      %v1122 = vadd.f32 %v1120, %v1080
      %v1123 = vadd.f32 %v1120, %v1082
      %v1124 = vadd.f32 %v1120, %v1085
      %v1125 = vadd.f32 %v1120, %v1087
      %v1126 = vadd.f32 %v1120, %v1090
      %v1127 = vadd.f32 %v1120, %v1092
      %v1128 = vadd.f32 %v1120, %v1095
      %v1129 = vadd.f32 %v1120, %v1097
      %v1130 = vadd.f32 %v1120, %v1100
      %v1131 = vadd.f32 %v1120, %v1102
      %v1132 = vadd.f32 %v1120, %v1105
      %v1133 = vadd.f32 %v1120, %v1107
      %v1134 = vadd.f32 %v1120, %v1110
      %v1135 = vadd.f32 %v1120, %v1112
      %v1136 = vadd.f32 %v1120, %v1115
      %v1137 = vadd.f32 %v1120, %v1117
      %v1138 = vpack.c.bf16 %v540, %v538
      %v1139 = vpack.c.bf16 %v607, %v605
      %v1140 = vpack.c.bf16 %v674, %v672
      %v1141 = vpack.c.bf16 %v741, %v739
      %v1142 = vpack.c.bf16 %v808, %v806
      %v1143 = vpack.c.bf16 %v875, %v873
      %v1144 = vpack.c.bf16 %v942, %v940
      %v1145 = vpack.c.bf16 %v1009, %v1007
      %s1146 = scalar_lea.vmem %s2, 16
      %v1147 = vld [vmem:[%s1146] sm:$0xf]
      %v1148 = vld [vmem:[%s1146 + $0x4] sm:$0xf]
      %v1149 = vld [vmem:[%s1146 + $0x8] sm:$0xf]
      %v1150 = vld [vmem:[%s1146 + $0xc] sm:$0xf]
      %v1155 = vunpack.c.l.b16 %v1147
      %v1156 = vunpack.c.l.b16 %v1148
      %v1157 = vunpack.c.l.b16 %v1149
      %v1158 = vunpack.c.l.b16 %v1150
      %v1159 = vpack.c.b16 %v1156, %v1155
      %v1160 = vpack.c.b16 %v1158, %v1157
      %v1164 = vsel %vm1045, %v1138, 0
      %v1167 = vsel %vm1045, %v1139, 0
      %v1170 = vsel %vm1045, %v1140, 0
      %v1173 = vsel %vm1045, %v1141, 0
      %v1176 = vsel %vm1045, %v1142, 0
      %v1179 = vsel %vm1045, %v1143, 0
      %v1182 = vsel %vm1045, %v1144, 0
      %v1185 = vsel %vm1045, %v1145, 0
      %1187 = vmatpush.bf16.msra.mxu0 0
      %1188 = vmatpush.bf16.msra.mxu0 0
      %1189 = vmatpush.bf16.msra.mxu0 0
      %1190 = vmatpush.bf16.msra.mxu0 0
      %1191 = vmatpush.bf16.msra.mxu0 0
      %1192 = vmatpush.bf16.msra.mxu0 0
      %1193 = vmatpush.bf16.msra.mxu0 %v1160
      %1194 = vmatpush.bf16.msra.mxu0 %v1159
      %1195 = vmatmul.bf16.gmra.mxu0 %v1164
      %v1196 = vpop.f32.mrf.mxu0
      %v1197 = vadd.f32 0.0, %v1196
      %v1198 = vpop.f32.mrf.mxu0
      %v1199 = vadd.f32 0.0, %v1198
      %1200 = vmatmul.bf16.gmra.mxu0 %v1167
      %v1201 = vpop.f32.mrf.mxu0
      %v1202 = vadd.f32 0.0, %v1201
      %v1203 = vpop.f32.mrf.mxu0
      %v1204 = vadd.f32 0.0, %v1203
      %1205 = vmatmul.bf16.gmra.mxu0 %v1170
      %v1206 = vpop.f32.mrf.mxu0
      %v1207 = vadd.f32 0.0, %v1206
      %v1208 = vpop.f32.mrf.mxu0
      %v1209 = vadd.f32 0.0, %v1208
      %1210 = vmatmul.bf16.gmra.mxu0 %v1173
      %v1211 = vpop.f32.mrf.mxu0
      %v1212 = vadd.f32 0.0, %v1211
      %v1213 = vpop.f32.mrf.mxu0
      %v1214 = vadd.f32 0.0, %v1213
      %1215 = vmatmul.bf16.gmra.mxu0 %v1176
      %v1216 = vpop.f32.mrf.mxu0
      %v1217 = vadd.f32 0.0, %v1216
      %v1218 = vpop.f32.mrf.mxu0
      %v1219 = vadd.f32 0.0, %v1218
      %1220 = vmatmul.bf16.gmra.mxu0 %v1179
      %v1221 = vpop.f32.mrf.mxu0
      %v1222 = vadd.f32 0.0, %v1221
      %v1223 = vpop.f32.mrf.mxu0
      %v1224 = vadd.f32 0.0, %v1223
      %1225 = vmatmul.bf16.gmra.mxu0 %v1182
      %v1226 = vpop.f32.mrf.mxu0
      %v1227 = vadd.f32 0.0, %v1226
      %v1228 = vpop.f32.mrf.mxu0
      %v1229 = vadd.f32 0.0, %v1228
      %1230 = vmatmul.bf16.gmra.mxu0 %v1185
      %v1231 = vpop.f32.mrf.mxu0
      %v1232 = vadd.f32 0.0, %v1231
      %v1233 = vpop.f32.mrf.mxu0
      %v1234 = vadd.f32 0.0, %v1233
      %1235 = vdwg.mxu0
      %v1236 = vadd.f32 %v1122, %v1197
      %v1237 = vadd.f32 %v1123, %v1199
      %v1238 = vadd.f32 %v1124, %v1202
      %v1239 = vadd.f32 %v1125, %v1204
      %v1240 = vadd.f32 %v1126, %v1207
      %v1241 = vadd.f32 %v1127, %v1209
      %v1242 = vadd.f32 %v1128, %v1212
      %v1243 = vadd.f32 %v1129, %v1214
      %v1244 = vadd.f32 %v1130, %v1217
      %v1245 = vadd.f32 %v1131, %v1219
      %v1246 = vadd.f32 %v1132, %v1222
      %v1247 = vadd.f32 %v1133, %v1224
      %v1248 = vadd.f32 %v1134, %v1227
      %v1249 = vadd.f32 %v1135, %v1229
      %v1250 = vadd.f32 %v1136, %v1232
      %v1251 = vadd.f32 %v1137, %v1234
      %v1252 = vpack.c.bf16 %v545, %v543
      %v1253 = vpack.c.bf16 %v612, %v610
      %v1254 = vpack.c.bf16 %v679, %v677
      %v1255 = vpack.c.bf16 %v746, %v744
      %v1256 = vpack.c.bf16 %v813, %v811
      %v1257 = vpack.c.bf16 %v880, %v878
      %v1258 = vpack.c.bf16 %v947, %v945
      %v1259 = vpack.c.bf16 %v1014, %v1012
      %s1260 = scalar_lea.vmem %s2, 32
      %v1261 = vld [vmem:[%s1260] sm:$0xf]
      %v1262 = vld [vmem:[%s1260 + $0x4] sm:$0xf]
      %v1263 = vld [vmem:[%s1260 + $0x8] sm:$0xf]
      %v1264 = vld [vmem:[%s1260 + $0xc] sm:$0xf]
      %v1269 = vunpack.c.l.b16 %v1261
      %v1270 = vunpack.c.l.b16 %v1262
      %v1271 = vunpack.c.l.b16 %v1263
      %v1272 = vunpack.c.l.b16 %v1264
      %v1273 = vpack.c.b16 %v1270, %v1269
      %v1274 = vpack.c.b16 %v1272, %v1271
      %v1278 = vsel %vm1045, %v1252, 0
      %v1281 = vsel %vm1045, %v1253, 0
      %v1284 = vsel %vm1045, %v1254, 0
      %v1287 = vsel %vm1045, %v1255, 0
      %v1290 = vsel %vm1045, %v1256, 0
      %v1293 = vsel %vm1045, %v1257, 0
      %v1296 = vsel %vm1045, %v1258, 0
      %v1299 = vsel %vm1045, %v1259, 0
      %1301 = vmatpush.bf16.msra.mxu0 0
      %1302 = vmatpush.bf16.msra.mxu0 0
      %1303 = vmatpush.bf16.msra.mxu0 0
      %1304 = vmatpush.bf16.msra.mxu0 0
      %1305 = vmatpush.bf16.msra.mxu0 0
      %1306 = vmatpush.bf16.msra.mxu0 0
      %1307 = vmatpush.bf16.msra.mxu0 %v1274
      %1308 = vmatpush.bf16.msra.mxu0 %v1273
      %1309 = vmatmul.bf16.gmra.mxu0 %v1278
      %v1310 = vpop.f32.mrf.mxu0
      %v1311 = vadd.f32 0.0, %v1310
      %v1312 = vpop.f32.mrf.mxu0
      %v1313 = vadd.f32 0.0, %v1312
      %1314 = vmatmul.bf16.gmra.mxu0 %v1281
      %v1315 = vpop.f32.mrf.mxu0
      %v1316 = vadd.f32 0.0, %v1315
      %v1317 = vpop.f32.mrf.mxu0
      %v1318 = vadd.f32 0.0, %v1317
      %1319 = vmatmul.bf16.gmra.mxu0 %v1284
      %v1320 = vpop.f32.mrf.mxu0
      %v1321 = vadd.f32 0.0, %v1320
      %v1322 = vpop.f32.mrf.mxu0
      %v1323 = vadd.f32 0.0, %v1322
      %1324 = vmatmul.bf16.gmra.mxu0 %v1287
      %v1325 = vpop.f32.mrf.mxu0
      %v1326 = vadd.f32 0.0, %v1325
      %v1327 = vpop.f32.mrf.mxu0
      %v1328 = vadd.f32 0.0, %v1327
      %1329 = vmatmul.bf16.gmra.mxu0 %v1290
      %v1330 = vpop.f32.mrf.mxu0
      %v1331 = vadd.f32 0.0, %v1330
      %v1332 = vpop.f32.mrf.mxu0
      %v1333 = vadd.f32 0.0, %v1332
      %1334 = vmatmul.bf16.gmra.mxu0 %v1293
      %v1335 = vpop.f32.mrf.mxu0
      %v1336 = vadd.f32 0.0, %v1335
      %v1337 = vpop.f32.mrf.mxu0
      %v1338 = vadd.f32 0.0, %v1337
      %1339 = vmatmul.bf16.gmra.mxu0 %v1296
      %v1340 = vpop.f32.mrf.mxu0
      %v1341 = vadd.f32 0.0, %v1340
      %v1342 = vpop.f32.mrf.mxu0
      %v1343 = vadd.f32 0.0, %v1342
      %1344 = vmatmul.bf16.gmra.mxu0 %v1299
      %v1345 = vpop.f32.mrf.mxu0
      %v1346 = vadd.f32 0.0, %v1345
      %v1347 = vpop.f32.mrf.mxu0
      %v1348 = vadd.f32 0.0, %v1347
      %1349 = vdwg.mxu0
      %v1350 = vadd.f32 %v1236, %v1311
      %v1351 = vadd.f32 %v1237, %v1313
      %v1352 = vadd.f32 %v1238, %v1316
      %v1353 = vadd.f32 %v1239, %v1318
      %v1354 = vadd.f32 %v1240, %v1321
      %v1355 = vadd.f32 %v1241, %v1323
      %v1356 = vadd.f32 %v1242, %v1326
      %v1357 = vadd.f32 %v1243, %v1328
      %v1358 = vadd.f32 %v1244, %v1331
      %v1359 = vadd.f32 %v1245, %v1333
      %v1360 = vadd.f32 %v1246, %v1336
      %v1361 = vadd.f32 %v1247, %v1338
      %v1362 = vadd.f32 %v1248, %v1341
      %v1363 = vadd.f32 %v1249, %v1343
      %v1364 = vadd.f32 %v1250, %v1346
      %v1365 = vadd.f32 %v1251, %v1348
      %v1366 = vpack.c.bf16 %v550, %v548
      %v1367 = vpack.c.bf16 %v617, %v615
      %v1368 = vpack.c.bf16 %v684, %v682
      %v1369 = vpack.c.bf16 %v751, %v749
      %v1370 = vpack.c.bf16 %v818, %v816
      %v1371 = vpack.c.bf16 %v885, %v883
      %v1372 = vpack.c.bf16 %v952, %v950
      %v1373 = vpack.c.bf16 %v1019, %v1017
      %s1374 = scalar_lea.vmem %s2, 48
      %v1375 = vld [vmem:[%s1374] sm:$0xf]
      %v1376 = vld [vmem:[%s1374 + $0x4] sm:$0xf]
      %v1377 = vld [vmem:[%s1374 + $0x8] sm:$0xf]
      %v1378 = vld [vmem:[%s1374 + $0xc] sm:$0xf]
      %v1383 = vunpack.c.l.b16 %v1375
      %v1384 = vunpack.c.l.b16 %v1376
      %v1385 = vunpack.c.l.b16 %v1377
      %v1386 = vunpack.c.l.b16 %v1378
      %v1387 = vpack.c.b16 %v1384, %v1383
      %v1388 = vpack.c.b16 %v1386, %v1385
      %v1392 = vsel %vm1045, %v1366, 0
      %v1395 = vsel %vm1045, %v1367, 0
      %v1398 = vsel %vm1045, %v1368, 0
      %v1401 = vsel %vm1045, %v1369, 0
      %v1404 = vsel %vm1045, %v1370, 0
      %v1407 = vsel %vm1045, %v1371, 0
      %v1410 = vsel %vm1045, %v1372, 0
      %v1413 = vsel %vm1045, %v1373, 0
      %1415 = vmatpush.bf16.msra.mxu0 0
      %1416 = vmatpush.bf16.msra.mxu0 0
      %1417 = vmatpush.bf16.msra.mxu0 0
      %1418 = vmatpush.bf16.msra.mxu0 0
      %1419 = vmatpush.bf16.msra.mxu0 0
      %1420 = vmatpush.bf16.msra.mxu0 0
      %1421 = vmatpush.bf16.msra.mxu0 %v1388
      %1422 = vmatpush.bf16.msra.mxu0 %v1387
      %1423 = vmatmul.bf16.gmra.mxu0 %v1392
      %v1424 = vpop.f32.mrf.mxu0
      %v1425 = vadd.f32 0.0, %v1424
      %v1426 = vpop.f32.mrf.mxu0
      %v1427 = vadd.f32 0.0, %v1426
      %1428 = vmatmul.bf16.gmra.mxu0 %v1395
      %v1429 = vpop.f32.mrf.mxu0
      %v1430 = vadd.f32 0.0, %v1429
      %v1431 = vpop.f32.mrf.mxu0
      %v1432 = vadd.f32 0.0, %v1431
      %1433 = vmatmul.bf16.gmra.mxu0 %v1398
      %v1434 = vpop.f32.mrf.mxu0
      %v1435 = vadd.f32 0.0, %v1434
      %v1436 = vpop.f32.mrf.mxu0
      %v1437 = vadd.f32 0.0, %v1436
      %1438 = vmatmul.bf16.gmra.mxu0 %v1401
      %v1439 = vpop.f32.mrf.mxu0
      %v1440 = vadd.f32 0.0, %v1439
      %v1441 = vpop.f32.mrf.mxu0
      %v1442 = vadd.f32 0.0, %v1441
      %1443 = vmatmul.bf16.gmra.mxu0 %v1404
      %v1444 = vpop.f32.mrf.mxu0
      %v1445 = vadd.f32 0.0, %v1444
      %v1446 = vpop.f32.mrf.mxu0
      %v1447 = vadd.f32 0.0, %v1446
      %1448 = vmatmul.bf16.gmra.mxu0 %v1407
      %v1449 = vpop.f32.mrf.mxu0
      %v1450 = vadd.f32 0.0, %v1449
      %v1451 = vpop.f32.mrf.mxu0
      %v1452 = vadd.f32 0.0, %v1451
      %1453 = vmatmul.bf16.gmra.mxu0 %v1410
      %v1454 = vpop.f32.mrf.mxu0
      %v1455 = vadd.f32 0.0, %v1454
      %v1456 = vpop.f32.mrf.mxu0
      %v1457 = vadd.f32 0.0, %v1456
      %1458 = vmatmul.bf16.gmra.mxu0 %v1413
      %v1459 = vpop.f32.mrf.mxu0
      %v1460 = vadd.f32 0.0, %v1459
      %v1461 = vpop.f32.mrf.mxu0
      %v1462 = vadd.f32 0.0, %v1461
      %1463 = vdwg.mxu0
      %v1464 = vadd.f32 %v1350, %v1425
      %v1465 = vadd.f32 %v1351, %v1427
      %v1466 = vadd.f32 %v1352, %v1430
      %v1467 = vadd.f32 %v1353, %v1432
      %v1468 = vadd.f32 %v1354, %v1435
      %v1469 = vadd.f32 %v1355, %v1437
      %v1470 = vadd.f32 %v1356, %v1440
      %v1471 = vadd.f32 %v1357, %v1442
      %v1472 = vadd.f32 %v1358, %v1445
      %v1473 = vadd.f32 %v1359, %v1447
      %v1474 = vadd.f32 %v1360, %v1450
      %v1475 = vadd.f32 %v1361, %v1452
      %v1476 = vadd.f32 %v1362, %v1455
      %v1477 = vadd.f32 %v1363, %v1457
      %v1478 = vadd.f32 %v1364, %v1460
      %v1479 = vadd.f32 %v1365, %v1462
      %v1480 = vmax.f32 %v1464, 0.0
      %v1481 = vmax.f32 %v1465, 0.0
      %v1482 = vmax.f32 %v1466, 0.0
      %v1483 = vmax.f32 %v1467, 0.0
      %v1484 = vmax.f32 %v1468, 0.0
      %v1485 = vmax.f32 %v1469, 0.0
      %v1486 = vmax.f32 %v1470, 0.0
      %v1487 = vmax.f32 %v1471, 0.0
      %v1488 = vmax.f32 %v1472, 0.0
      %v1489 = vmax.f32 %v1473, 0.0
      %v1490 = vmax.f32 %v1474, 0.0
      %v1491 = vmax.f32 %v1475, 0.0
      %v1492 = vmax.f32 %v1476, 0.0
      %v1493 = vmax.f32 %v1477, 0.0
      %v1494 = vmax.f32 %v1478, 0.0
      %v1495 = vmax.f32 %v1479, 0.0
      %v1496 = vld [vmem:[%s5] sm:$0x1]
      %v1497 = vpack.c.bf16 %v1480, %v1480
      %v1498 = vpack.c.bf16 %v1481, %v1481
      %v1499 = vpack.c.bf16 %v1482, %v1482
      %v1500 = vpack.c.bf16 %v1483, %v1483
      %v1501 = vpack.c.bf16 %v1484, %v1484
      %v1502 = vpack.c.bf16 %v1485, %v1485
      %v1503 = vpack.c.bf16 %v1486, %v1486
      %v1504 = vpack.c.bf16 %v1487, %v1487
      %v1505 = vpack.c.bf16 %v1488, %v1488
      %v1506 = vpack.c.bf16 %v1489, %v1489
      %v1507 = vpack.c.bf16 %v1490, %v1490
      %v1508 = vpack.c.bf16 %v1491, %v1491
      %v1509 = vpack.c.bf16 %v1492, %v1492
      %v1510 = vpack.c.bf16 %v1493, %v1493
      %v1511 = vpack.c.bf16 %v1494, %v1494
      %v1512 = vpack.c.bf16 %v1495, %v1495
      %v1515 = vunpack.c.l.b16 %v1497
      %v1516 = vunpack.c.l.b16 %v1498
      %v1517 = vpack.c.b16 %v1516, %v1515
      %1519 = vmatpush.bf16.msra.mxu0 0
      %1520 = vmatpush.bf16.msra.mxu0 0
      %1521 = vmatpush.bf16.msra.mxu0 0
      %1522 = vmatpush.bf16.msra.mxu0 0
      %1523 = vmatpush.bf16.msra.mxu0 0
      %1524 = vmatpush.bf16.msra.mxu0 0
      %1525 = vmatpush.bf16.msra.mxu0 0
      %1526 = vmatpush.bf16.msra.mxu0 %v1517
      %1527 = vmatmul.bf16.gmra.mxu0 %v512
      %v1528 = vpop.f32.mrf.mxu0
      %v1529 = vadd.f32 0.0, %v1528
      %v1530 = vpop.f32.mrf.mxu0
      %v1531 = vadd.f32 0.0, %v1530
      %1532 = vmatmul.bf16.gmra.mxu0 %v515
      %v1533 = vpop.f32.mrf.mxu0
      %v1534 = vadd.f32 0.0, %v1533
      %v1535 = vpop.f32.mrf.mxu0
      %v1536 = vadd.f32 0.0, %v1535
      %1537 = vmatmul.bf16.gmra.mxu0 %v518
      %v1538 = vpop.f32.mrf.mxu0
      %v1539 = vadd.f32 0.0, %v1538
      %v1540 = vpop.f32.mrf.mxu0
      %v1541 = vadd.f32 0.0, %v1540
      %1542 = vmatmul.bf16.gmra.mxu0 %v521
      %v1543 = vpop.f32.mrf.mxu0
      %v1544 = vadd.f32 0.0, %v1543
      %v1545 = vpop.f32.mrf.mxu0
      %v1546 = vadd.f32 0.0, %v1545
      %1547 = vdwg.mxu0
      %v1550 = vunpack.c.l.b16 %v1499
      %v1551 = vunpack.c.l.b16 %v1500
      %v1552 = vpack.c.b16 %v1551, %v1550
      %1554 = vmatpush.bf16.msra.mxu0 0
      %1555 = vmatpush.bf16.msra.mxu0 0
      %1556 = vmatpush.bf16.msra.mxu0 0
      %1557 = vmatpush.bf16.msra.mxu0 0
      %1558 = vmatpush.bf16.msra.mxu0 0
      %1559 = vmatpush.bf16.msra.mxu0 0
      %1560 = vmatpush.bf16.msra.mxu0 0
      %1561 = vmatpush.bf16.msra.mxu0 %v1552
      %1562 = vmatmul.bf16.gmra.mxu0 %v579
      %v1563 = vpop.f32.mrf.mxu0
      %v1564 = vadd.f32 0.0, %v1563
      %v1565 = vpop.f32.mrf.mxu0
      %v1566 = vadd.f32 0.0, %v1565
      %1567 = vmatmul.bf16.gmra.mxu0 %v582
      %v1568 = vpop.f32.mrf.mxu0
      %v1569 = vadd.f32 0.0, %v1568
      %v1570 = vpop.f32.mrf.mxu0
      %v1571 = vadd.f32 0.0, %v1570
      %1572 = vmatmul.bf16.gmra.mxu0 %v585
      %v1573 = vpop.f32.mrf.mxu0
      %v1574 = vadd.f32 0.0, %v1573
      %v1575 = vpop.f32.mrf.mxu0
      %v1576 = vadd.f32 0.0, %v1575
      %1577 = vmatmul.bf16.gmra.mxu0 %v588
      %v1578 = vpop.f32.mrf.mxu0
      %v1579 = vadd.f32 0.0, %v1578
      %v1580 = vpop.f32.mrf.mxu0
      %v1581 = vadd.f32 0.0, %v1580
      %1582 = vdwg.mxu0
      %v1585 = vunpack.c.l.b16 %v1501
      %v1586 = vunpack.c.l.b16 %v1502
      %v1587 = vpack.c.b16 %v1586, %v1585
      %1589 = vmatpush.bf16.msra.mxu0 0
      %1590 = vmatpush.bf16.msra.mxu0 0
      %1591 = vmatpush.bf16.msra.mxu0 0
      %1592 = vmatpush.bf16.msra.mxu0 0
      %1593 = vmatpush.bf16.msra.mxu0 0
      %1594 = vmatpush.bf16.msra.mxu0 0
      %1595 = vmatpush.bf16.msra.mxu0 0
      %1596 = vmatpush.bf16.msra.mxu0 %v1587
      %1597 = vmatmul.bf16.gmra.mxu0 %v646
      %v1598 = vpop.f32.mrf.mxu0
      %v1599 = vadd.f32 0.0, %v1598
      %v1600 = vpop.f32.mrf.mxu0
      %v1601 = vadd.f32 0.0, %v1600
      %1602 = vmatmul.bf16.gmra.mxu0 %v649
      %v1603 = vpop.f32.mrf.mxu0
      %v1604 = vadd.f32 0.0, %v1603
      %v1605 = vpop.f32.mrf.mxu0
      %v1606 = vadd.f32 0.0, %v1605
      %1607 = vmatmul.bf16.gmra.mxu0 %v652
      %v1608 = vpop.f32.mrf.mxu0
      %v1609 = vadd.f32 0.0, %v1608
      %v1610 = vpop.f32.mrf.mxu0
      %v1611 = vadd.f32 0.0, %v1610
      %1612 = vmatmul.bf16.gmra.mxu0 %v655
      %v1613 = vpop.f32.mrf.mxu0
      %v1614 = vadd.f32 0.0, %v1613
      %v1615 = vpop.f32.mrf.mxu0
      %v1616 = vadd.f32 0.0, %v1615
      %1617 = vdwg.mxu0
      %v1620 = vunpack.c.l.b16 %v1503
      %v1621 = vunpack.c.l.b16 %v1504
      %v1622 = vpack.c.b16 %v1621, %v1620
      %1624 = vmatpush.bf16.msra.mxu0 0
      %1625 = vmatpush.bf16.msra.mxu0 0
      %1626 = vmatpush.bf16.msra.mxu0 0
      %1627 = vmatpush.bf16.msra.mxu0 0
      %1628 = vmatpush.bf16.msra.mxu0 0
      %1629 = vmatpush.bf16.msra.mxu0 0
      %1630 = vmatpush.bf16.msra.mxu0 0
      %1631 = vmatpush.bf16.msra.mxu0 %v1622
      %1632 = vmatmul.bf16.gmra.mxu0 %v713
      %v1633 = vpop.f32.mrf.mxu0
      %v1634 = vadd.f32 0.0, %v1633
      %v1635 = vpop.f32.mrf.mxu0
      %v1636 = vadd.f32 0.0, %v1635
      %1637 = vmatmul.bf16.gmra.mxu0 %v716
      %v1638 = vpop.f32.mrf.mxu0
      %v1639 = vadd.f32 0.0, %v1638
      %v1640 = vpop.f32.mrf.mxu0
      %v1641 = vadd.f32 0.0, %v1640
      %1642 = vmatmul.bf16.gmra.mxu0 %v719
      %v1643 = vpop.f32.mrf.mxu0
      %v1644 = vadd.f32 0.0, %v1643
      %v1645 = vpop.f32.mrf.mxu0
      %v1646 = vadd.f32 0.0, %v1645
      %1647 = vmatmul.bf16.gmra.mxu0 %v722
      %v1648 = vpop.f32.mrf.mxu0
      %v1649 = vadd.f32 0.0, %v1648
      %v1650 = vpop.f32.mrf.mxu0
      %v1651 = vadd.f32 0.0, %v1650
      %1652 = vdwg.mxu0
      %v1655 = vunpack.c.l.b16 %v1505
      %v1656 = vunpack.c.l.b16 %v1506
      %v1657 = vpack.c.b16 %v1656, %v1655
      %1659 = vmatpush.bf16.msra.mxu0 0
      %1660 = vmatpush.bf16.msra.mxu0 0
      %1661 = vmatpush.bf16.msra.mxu0 0
      %1662 = vmatpush.bf16.msra.mxu0 0
      %1663 = vmatpush.bf16.msra.mxu0 0
      %1664 = vmatpush.bf16.msra.mxu0 0
      %1665 = vmatpush.bf16.msra.mxu0 0
      %1666 = vmatpush.bf16.msra.mxu0 %v1657
      %1667 = vmatmul.bf16.gmra.mxu0 %v780
      %v1668 = vpop.f32.mrf.mxu0
      %v1669 = vadd.f32 0.0, %v1668
      %v1670 = vpop.f32.mrf.mxu0
      %v1671 = vadd.f32 0.0, %v1670
      %1672 = vmatmul.bf16.gmra.mxu0 %v783
      %v1673 = vpop.f32.mrf.mxu0
      %v1674 = vadd.f32 0.0, %v1673
      %v1675 = vpop.f32.mrf.mxu0
      %v1676 = vadd.f32 0.0, %v1675
      %1677 = vmatmul.bf16.gmra.mxu0 %v786
      %v1678 = vpop.f32.mrf.mxu0
      %v1679 = vadd.f32 0.0, %v1678
      %v1680 = vpop.f32.mrf.mxu0
      %v1681 = vadd.f32 0.0, %v1680
      %1682 = vmatmul.bf16.gmra.mxu0 %v789
      %v1683 = vpop.f32.mrf.mxu0
      %v1684 = vadd.f32 0.0, %v1683
      %v1685 = vpop.f32.mrf.mxu0
      %v1686 = vadd.f32 0.0, %v1685
      %1687 = vdwg.mxu0
      %v1690 = vunpack.c.l.b16 %v1507
      %v1691 = vunpack.c.l.b16 %v1508
      %v1692 = vpack.c.b16 %v1691, %v1690
      %1694 = vmatpush.bf16.msra.mxu0 0
      %1695 = vmatpush.bf16.msra.mxu0 0
      %1696 = vmatpush.bf16.msra.mxu0 0
      %1697 = vmatpush.bf16.msra.mxu0 0
      %1698 = vmatpush.bf16.msra.mxu0 0
      %1699 = vmatpush.bf16.msra.mxu0 0
      %1700 = vmatpush.bf16.msra.mxu0 0
      %1701 = vmatpush.bf16.msra.mxu0 %v1692
      %1702 = vmatmul.bf16.gmra.mxu0 %v847
      %v1703 = vpop.f32.mrf.mxu0
      %v1704 = vadd.f32 0.0, %v1703
      %v1705 = vpop.f32.mrf.mxu0
      %v1706 = vadd.f32 0.0, %v1705
      %1707 = vmatmul.bf16.gmra.mxu0 %v850
      %v1708 = vpop.f32.mrf.mxu0
      %v1709 = vadd.f32 0.0, %v1708
      %v1710 = vpop.f32.mrf.mxu0
      %v1711 = vadd.f32 0.0, %v1710
      %1712 = vmatmul.bf16.gmra.mxu0 %v853
      %v1713 = vpop.f32.mrf.mxu0
      %v1714 = vadd.f32 0.0, %v1713
      %v1715 = vpop.f32.mrf.mxu0
      %v1716 = vadd.f32 0.0, %v1715
      %1717 = vmatmul.bf16.gmra.mxu0 %v856
      %v1718 = vpop.f32.mrf.mxu0
      %v1719 = vadd.f32 0.0, %v1718
      %v1720 = vpop.f32.mrf.mxu0
      %v1721 = vadd.f32 0.0, %v1720
      %1722 = vdwg.mxu0
      %v1725 = vunpack.c.l.b16 %v1509
      %v1726 = vunpack.c.l.b16 %v1510
      %v1727 = vpack.c.b16 %v1726, %v1725
      %1729 = vmatpush.bf16.msra.mxu0 0
      %1730 = vmatpush.bf16.msra.mxu0 0
      %1731 = vmatpush.bf16.msra.mxu0 0
      %1732 = vmatpush.bf16.msra.mxu0 0
      %1733 = vmatpush.bf16.msra.mxu0 0
      %1734 = vmatpush.bf16.msra.mxu0 0
      %1735 = vmatpush.bf16.msra.mxu0 0
      %1736 = vmatpush.bf16.msra.mxu0 %v1727
      %1737 = vmatmul.bf16.gmra.mxu0 %v914
      %v1738 = vpop.f32.mrf.mxu0
      %v1739 = vadd.f32 0.0, %v1738
      %v1740 = vpop.f32.mrf.mxu0
      %v1741 = vadd.f32 0.0, %v1740
      %1742 = vmatmul.bf16.gmra.mxu0 %v917
      %v1743 = vpop.f32.mrf.mxu0
      %v1744 = vadd.f32 0.0, %v1743
      %v1745 = vpop.f32.mrf.mxu0
      %v1746 = vadd.f32 0.0, %v1745
      %1747 = vmatmul.bf16.gmra.mxu0 %v920
      %v1748 = vpop.f32.mrf.mxu0
      %v1749 = vadd.f32 0.0, %v1748
      %v1750 = vpop.f32.mrf.mxu0
      %v1751 = vadd.f32 0.0, %v1750
      %1752 = vmatmul.bf16.gmra.mxu0 %v923
      %v1753 = vpop.f32.mrf.mxu0
      %v1754 = vadd.f32 0.0, %v1753
      %v1755 = vpop.f32.mrf.mxu0
      %v1756 = vadd.f32 0.0, %v1755
      %1757 = vdwg.mxu0
      %v1760 = vunpack.c.l.b16 %v1511
      %v1761 = vunpack.c.l.b16 %v1512
      %v1762 = vpack.c.b16 %v1761, %v1760
      %1764 = vmatpush.bf16.msra.mxu0 0
      %1765 = vmatpush.bf16.msra.mxu0 0
      %1766 = vmatpush.bf16.msra.mxu0 0
      %1767 = vmatpush.bf16.msra.mxu0 0
      %1768 = vmatpush.bf16.msra.mxu0 0
      %1769 = vmatpush.bf16.msra.mxu0 0
      %1770 = vmatpush.bf16.msra.mxu0 0
      %1771 = vmatpush.bf16.msra.mxu0 %v1762
      %1772 = vmatmul.bf16.gmra.mxu0 %v981
      %v1773 = vpop.f32.mrf.mxu0
      %v1774 = vadd.f32 0.0, %v1773
      %v1775 = vpop.f32.mrf.mxu0
      %v1776 = vadd.f32 0.0, %v1775
      %1777 = vmatmul.bf16.gmra.mxu0 %v984
      %v1778 = vpop.f32.mrf.mxu0
      %v1779 = vadd.f32 0.0, %v1778
      %v1780 = vpop.f32.mrf.mxu0
      %v1781 = vadd.f32 0.0, %v1780
      %1782 = vmatmul.bf16.gmra.mxu0 %v987
      %v1783 = vpop.f32.mrf.mxu0
      %v1784 = vadd.f32 0.0, %v1783
      %v1785 = vpop.f32.mrf.mxu0
      %v1786 = vadd.f32 0.0, %v1785
      %1787 = vmatmul.bf16.gmra.mxu0 %v990
      %v1788 = vpop.f32.mrf.mxu0
      %v1789 = vadd.f32 0.0, %v1788
      %v1790 = vpop.f32.mrf.mxu0
      %v1791 = vadd.f32 0.0, %v1790
      %1792 = vdwg.mxu0
      %v1793 = vpack.c.bf16 %v1531, %v1529
      %v1794 = vpack.c.bf16 %v1566, %v1564
      %v1795 = vpack.c.bf16 %v1601, %v1599
      %v1796 = vpack.c.bf16 %v1636, %v1634
      %v1797 = vpack.c.bf16 %v1671, %v1669
      %v1798 = vpack.c.bf16 %v1706, %v1704
      %v1799 = vpack.c.bf16 %v1741, %v1739
      %v1800 = vpack.c.bf16 %v1776, %v1774
      %v1801 = vld [vmem:[%s4] sm:$0xf]
      %v1802 = vld [vmem:[%s4 + $0x4] sm:$0xf]
      %v1803 = vld [vmem:[%s4 + $0x8] sm:$0xf]
      %v1804 = vld [vmem:[%s4 + $0xc] sm:$0xf]
      %v1809 = vunpack.c.l.b16 %v1801
      %v1810 = vunpack.c.l.b16 %v1802
      %v1811 = vunpack.c.l.b16 %v1803
      %v1812 = vunpack.c.l.b16 %v1804
      %v1813 = vpack.c.b16 %v1810, %v1809
      %v1814 = vpack.c.b16 %v1812, %v1811
      %v1818 = vsel %vm1045, %v1793, 0
      %v1821 = vsel %vm1045, %v1794, 0
      %v1824 = vsel %vm1045, %v1795, 0
      %v1827 = vsel %vm1045, %v1796, 0
      %v1830 = vsel %vm1045, %v1797, 0
      %v1833 = vsel %vm1045, %v1798, 0
      %v1836 = vsel %vm1045, %v1799, 0
      %v1839 = vsel %vm1045, %v1800, 0
      %1841 = vmatpush.bf16.msra.mxu0 0
      %1842 = vmatpush.bf16.msra.mxu0 0
      %1843 = vmatpush.bf16.msra.mxu0 0
      %1844 = vmatpush.bf16.msra.mxu0 0
      %1845 = vmatpush.bf16.msra.mxu0 0
      %1846 = vmatpush.bf16.msra.mxu0 0
      %1847 = vmatpush.bf16.msra.mxu0 %v1814
      %1848 = vmatpush.bf16.msra.mxu0 %v1813
      %1849 = vmatmul.bf16.gmra.mxu0 %v1818
      %v1850 = vpop.f32.mrf.mxu0
      %v1851 = vadd.f32 0.0, %v1850
      %v1852 = vpop.f32.mrf.mxu0
      %v1853 = vadd.f32 0.0, %v1852
      %1854 = vmatmul.bf16.gmra.mxu0 %v1821
      %v1855 = vpop.f32.mrf.mxu0
      %v1856 = vadd.f32 0.0, %v1855
      %v1857 = vpop.f32.mrf.mxu0
      %v1858 = vadd.f32 0.0, %v1857
      %1859 = vmatmul.bf16.gmra.mxu0 %v1824
      %v1860 = vpop.f32.mrf.mxu0
      %v1861 = vadd.f32 0.0, %v1860
      %v1862 = vpop.f32.mrf.mxu0
      %v1863 = vadd.f32 0.0, %v1862
      %1864 = vmatmul.bf16.gmra.mxu0 %v1827
      %v1865 = vpop.f32.mrf.mxu0
      %v1866 = vadd.f32 0.0, %v1865
      %v1867 = vpop.f32.mrf.mxu0
      %v1868 = vadd.f32 0.0, %v1867
      %1869 = vmatmul.bf16.gmra.mxu0 %v1830
      %v1870 = vpop.f32.mrf.mxu0
      %v1871 = vadd.f32 0.0, %v1870
      %v1872 = vpop.f32.mrf.mxu0
      %v1873 = vadd.f32 0.0, %v1872
      %1874 = vmatmul.bf16.gmra.mxu0 %v1833
      %v1875 = vpop.f32.mrf.mxu0
      %v1876 = vadd.f32 0.0, %v1875
      %v1877 = vpop.f32.mrf.mxu0
      %v1878 = vadd.f32 0.0, %v1877
      %1879 = vmatmul.bf16.gmra.mxu0 %v1836
      %v1880 = vpop.f32.mrf.mxu0
      %v1881 = vadd.f32 0.0, %v1880
      %v1882 = vpop.f32.mrf.mxu0
      %v1883 = vadd.f32 0.0, %v1882
      %1884 = vmatmul.bf16.gmra.mxu0 %v1839
      %v1885 = vpop.f32.mrf.mxu0
      %v1886 = vadd.f32 0.0, %v1885
      %v1887 = vpop.f32.mrf.mxu0
      %v1888 = vadd.f32 0.0, %v1887
      %1889 = vdwg.mxu0
      %v1891 = vperm.slane %v1496, 0
      %v1893 = vadd.f32 %v1891, %v1851
      %v1894 = vadd.f32 %v1891, %v1853
      %v1895 = vadd.f32 %v1891, %v1856
      %v1896 = vadd.f32 %v1891, %v1858
      %v1897 = vadd.f32 %v1891, %v1861
      %v1898 = vadd.f32 %v1891, %v1863
      %v1899 = vadd.f32 %v1891, %v1866
      %v1900 = vadd.f32 %v1891, %v1868
      %v1901 = vadd.f32 %v1891, %v1871
      %v1902 = vadd.f32 %v1891, %v1873
      %v1903 = vadd.f32 %v1891, %v1876
      %v1904 = vadd.f32 %v1891, %v1878
      %v1905 = vadd.f32 %v1891, %v1881
      %v1906 = vadd.f32 %v1891, %v1883
      %v1907 = vadd.f32 %v1891, %v1886
      %v1908 = vadd.f32 %v1891, %v1888
      %v1909 = vpack.c.bf16 %v1536, %v1534
      %v1910 = vpack.c.bf16 %v1571, %v1569
      %v1911 = vpack.c.bf16 %v1606, %v1604
      %v1912 = vpack.c.bf16 %v1641, %v1639
      %v1913 = vpack.c.bf16 %v1676, %v1674
      %v1914 = vpack.c.bf16 %v1711, %v1709
      %v1915 = vpack.c.bf16 %v1746, %v1744
      %v1916 = vpack.c.bf16 %v1781, %v1779
      %s1917 = scalar_lea.vmem %s4, 16
      %v1918 = vld [vmem:[%s1917] sm:$0xf]
      %v1919 = vld [vmem:[%s1917 + $0x4] sm:$0xf]
      %v1920 = vld [vmem:[%s1917 + $0x8] sm:$0xf]
      %v1921 = vld [vmem:[%s1917 + $0xc] sm:$0xf]
      %v1926 = vunpack.c.l.b16 %v1918
      %v1927 = vunpack.c.l.b16 %v1919
      %v1928 = vunpack.c.l.b16 %v1920
      %v1929 = vunpack.c.l.b16 %v1921
      %v1930 = vpack.c.b16 %v1927, %v1926
      %v1931 = vpack.c.b16 %v1929, %v1928
      %v1935 = vsel %vm1045, %v1909, 0
      %v1938 = vsel %vm1045, %v1910, 0
      %v1941 = vsel %vm1045, %v1911, 0
      %v1944 = vsel %vm1045, %v1912, 0
      %v1947 = vsel %vm1045, %v1913, 0
      %v1950 = vsel %vm1045, %v1914, 0
      %v1953 = vsel %vm1045, %v1915, 0
      %v1956 = vsel %vm1045, %v1916, 0
      %1958 = vmatpush.bf16.msra.mxu0 0
      %1959 = vmatpush.bf16.msra.mxu0 0
      %1960 = vmatpush.bf16.msra.mxu0 0
      %1961 = vmatpush.bf16.msra.mxu0 0
      %1962 = vmatpush.bf16.msra.mxu0 0
      %1963 = vmatpush.bf16.msra.mxu0 0
      %1964 = vmatpush.bf16.msra.mxu0 %v1931
      %1965 = vmatpush.bf16.msra.mxu0 %v1930
      %1966 = vmatmul.bf16.gmra.mxu0 %v1935
      %v1967 = vpop.f32.mrf.mxu0
      %v1968 = vadd.f32 0.0, %v1967
      %v1969 = vpop.f32.mrf.mxu0
      %v1970 = vadd.f32 0.0, %v1969
      %1971 = vmatmul.bf16.gmra.mxu0 %v1938
      %v1972 = vpop.f32.mrf.mxu0
      %v1973 = vadd.f32 0.0, %v1972
      %v1974 = vpop.f32.mrf.mxu0
      %v1975 = vadd.f32 0.0, %v1974
      %1976 = vmatmul.bf16.gmra.mxu0 %v1941
      %v1977 = vpop.f32.mrf.mxu0
      %v1978 = vadd.f32 0.0, %v1977
      %v1979 = vpop.f32.mrf.mxu0
      %v1980 = vadd.f32 0.0, %v1979
      %1981 = vmatmul.bf16.gmra.mxu0 %v1944
      %v1982 = vpop.f32.mrf.mxu0
      %v1983 = vadd.f32 0.0, %v1982
      %v1984 = vpop.f32.mrf.mxu0
      %v1985 = vadd.f32 0.0, %v1984
      %1986 = vmatmul.bf16.gmra.mxu0 %v1947
      %v1987 = vpop.f32.mrf.mxu0
      %v1988 = vadd.f32 0.0, %v1987
      %v1989 = vpop.f32.mrf.mxu0
      %v1990 = vadd.f32 0.0, %v1989
      %1991 = vmatmul.bf16.gmra.mxu0 %v1950
      %v1992 = vpop.f32.mrf.mxu0
      %v1993 = vadd.f32 0.0, %v1992
      %v1994 = vpop.f32.mrf.mxu0
      %v1995 = vadd.f32 0.0, %v1994
      %1996 = vmatmul.bf16.gmra.mxu0 %v1953
      %v1997 = vpop.f32.mrf.mxu0
      %v1998 = vadd.f32 0.0, %v1997
      %v1999 = vpop.f32.mrf.mxu0
      %v2000 = vadd.f32 0.0, %v1999
      %2001 = vmatmul.bf16.gmra.mxu0 %v1956
      %v2002 = vpop.f32.mrf.mxu0
      %v2003 = vadd.f32 0.0, %v2002
      %v2004 = vpop.f32.mrf.mxu0
      %v2005 = vadd.f32 0.0, %v2004
      %2006 = vdwg.mxu0
      %v2007 = vadd.f32 %v1893, %v1968
      %v2008 = vadd.f32 %v1894, %v1970
      %v2009 = vadd.f32 %v1895, %v1973
      %v2010 = vadd.f32 %v1896, %v1975
      %v2011 = vadd.f32 %v1897, %v1978
      %v2012 = vadd.f32 %v1898, %v1980
      %v2013 = vadd.f32 %v1899, %v1983
      %v2014 = vadd.f32 %v1900, %v1985
      %v2015 = vadd.f32 %v1901, %v1988
      %v2016 = vadd.f32 %v1902, %v1990
      %v2017 = vadd.f32 %v1903, %v1993
      %v2018 = vadd.f32 %v1904, %v1995
      %v2019 = vadd.f32 %v1905, %v1998
      %v2020 = vadd.f32 %v1906, %v2000
      %v2021 = vadd.f32 %v1907, %v2003
      %v2022 = vadd.f32 %v1908, %v2005
      %v2023 = vpack.c.bf16 %v1541, %v1539
      %v2024 = vpack.c.bf16 %v1576, %v1574
      %v2025 = vpack.c.bf16 %v1611, %v1609
      %v2026 = vpack.c.bf16 %v1646, %v1644
      %v2027 = vpack.c.bf16 %v1681, %v1679
      %v2028 = vpack.c.bf16 %v1716, %v1714
      %v2029 = vpack.c.bf16 %v1751, %v1749
      %v2030 = vpack.c.bf16 %v1786, %v1784
      %s2031 = scalar_lea.vmem %s4, 32
      %v2032 = vld [vmem:[%s2031] sm:$0xf]
      %v2033 = vld [vmem:[%s2031 + $0x4] sm:$0xf]
      %v2034 = vld [vmem:[%s2031 + $0x8] sm:$0xf]
      %v2035 = vld [vmem:[%s2031 + $0xc] sm:$0xf]
      %v2040 = vunpack.c.l.b16 %v2032
      %v2041 = vunpack.c.l.b16 %v2033
      %v2042 = vunpack.c.l.b16 %v2034
      %v2043 = vunpack.c.l.b16 %v2035
      %v2044 = vpack.c.b16 %v2041, %v2040
      %v2045 = vpack.c.b16 %v2043, %v2042
      %v2049 = vsel %vm1045, %v2023, 0
      %v2052 = vsel %vm1045, %v2024, 0
      %v2055 = vsel %vm1045, %v2025, 0
      %v2058 = vsel %vm1045, %v2026, 0
      %v2061 = vsel %vm1045, %v2027, 0
      %v2064 = vsel %vm1045, %v2028, 0
      %v2067 = vsel %vm1045, %v2029, 0
      %v2070 = vsel %vm1045, %v2030, 0
      %2072 = vmatpush.bf16.msra.mxu0 0
      %2073 = vmatpush.bf16.msra.mxu0 0
      %2074 = vmatpush.bf16.msra.mxu0 0
      %2075 = vmatpush.bf16.msra.mxu0 0
      %2076 = vmatpush.bf16.msra.mxu0 0
      %2077 = vmatpush.bf16.msra.mxu0 0
      %2078 = vmatpush.bf16.msra.mxu0 %v2045
      %2079 = vmatpush.bf16.msra.mxu0 %v2044
      %2080 = vmatmul.bf16.gmra.mxu0 %v2049
      %v2081 = vpop.f32.mrf.mxu0
      %v2082 = vadd.f32 0.0, %v2081
      %v2083 = vpop.f32.mrf.mxu0
      %v2084 = vadd.f32 0.0, %v2083
      %2085 = vmatmul.bf16.gmra.mxu0 %v2052
      %v2086 = vpop.f32.mrf.mxu0
      %v2087 = vadd.f32 0.0, %v2086
      %v2088 = vpop.f32.mrf.mxu0
      %v2089 = vadd.f32 0.0, %v2088
      %2090 = vmatmul.bf16.gmra.mxu0 %v2055
      %v2091 = vpop.f32.mrf.mxu0
      %v2092 = vadd.f32 0.0, %v2091
      %v2093 = vpop.f32.mrf.mxu0
      %v2094 = vadd.f32 0.0, %v2093
      %2095 = vmatmul.bf16.gmra.mxu0 %v2058
      %v2096 = vpop.f32.mrf.mxu0
      %v2097 = vadd.f32 0.0, %v2096
      %v2098 = vpop.f32.mrf.mxu0
      %v2099 = vadd.f32 0.0, %v2098
      %2100 = vmatmul.bf16.gmra.mxu0 %v2061
      %v2101 = vpop.f32.mrf.mxu0
      %v2102 = vadd.f32 0.0, %v2101
      %v2103 = vpop.f32.mrf.mxu0
      %v2104 = vadd.f32 0.0, %v2103
      %2105 = vmatmul.bf16.gmra.mxu0 %v2064
      %v2106 = vpop.f32.mrf.mxu0
      %v2107 = vadd.f32 0.0, %v2106
      %v2108 = vpop.f32.mrf.mxu0
      %v2109 = vadd.f32 0.0, %v2108
      %2110 = vmatmul.bf16.gmra.mxu0 %v2067
      %v2111 = vpop.f32.mrf.mxu0
      %v2112 = vadd.f32 0.0, %v2111
      %v2113 = vpop.f32.mrf.mxu0
      %v2114 = vadd.f32 0.0, %v2113
      %2115 = vmatmul.bf16.gmra.mxu0 %v2070
      %v2116 = vpop.f32.mrf.mxu0
      %v2117 = vadd.f32 0.0, %v2116
      %v2118 = vpop.f32.mrf.mxu0
      %v2119 = vadd.f32 0.0, %v2118
      %2120 = vdwg.mxu0
      %v2121 = vadd.f32 %v2007, %v2082
      %v2122 = vadd.f32 %v2008, %v2084
      %v2123 = vadd.f32 %v2009, %v2087
      %v2124 = vadd.f32 %v2010, %v2089
      %v2125 = vadd.f32 %v2011, %v2092
      %v2126 = vadd.f32 %v2012, %v2094
      %v2127 = vadd.f32 %v2013, %v2097
      %v2128 = vadd.f32 %v2014, %v2099
      %v2129 = vadd.f32 %v2015, %v2102
      %v2130 = vadd.f32 %v2016, %v2104
      %v2131 = vadd.f32 %v2017, %v2107
      %v2132 = vadd.f32 %v2018, %v2109
      %v2133 = vadd.f32 %v2019, %v2112
      %v2134 = vadd.f32 %v2020, %v2114
      %v2135 = vadd.f32 %v2021, %v2117
      %v2136 = vadd.f32 %v2022, %v2119
      %v2137 = vpack.c.bf16 %v1546, %v1544
      %v2138 = vpack.c.bf16 %v1581, %v1579
      %v2139 = vpack.c.bf16 %v1616, %v1614
      %v2140 = vpack.c.bf16 %v1651, %v1649
      %v2141 = vpack.c.bf16 %v1686, %v1684
      %v2142 = vpack.c.bf16 %v1721, %v1719
      %v2143 = vpack.c.bf16 %v1756, %v1754
      %v2144 = vpack.c.bf16 %v1791, %v1789
      %s2145 = scalar_lea.vmem %s4, 48
      %v2146 = vld [vmem:[%s2145] sm:$0xf]
      %v2147 = vld [vmem:[%s2145 + $0x4] sm:$0xf]
      %v2148 = vld [vmem:[%s2145 + $0x8] sm:$0xf]
      %v2149 = vld [vmem:[%s2145 + $0xc] sm:$0xf]
      %v2154 = vunpack.c.l.b16 %v2146
      %v2155 = vunpack.c.l.b16 %v2147
      %v2156 = vunpack.c.l.b16 %v2148
      %v2157 = vunpack.c.l.b16 %v2149
      %v2158 = vpack.c.b16 %v2155, %v2154
      %v2159 = vpack.c.b16 %v2157, %v2156
      %v2163 = vsel %vm1045, %v2137, 0
      %v2166 = vsel %vm1045, %v2138, 0
      %v2169 = vsel %vm1045, %v2139, 0
      %v2172 = vsel %vm1045, %v2140, 0
      %v2175 = vsel %vm1045, %v2141, 0
      %v2178 = vsel %vm1045, %v2142, 0
      %v2181 = vsel %vm1045, %v2143, 0
      %v2184 = vsel %vm1045, %v2144, 0
      %2186 = vmatpush.bf16.msra.mxu0 0
      %2187 = vmatpush.bf16.msra.mxu0 0
      %2188 = vmatpush.bf16.msra.mxu0 0
      %2189 = vmatpush.bf16.msra.mxu0 0
      %2190 = vmatpush.bf16.msra.mxu0 0
      %2191 = vmatpush.bf16.msra.mxu0 0
      %2192 = vmatpush.bf16.msra.mxu0 %v2159
      %2193 = vmatpush.bf16.msra.mxu0 %v2158
      %2194 = vmatmul.bf16.gmra.mxu0 %v2163
      %v2195 = vpop.f32.mrf.mxu0
      %v2196 = vadd.f32 0.0, %v2195
      %v2197 = vpop.f32.mrf.mxu0
      %v2198 = vadd.f32 0.0, %v2197
      %2199 = vmatmul.bf16.gmra.mxu0 %v2166
      %v2200 = vpop.f32.mrf.mxu0
      %v2201 = vadd.f32 0.0, %v2200
      %v2202 = vpop.f32.mrf.mxu0
      %v2203 = vadd.f32 0.0, %v2202
      %2204 = vmatmul.bf16.gmra.mxu0 %v2169
      %v2205 = vpop.f32.mrf.mxu0
      %v2206 = vadd.f32 0.0, %v2205
      %v2207 = vpop.f32.mrf.mxu0
      %v2208 = vadd.f32 0.0, %v2207
      %2209 = vmatmul.bf16.gmra.mxu0 %v2172
      %v2210 = vpop.f32.mrf.mxu0
      %v2211 = vadd.f32 0.0, %v2210
      %v2212 = vpop.f32.mrf.mxu0
      %v2213 = vadd.f32 0.0, %v2212
      %2214 = vmatmul.bf16.gmra.mxu0 %v2175
      %v2215 = vpop.f32.mrf.mxu0
      %v2216 = vadd.f32 0.0, %v2215
      %v2217 = vpop.f32.mrf.mxu0
      %v2218 = vadd.f32 0.0, %v2217
      %2219 = vmatmul.bf16.gmra.mxu0 %v2178
      %v2220 = vpop.f32.mrf.mxu0
      %v2221 = vadd.f32 0.0, %v2220
      %v2222 = vpop.f32.mrf.mxu0
      %v2223 = vadd.f32 0.0, %v2222
      %2224 = vmatmul.bf16.gmra.mxu0 %v2181
      %v2225 = vpop.f32.mrf.mxu0
      %v2226 = vadd.f32 0.0, %v2225
      %v2227 = vpop.f32.mrf.mxu0
      %v2228 = vadd.f32 0.0, %v2227
      %2229 = vmatmul.bf16.gmra.mxu0 %v2184
      %v2230 = vpop.f32.mrf.mxu0
      %v2231 = vadd.f32 0.0, %v2230
      %v2232 = vpop.f32.mrf.mxu0
      %v2233 = vadd.f32 0.0, %v2232
      %2234 = vdwg.mxu0
      %v2235 = vadd.f32 %v2121, %v2196
      %v2236 = vadd.f32 %v2122, %v2198
      %v2237 = vadd.f32 %v2123, %v2201
      %v2238 = vadd.f32 %v2124, %v2203
      %v2239 = vadd.f32 %v2125, %v2206
      %v2240 = vadd.f32 %v2126, %v2208
      %v2241 = vadd.f32 %v2127, %v2211
      %v2242 = vadd.f32 %v2128, %v2213
      %v2243 = vadd.f32 %v2129, %v2216
      %v2244 = vadd.f32 %v2130, %v2218
      %v2245 = vadd.f32 %v2131, %v2221
      %v2246 = vadd.f32 %v2132, %v2223
      %v2247 = vadd.f32 %v2133, %v2226
      %v2248 = vadd.f32 %v2134, %v2228
      %v2249 = vadd.f32 %v2135, %v2231
      %v2250 = vadd.f32 %v2136, %v2233
      %v2251 = vmax.f32 %v2235, 0.0
      %v2252 = vmax.f32 %v2236, 0.0
      %v2253 = vmax.f32 %v2237, 0.0
      %v2254 = vmax.f32 %v2238, 0.0
      %v2255 = vmax.f32 %v2239, 0.0
      %v2256 = vmax.f32 %v2240, 0.0
      %v2257 = vmax.f32 %v2241, 0.0
      %v2258 = vmax.f32 %v2242, 0.0
      %v2259 = vmax.f32 %v2243, 0.0
      %v2260 = vmax.f32 %v2244, 0.0
      %v2261 = vmax.f32 %v2245, 0.0
      %v2262 = vmax.f32 %v2246, 0.0
      %v2263 = vmax.f32 %v2247, 0.0
      %v2264 = vmax.f32 %v2248, 0.0
      %v2265 = vmax.f32 %v2249, 0.0
      %v2266 = vmax.f32 %v2250, 0.0
      %v2267 = vld [vmem:[%s7] sm:$0x1]
      %v2268 = vpack.c.bf16 %v2251, %v2251
      %v2269 = vpack.c.bf16 %v2252, %v2252
      %v2270 = vpack.c.bf16 %v2253, %v2253
      %v2271 = vpack.c.bf16 %v2254, %v2254
      %v2272 = vpack.c.bf16 %v2255, %v2255
      %v2273 = vpack.c.bf16 %v2256, %v2256
      %v2274 = vpack.c.bf16 %v2257, %v2257
      %v2275 = vpack.c.bf16 %v2258, %v2258
      %v2276 = vpack.c.bf16 %v2259, %v2259
      %v2277 = vpack.c.bf16 %v2260, %v2260
      %v2278 = vpack.c.bf16 %v2261, %v2261
      %v2279 = vpack.c.bf16 %v2262, %v2262
      %v2280 = vpack.c.bf16 %v2263, %v2263
      %v2281 = vpack.c.bf16 %v2264, %v2264
      %v2282 = vpack.c.bf16 %v2265, %v2265
      %v2283 = vpack.c.bf16 %v2266, %v2266
      %v2286 = vunpack.c.l.b16 %v2268
      %v2287 = vunpack.c.l.b16 %v2269
      %v2288 = vpack.c.b16 %v2287, %v2286
      %2290 = vmatpush.bf16.msra.mxu0 0
      %2291 = vmatpush.bf16.msra.mxu0 0
      %2292 = vmatpush.bf16.msra.mxu0 0
      %2293 = vmatpush.bf16.msra.mxu0 0
      %2294 = vmatpush.bf16.msra.mxu0 0
      %2295 = vmatpush.bf16.msra.mxu0 0
      %2296 = vmatpush.bf16.msra.mxu0 0
      %2297 = vmatpush.bf16.msra.mxu0 %v2288
      %2298 = vmatmul.bf16.gmra.mxu0 %v512
      %v2299 = vpop.f32.mrf.mxu0
      %v2300 = vadd.f32 0.0, %v2299
      %v2301 = vpop.f32.mrf.mxu0
      %v2302 = vadd.f32 0.0, %v2301
      %2303 = vmatmul.bf16.gmra.mxu0 %v515
      %v2304 = vpop.f32.mrf.mxu0
      %v2305 = vadd.f32 0.0, %v2304
      %v2306 = vpop.f32.mrf.mxu0
      %v2307 = vadd.f32 0.0, %v2306
      %2308 = vmatmul.bf16.gmra.mxu0 %v518
      %v2309 = vpop.f32.mrf.mxu0
      %v2310 = vadd.f32 0.0, %v2309
      %v2311 = vpop.f32.mrf.mxu0
      %v2312 = vadd.f32 0.0, %v2311
      %2313 = vmatmul.bf16.gmra.mxu0 %v521
      %v2314 = vpop.f32.mrf.mxu0
      %v2315 = vadd.f32 0.0, %v2314
      %v2316 = vpop.f32.mrf.mxu0
      %v2317 = vadd.f32 0.0, %v2316
      %2318 = vdwg.mxu0
      %v2321 = vunpack.c.l.b16 %v2270
      %v2322 = vunpack.c.l.b16 %v2271
      %v2323 = vpack.c.b16 %v2322, %v2321
      %2325 = vmatpush.bf16.msra.mxu0 0
      %2326 = vmatpush.bf16.msra.mxu0 0
      %2327 = vmatpush.bf16.msra.mxu0 0
      %2328 = vmatpush.bf16.msra.mxu0 0
      %2329 = vmatpush.bf16.msra.mxu0 0
      %2330 = vmatpush.bf16.msra.mxu0 0
      %2331 = vmatpush.bf16.msra.mxu0 0
      %2332 = vmatpush.bf16.msra.mxu0 %v2323
      %2333 = vmatmul.bf16.gmra.mxu0 %v579
      %v2334 = vpop.f32.mrf.mxu0
      %v2335 = vadd.f32 0.0, %v2334
      %v2336 = vpop.f32.mrf.mxu0
      %v2337 = vadd.f32 0.0, %v2336
      %2338 = vmatmul.bf16.gmra.mxu0 %v582
      %v2339 = vpop.f32.mrf.mxu0
      %v2340 = vadd.f32 0.0, %v2339
      %v2341 = vpop.f32.mrf.mxu0
      %v2342 = vadd.f32 0.0, %v2341
      %2343 = vmatmul.bf16.gmra.mxu0 %v585
      %v2344 = vpop.f32.mrf.mxu0
      %v2345 = vadd.f32 0.0, %v2344
      %v2346 = vpop.f32.mrf.mxu0
      %v2347 = vadd.f32 0.0, %v2346
      %2348 = vmatmul.bf16.gmra.mxu0 %v588
      %v2349 = vpop.f32.mrf.mxu0
      %v2350 = vadd.f32 0.0, %v2349
      %v2351 = vpop.f32.mrf.mxu0
      %v2352 = vadd.f32 0.0, %v2351
      %2353 = vdwg.mxu0
      %v2356 = vunpack.c.l.b16 %v2272
      %v2357 = vunpack.c.l.b16 %v2273
      %v2358 = vpack.c.b16 %v2357, %v2356
      %2360 = vmatpush.bf16.msra.mxu0 0
      %2361 = vmatpush.bf16.msra.mxu0 0
      %2362 = vmatpush.bf16.msra.mxu0 0
      %2363 = vmatpush.bf16.msra.mxu0 0
      %2364 = vmatpush.bf16.msra.mxu0 0
      %2365 = vmatpush.bf16.msra.mxu0 0
      %2366 = vmatpush.bf16.msra.mxu0 0
      %2367 = vmatpush.bf16.msra.mxu0 %v2358
      %2368 = vmatmul.bf16.gmra.mxu0 %v646
      %v2369 = vpop.f32.mrf.mxu0
      %v2370 = vadd.f32 0.0, %v2369
      %v2371 = vpop.f32.mrf.mxu0
      %v2372 = vadd.f32 0.0, %v2371
      %2373 = vmatmul.bf16.gmra.mxu0 %v649
      %v2374 = vpop.f32.mrf.mxu0
      %v2375 = vadd.f32 0.0, %v2374
      %v2376 = vpop.f32.mrf.mxu0
      %v2377 = vadd.f32 0.0, %v2376
      %2378 = vmatmul.bf16.gmra.mxu0 %v652
      %v2379 = vpop.f32.mrf.mxu0
      %v2380 = vadd.f32 0.0, %v2379
      %v2381 = vpop.f32.mrf.mxu0
      %v2382 = vadd.f32 0.0, %v2381
      %2383 = vmatmul.bf16.gmra.mxu0 %v655
      %v2384 = vpop.f32.mrf.mxu0
      %v2385 = vadd.f32 0.0, %v2384
      %v2386 = vpop.f32.mrf.mxu0
      %v2387 = vadd.f32 0.0, %v2386
      %2388 = vdwg.mxu0
      %v2391 = vunpack.c.l.b16 %v2274
      %v2392 = vunpack.c.l.b16 %v2275
      %v2393 = vpack.c.b16 %v2392, %v2391
      %2395 = vmatpush.bf16.msra.mxu0 0
      %2396 = vmatpush.bf16.msra.mxu0 0
      %2397 = vmatpush.bf16.msra.mxu0 0
      %2398 = vmatpush.bf16.msra.mxu0 0
      %2399 = vmatpush.bf16.msra.mxu0 0
      %2400 = vmatpush.bf16.msra.mxu0 0
      %2401 = vmatpush.bf16.msra.mxu0 0
      %2402 = vmatpush.bf16.msra.mxu0 %v2393
      %2403 = vmatmul.bf16.gmra.mxu0 %v713
      %v2404 = vpop.f32.mrf.mxu0
      %v2405 = vadd.f32 0.0, %v2404
      %v2406 = vpop.f32.mrf.mxu0
      %v2407 = vadd.f32 0.0, %v2406
      %2408 = vmatmul.bf16.gmra.mxu0 %v716
      %v2409 = vpop.f32.mrf.mxu0
      %v2410 = vadd.f32 0.0, %v2409
      %v2411 = vpop.f32.mrf.mxu0
      %v2412 = vadd.f32 0.0, %v2411
      %2413 = vmatmul.bf16.gmra.mxu0 %v719
      %v2414 = vpop.f32.mrf.mxu0
      %v2415 = vadd.f32 0.0, %v2414
      %v2416 = vpop.f32.mrf.mxu0
      %v2417 = vadd.f32 0.0, %v2416
      %2418 = vmatmul.bf16.gmra.mxu0 %v722
      %v2419 = vpop.f32.mrf.mxu0
      %v2420 = vadd.f32 0.0, %v2419
      %v2421 = vpop.f32.mrf.mxu0
      %v2422 = vadd.f32 0.0, %v2421
      %2423 = vdwg.mxu0
      %v2426 = vunpack.c.l.b16 %v2276
      %v2427 = vunpack.c.l.b16 %v2277
      %v2428 = vpack.c.b16 %v2427, %v2426
      %2430 = vmatpush.bf16.msra.mxu0 0
      %2431 = vmatpush.bf16.msra.mxu0 0
      %2432 = vmatpush.bf16.msra.mxu0 0
      %2433 = vmatpush.bf16.msra.mxu0 0
      %2434 = vmatpush.bf16.msra.mxu0 0
      %2435 = vmatpush.bf16.msra.mxu0 0
      %2436 = vmatpush.bf16.msra.mxu0 0
      %2437 = vmatpush.bf16.msra.mxu0 %v2428
      %2438 = vmatmul.bf16.gmra.mxu0 %v780
      %v2439 = vpop.f32.mrf.mxu0
      %v2440 = vadd.f32 0.0, %v2439
      %v2441 = vpop.f32.mrf.mxu0
      %v2442 = vadd.f32 0.0, %v2441
      %2443 = vmatmul.bf16.gmra.mxu0 %v783
      %v2444 = vpop.f32.mrf.mxu0
      %v2445 = vadd.f32 0.0, %v2444
      %v2446 = vpop.f32.mrf.mxu0
      %v2447 = vadd.f32 0.0, %v2446
      %2448 = vmatmul.bf16.gmra.mxu0 %v786
      %v2449 = vpop.f32.mrf.mxu0
      %v2450 = vadd.f32 0.0, %v2449
      %v2451 = vpop.f32.mrf.mxu0
      %v2452 = vadd.f32 0.0, %v2451
      %2453 = vmatmul.bf16.gmra.mxu0 %v789
      %v2454 = vpop.f32.mrf.mxu0
      %v2455 = vadd.f32 0.0, %v2454
      %v2456 = vpop.f32.mrf.mxu0
      %v2457 = vadd.f32 0.0, %v2456
      %2458 = vdwg.mxu0
      %v2461 = vunpack.c.l.b16 %v2278
      %v2462 = vunpack.c.l.b16 %v2279
      %v2463 = vpack.c.b16 %v2462, %v2461
      %2465 = vmatpush.bf16.msra.mxu0 0
      %2466 = vmatpush.bf16.msra.mxu0 0
      %2467 = vmatpush.bf16.msra.mxu0 0
      %2468 = vmatpush.bf16.msra.mxu0 0
      %2469 = vmatpush.bf16.msra.mxu0 0
      %2470 = vmatpush.bf16.msra.mxu0 0
      %2471 = vmatpush.bf16.msra.mxu0 0
      %2472 = vmatpush.bf16.msra.mxu0 %v2463
      %2473 = vmatmul.bf16.gmra.mxu0 %v847
      %v2474 = vpop.f32.mrf.mxu0
      %v2475 = vadd.f32 0.0, %v2474
      %v2476 = vpop.f32.mrf.mxu0
      %v2477 = vadd.f32 0.0, %v2476
      %2478 = vmatmul.bf16.gmra.mxu0 %v850
      %v2479 = vpop.f32.mrf.mxu0
      %v2480 = vadd.f32 0.0, %v2479
      %v2481 = vpop.f32.mrf.mxu0
      %v2482 = vadd.f32 0.0, %v2481
      %2483 = vmatmul.bf16.gmra.mxu0 %v853
      %v2484 = vpop.f32.mrf.mxu0
      %v2485 = vadd.f32 0.0, %v2484
      %v2486 = vpop.f32.mrf.mxu0
      %v2487 = vadd.f32 0.0, %v2486
      %2488 = vmatmul.bf16.gmra.mxu0 %v856
      %v2489 = vpop.f32.mrf.mxu0
      %v2490 = vadd.f32 0.0, %v2489
      %v2491 = vpop.f32.mrf.mxu0
      %v2492 = vadd.f32 0.0, %v2491
      %2493 = vdwg.mxu0
      %v2496 = vunpack.c.l.b16 %v2280
      %v2497 = vunpack.c.l.b16 %v2281
      %v2498 = vpack.c.b16 %v2497, %v2496
      %2500 = vmatpush.bf16.msra.mxu0 0
      %2501 = vmatpush.bf16.msra.mxu0 0
      %2502 = vmatpush.bf16.msra.mxu0 0
      %2503 = vmatpush.bf16.msra.mxu0 0
      %2504 = vmatpush.bf16.msra.mxu0 0
      %2505 = vmatpush.bf16.msra.mxu0 0
      %2506 = vmatpush.bf16.msra.mxu0 0
      %2507 = vmatpush.bf16.msra.mxu0 %v2498
      %2508 = vmatmul.bf16.gmra.mxu0 %v914
      %v2509 = vpop.f32.mrf.mxu0
      %v2510 = vadd.f32 0.0, %v2509
      %v2511 = vpop.f32.mrf.mxu0
      %v2512 = vadd.f32 0.0, %v2511
      %2513 = vmatmul.bf16.gmra.mxu0 %v917
      %v2514 = vpop.f32.mrf.mxu0
      %v2515 = vadd.f32 0.0, %v2514
      %v2516 = vpop.f32.mrf.mxu0
      %v2517 = vadd.f32 0.0, %v2516
      %2518 = vmatmul.bf16.gmra.mxu0 %v920
      %v2519 = vpop.f32.mrf.mxu0
      %v2520 = vadd.f32 0.0, %v2519
      %v2521 = vpop.f32.mrf.mxu0
      %v2522 = vadd.f32 0.0, %v2521
      %2523 = vmatmul.bf16.gmra.mxu0 %v923
      %v2524 = vpop.f32.mrf.mxu0
      %v2525 = vadd.f32 0.0, %v2524
      %v2526 = vpop.f32.mrf.mxu0
      %v2527 = vadd.f32 0.0, %v2526
      %2528 = vdwg.mxu0
      %v2531 = vunpack.c.l.b16 %v2282
      %v2532 = vunpack.c.l.b16 %v2283
      %v2533 = vpack.c.b16 %v2532, %v2531
      %2535 = vmatpush.bf16.msra.mxu0 0
      %2536 = vmatpush.bf16.msra.mxu0 0
      %2537 = vmatpush.bf16.msra.mxu0 0
      %2538 = vmatpush.bf16.msra.mxu0 0
      %2539 = vmatpush.bf16.msra.mxu0 0
      %2540 = vmatpush.bf16.msra.mxu0 0
      %2541 = vmatpush.bf16.msra.mxu0 0
      %2542 = vmatpush.bf16.msra.mxu0 %v2533
      %2543 = vmatmul.bf16.gmra.mxu0 %v981
      %v2544 = vpop.f32.mrf.mxu0
      %v2545 = vadd.f32 0.0, %v2544
      %v2546 = vpop.f32.mrf.mxu0
      %v2547 = vadd.f32 0.0, %v2546
      %2548 = vmatmul.bf16.gmra.mxu0 %v984
      %v2549 = vpop.f32.mrf.mxu0
      %v2550 = vadd.f32 0.0, %v2549
      %v2551 = vpop.f32.mrf.mxu0
      %v2552 = vadd.f32 0.0, %v2551
      %2553 = vmatmul.bf16.gmra.mxu0 %v987
      %v2554 = vpop.f32.mrf.mxu0
      %v2555 = vadd.f32 0.0, %v2554
      %v2556 = vpop.f32.mrf.mxu0
      %v2557 = vadd.f32 0.0, %v2556
      %2558 = vmatmul.bf16.gmra.mxu0 %v990
      %v2559 = vpop.f32.mrf.mxu0
      %v2560 = vadd.f32 0.0, %v2559
      %v2561 = vpop.f32.mrf.mxu0
      %v2562 = vadd.f32 0.0, %v2561
      %2563 = vdwg.mxu0
      %v2564 = vpack.c.bf16 %v2302, %v2300
      %v2565 = vpack.c.bf16 %v2337, %v2335
      %v2566 = vpack.c.bf16 %v2372, %v2370
      %v2567 = vpack.c.bf16 %v2407, %v2405
      %v2568 = vpack.c.bf16 %v2442, %v2440
      %v2569 = vpack.c.bf16 %v2477, %v2475
      %v2570 = vpack.c.bf16 %v2512, %v2510
      %v2571 = vpack.c.bf16 %v2547, %v2545
      %v2572 = vld [vmem:[%s6] sm:$0xf]
      %v2573 = vld [vmem:[%s6 + $0x4] sm:$0xf]
      %v2574 = vld [vmem:[%s6 + $0x8] sm:$0xf]
      %v2575 = vld [vmem:[%s6 + $0xc] sm:$0xf]
      %v2580 = vunpack.c.l.b16 %v2572
      %v2581 = vunpack.c.l.b16 %v2573
      %v2582 = vunpack.c.l.b16 %v2574
      %v2583 = vunpack.c.l.b16 %v2575
      %v2584 = vpack.c.b16 %v2581, %v2580
      %v2585 = vpack.c.b16 %v2583, %v2582
      %v2589 = vsel %vm1045, %v2564, 0
      %v2592 = vsel %vm1045, %v2565, 0
      %v2595 = vsel %vm1045, %v2566, 0
      %v2598 = vsel %vm1045, %v2567, 0
      %v2601 = vsel %vm1045, %v2568, 0
      %v2604 = vsel %vm1045, %v2569, 0
      %v2607 = vsel %vm1045, %v2570, 0
      %v2610 = vsel %vm1045, %v2571, 0
      %2612 = vmatpush.bf16.msra.mxu0 0
      %2613 = vmatpush.bf16.msra.mxu0 0
      %2614 = vmatpush.bf16.msra.mxu0 0
      %2615 = vmatpush.bf16.msra.mxu0 0
      %2616 = vmatpush.bf16.msra.mxu0 0
      %2617 = vmatpush.bf16.msra.mxu0 0
      %2618 = vmatpush.bf16.msra.mxu0 %v2585
      %2619 = vmatpush.bf16.msra.mxu0 %v2584
      %2620 = vmatmul.bf16.gmra.mxu0 %v2589
      %v2621 = vpop.f32.mrf.mxu0
      %v2622 = vadd.f32 0.0, %v2621
      %v2623 = vpop.f32.mrf.mxu0
      %v2624 = vadd.f32 0.0, %v2623
      %2625 = vmatmul.bf16.gmra.mxu0 %v2592
      %v2626 = vpop.f32.mrf.mxu0
      %v2627 = vadd.f32 0.0, %v2626
      %v2628 = vpop.f32.mrf.mxu0
      %v2629 = vadd.f32 0.0, %v2628
      %2630 = vmatmul.bf16.gmra.mxu0 %v2595
      %v2631 = vpop.f32.mrf.mxu0
      %v2632 = vadd.f32 0.0, %v2631
      %v2633 = vpop.f32.mrf.mxu0
      %v2634 = vadd.f32 0.0, %v2633
      %2635 = vmatmul.bf16.gmra.mxu0 %v2598
      %v2636 = vpop.f32.mrf.mxu0
      %v2637 = vadd.f32 0.0, %v2636
      %v2638 = vpop.f32.mrf.mxu0
      %v2639 = vadd.f32 0.0, %v2638
      %2640 = vmatmul.bf16.gmra.mxu0 %v2601
      %v2641 = vpop.f32.mrf.mxu0
      %v2642 = vadd.f32 0.0, %v2641
      %v2643 = vpop.f32.mrf.mxu0
      %v2644 = vadd.f32 0.0, %v2643
      %2645 = vmatmul.bf16.gmra.mxu0 %v2604
      %v2646 = vpop.f32.mrf.mxu0
      %v2647 = vadd.f32 0.0, %v2646
      %v2648 = vpop.f32.mrf.mxu0
      %v2649 = vadd.f32 0.0, %v2648
      %2650 = vmatmul.bf16.gmra.mxu0 %v2607
      %v2651 = vpop.f32.mrf.mxu0
      %v2652 = vadd.f32 0.0, %v2651
      %v2653 = vpop.f32.mrf.mxu0
      %v2654 = vadd.f32 0.0, %v2653
      %2655 = vmatmul.bf16.gmra.mxu0 %v2610
      %v2656 = vpop.f32.mrf.mxu0
      %v2657 = vadd.f32 0.0, %v2656
      %v2658 = vpop.f32.mrf.mxu0
      %v2659 = vadd.f32 0.0, %v2658
      %2660 = vdwg.mxu0
      %v2662 = vperm.slane %v2267, 0
      %v2664 = vadd.f32 %v2662, %v2622
      %v2665 = vadd.f32 %v2662, %v2624
      %v2666 = vadd.f32 %v2662, %v2627
      %v2667 = vadd.f32 %v2662, %v2629
      %v2668 = vadd.f32 %v2662, %v2632
      %v2669 = vadd.f32 %v2662, %v2634
      %v2670 = vadd.f32 %v2662, %v2637
      %v2671 = vadd.f32 %v2662, %v2639
      %v2672 = vadd.f32 %v2662, %v2642
      %v2673 = vadd.f32 %v2662, %v2644
      %v2674 = vadd.f32 %v2662, %v2647
      %v2675 = vadd.f32 %v2662, %v2649
      %v2676 = vadd.f32 %v2662, %v2652
      %v2677 = vadd.f32 %v2662, %v2654
      %v2678 = vadd.f32 %v2662, %v2657
      %v2679 = vadd.f32 %v2662, %v2659
      %v2680 = vpack.c.bf16 %v2307, %v2305
      %v2681 = vpack.c.bf16 %v2342, %v2340
      %v2682 = vpack.c.bf16 %v2377, %v2375
      %v2683 = vpack.c.bf16 %v2412, %v2410
      %v2684 = vpack.c.bf16 %v2447, %v2445
      %v2685 = vpack.c.bf16 %v2482, %v2480
      %v2686 = vpack.c.bf16 %v2517, %v2515
      %v2687 = vpack.c.bf16 %v2552, %v2550
      %s2688 = scalar_lea.vmem %s6, 16
      %v2689 = vld [vmem:[%s2688] sm:$0xf]
      %v2690 = vld [vmem:[%s2688 + $0x4] sm:$0xf]
      %v2691 = vld [vmem:[%s2688 + $0x8] sm:$0xf]
      %v2692 = vld [vmem:[%s2688 + $0xc] sm:$0xf]
      %v2697 = vunpack.c.l.b16 %v2689
      %v2698 = vunpack.c.l.b16 %v2690
      %v2699 = vunpack.c.l.b16 %v2691
      %v2700 = vunpack.c.l.b16 %v2692
      %v2701 = vpack.c.b16 %v2698, %v2697
      %v2702 = vpack.c.b16 %v2700, %v2699
      %v2706 = vsel %vm1045, %v2680, 0
      %v2709 = vsel %vm1045, %v2681, 0
      %v2712 = vsel %vm1045, %v2682, 0
      %v2715 = vsel %vm1045, %v2683, 0
      %v2718 = vsel %vm1045, %v2684, 0
      %v2721 = vsel %vm1045, %v2685, 0
      %v2724 = vsel %vm1045, %v2686, 0
      %v2727 = vsel %vm1045, %v2687, 0
      %2729 = vmatpush.bf16.msra.mxu0 0
      %2730 = vmatpush.bf16.msra.mxu0 0
      %2731 = vmatpush.bf16.msra.mxu0 0
      %2732 = vmatpush.bf16.msra.mxu0 0
      %2733 = vmatpush.bf16.msra.mxu0 0
      %2734 = vmatpush.bf16.msra.mxu0 0
      %2735 = vmatpush.bf16.msra.mxu0 %v2702
      %2736 = vmatpush.bf16.msra.mxu0 %v2701
      %2737 = vmatmul.bf16.gmra.mxu0 %v2706
      %v2738 = vpop.f32.mrf.mxu0
      %v2739 = vadd.f32 0.0, %v2738
      %v2740 = vpop.f32.mrf.mxu0
      %v2741 = vadd.f32 0.0, %v2740
      %2742 = vmatmul.bf16.gmra.mxu0 %v2709
      %v2743 = vpop.f32.mrf.mxu0
      %v2744 = vadd.f32 0.0, %v2743
      %v2745 = vpop.f32.mrf.mxu0
      %v2746 = vadd.f32 0.0, %v2745
      %2747 = vmatmul.bf16.gmra.mxu0 %v2712
      %v2748 = vpop.f32.mrf.mxu0
      %v2749 = vadd.f32 0.0, %v2748
      %v2750 = vpop.f32.mrf.mxu0
      %v2751 = vadd.f32 0.0, %v2750
      %2752 = vmatmul.bf16.gmra.mxu0 %v2715
      %v2753 = vpop.f32.mrf.mxu0
      %v2754 = vadd.f32 0.0, %v2753
      %v2755 = vpop.f32.mrf.mxu0
      %v2756 = vadd.f32 0.0, %v2755
      %2757 = vmatmul.bf16.gmra.mxu0 %v2718
      %v2758 = vpop.f32.mrf.mxu0
      %v2759 = vadd.f32 0.0, %v2758
      %v2760 = vpop.f32.mrf.mxu0
      %v2761 = vadd.f32 0.0, %v2760
      %2762 = vmatmul.bf16.gmra.mxu0 %v2721
      %v2763 = vpop.f32.mrf.mxu0
      %v2764 = vadd.f32 0.0, %v2763
      %v2765 = vpop.f32.mrf.mxu0
      %v2766 = vadd.f32 0.0, %v2765
      %2767 = vmatmul.bf16.gmra.mxu0 %v2724
      %v2768 = vpop.f32.mrf.mxu0
      %v2769 = vadd.f32 0.0, %v2768
      %v2770 = vpop.f32.mrf.mxu0
      %v2771 = vadd.f32 0.0, %v2770
      %2772 = vmatmul.bf16.gmra.mxu0 %v2727
      %v2773 = vpop.f32.mrf.mxu0
      %v2774 = vadd.f32 0.0, %v2773
      %v2775 = vpop.f32.mrf.mxu0
      %v2776 = vadd.f32 0.0, %v2775
      %2777 = vdwg.mxu0
      %v2778 = vadd.f32 %v2664, %v2739
      %v2779 = vadd.f32 %v2665, %v2741
      %v2780 = vadd.f32 %v2666, %v2744
      %v2781 = vadd.f32 %v2667, %v2746
      %v2782 = vadd.f32 %v2668, %v2749
      %v2783 = vadd.f32 %v2669, %v2751
      %v2784 = vadd.f32 %v2670, %v2754
      %v2785 = vadd.f32 %v2671, %v2756
      %v2786 = vadd.f32 %v2672, %v2759
      %v2787 = vadd.f32 %v2673, %v2761
      %v2788 = vadd.f32 %v2674, %v2764
      %v2789 = vadd.f32 %v2675, %v2766
      %v2790 = vadd.f32 %v2676, %v2769
      %v2791 = vadd.f32 %v2677, %v2771
      %v2792 = vadd.f32 %v2678, %v2774
      %v2793 = vadd.f32 %v2679, %v2776
      %v2794 = vpack.c.bf16 %v2312, %v2310
      %v2795 = vpack.c.bf16 %v2347, %v2345
      %v2796 = vpack.c.bf16 %v2382, %v2380
      %v2797 = vpack.c.bf16 %v2417, %v2415
      %v2798 = vpack.c.bf16 %v2452, %v2450
      %v2799 = vpack.c.bf16 %v2487, %v2485
      %v2800 = vpack.c.bf16 %v2522, %v2520
      %v2801 = vpack.c.bf16 %v2557, %v2555
      %s2802 = scalar_lea.vmem %s6, 32
      %v2803 = vld [vmem:[%s2802] sm:$0xf]
      %v2804 = vld [vmem:[%s2802 + $0x4] sm:$0xf]
      %v2805 = vld [vmem:[%s2802 + $0x8] sm:$0xf]
      %v2806 = vld [vmem:[%s2802 + $0xc] sm:$0xf]
      %v2811 = vunpack.c.l.b16 %v2803
      %v2812 = vunpack.c.l.b16 %v2804
      %v2813 = vunpack.c.l.b16 %v2805
      %v2814 = vunpack.c.l.b16 %v2806
      %v2815 = vpack.c.b16 %v2812, %v2811
      %v2816 = vpack.c.b16 %v2814, %v2813
      %v2820 = vsel %vm1045, %v2794, 0
      %v2823 = vsel %vm1045, %v2795, 0
      %v2826 = vsel %vm1045, %v2796, 0
      %v2829 = vsel %vm1045, %v2797, 0
      %v2832 = vsel %vm1045, %v2798, 0
      %v2835 = vsel %vm1045, %v2799, 0
      %v2838 = vsel %vm1045, %v2800, 0
      %v2841 = vsel %vm1045, %v2801, 0
      %2843 = vmatpush.bf16.msra.mxu0 0
      %2844 = vmatpush.bf16.msra.mxu0 0
      %2845 = vmatpush.bf16.msra.mxu0 0
      %2846 = vmatpush.bf16.msra.mxu0 0
      %2847 = vmatpush.bf16.msra.mxu0 0
      %2848 = vmatpush.bf16.msra.mxu0 0
      %2849 = vmatpush.bf16.msra.mxu0 %v2816
      %2850 = vmatpush.bf16.msra.mxu0 %v2815
      %2851 = vmatmul.bf16.gmra.mxu0 %v2820
      %v2852 = vpop.f32.mrf.mxu0
      %v2853 = vadd.f32 0.0, %v2852
      %v2854 = vpop.f32.mrf.mxu0
      %v2855 = vadd.f32 0.0, %v2854
      %2856 = vmatmul.bf16.gmra.mxu0 %v2823
      %v2857 = vpop.f32.mrf.mxu0
      %v2858 = vadd.f32 0.0, %v2857
      %v2859 = vpop.f32.mrf.mxu0
      %v2860 = vadd.f32 0.0, %v2859
      %2861 = vmatmul.bf16.gmra.mxu0 %v2826
      %v2862 = vpop.f32.mrf.mxu0
      %v2863 = vadd.f32 0.0, %v2862
      %v2864 = vpop.f32.mrf.mxu0
      %v2865 = vadd.f32 0.0, %v2864
      %2866 = vmatmul.bf16.gmra.mxu0 %v2829
      %v2867 = vpop.f32.mrf.mxu0
      %v2868 = vadd.f32 0.0, %v2867
      %v2869 = vpop.f32.mrf.mxu0
      %v2870 = vadd.f32 0.0, %v2869
      %2871 = vmatmul.bf16.gmra.mxu0 %v2832
      %v2872 = vpop.f32.mrf.mxu0
      %v2873 = vadd.f32 0.0, %v2872
      %v2874 = vpop.f32.mrf.mxu0
      %v2875 = vadd.f32 0.0, %v2874
      %2876 = vmatmul.bf16.gmra.mxu0 %v2835
      %v2877 = vpop.f32.mrf.mxu0
      %v2878 = vadd.f32 0.0, %v2877
      %v2879 = vpop.f32.mrf.mxu0
      %v2880 = vadd.f32 0.0, %v2879
      %2881 = vmatmul.bf16.gmra.mxu0 %v2838
      %v2882 = vpop.f32.mrf.mxu0
      %v2883 = vadd.f32 0.0, %v2882
      %v2884 = vpop.f32.mrf.mxu0
      %v2885 = vadd.f32 0.0, %v2884
      %2886 = vmatmul.bf16.gmra.mxu0 %v2841
      %v2887 = vpop.f32.mrf.mxu0
      %v2888 = vadd.f32 0.0, %v2887
      %v2889 = vpop.f32.mrf.mxu0
      %v2890 = vadd.f32 0.0, %v2889
      %2891 = vdwg.mxu0
      %v2892 = vadd.f32 %v2778, %v2853
      %v2893 = vadd.f32 %v2779, %v2855
      %v2894 = vadd.f32 %v2780, %v2858
      %v2895 = vadd.f32 %v2781, %v2860
      %v2896 = vadd.f32 %v2782, %v2863
      %v2897 = vadd.f32 %v2783, %v2865
      %v2898 = vadd.f32 %v2784, %v2868
      %v2899 = vadd.f32 %v2785, %v2870
      %v2900 = vadd.f32 %v2786, %v2873
      %v2901 = vadd.f32 %v2787, %v2875
      %v2902 = vadd.f32 %v2788, %v2878
      %v2903 = vadd.f32 %v2789, %v2880
      %v2904 = vadd.f32 %v2790, %v2883
      %v2905 = vadd.f32 %v2791, %v2885
      %v2906 = vadd.f32 %v2792, %v2888
      %v2907 = vadd.f32 %v2793, %v2890
      %v2908 = vpack.c.bf16 %v2317, %v2315
      %v2909 = vpack.c.bf16 %v2352, %v2350
      %v2910 = vpack.c.bf16 %v2387, %v2385
      %v2911 = vpack.c.bf16 %v2422, %v2420
      %v2912 = vpack.c.bf16 %v2457, %v2455
      %v2913 = vpack.c.bf16 %v2492, %v2490
      %v2914 = vpack.c.bf16 %v2527, %v2525
      %v2915 = vpack.c.bf16 %v2562, %v2560
      %s2916 = scalar_lea.vmem %s6, 48
      %v2917 = vld [vmem:[%s2916] sm:$0xf]
      %v2918 = vld [vmem:[%s2916 + $0x4] sm:$0xf]
      %v2919 = vld [vmem:[%s2916 + $0x8] sm:$0xf]
      %v2920 = vld [vmem:[%s2916 + $0xc] sm:$0xf]
      %v2925 = vunpack.c.l.b16 %v2917
      %v2926 = vunpack.c.l.b16 %v2918
      %v2927 = vunpack.c.l.b16 %v2919
      %v2928 = vunpack.c.l.b16 %v2920
      %v2929 = vpack.c.b16 %v2926, %v2925
      %v2930 = vpack.c.b16 %v2928, %v2927
      %v2934 = vsel %vm1045, %v2908, 0
      %v2937 = vsel %vm1045, %v2909, 0
      %v2940 = vsel %vm1045, %v2910, 0
      %v2943 = vsel %vm1045, %v2911, 0
      %v2946 = vsel %vm1045, %v2912, 0
      %v2949 = vsel %vm1045, %v2913, 0
      %v2952 = vsel %vm1045, %v2914, 0
      %v2955 = vsel %vm1045, %v2915, 0
      %2957 = vmatpush.bf16.msra.mxu0 0
      %2958 = vmatpush.bf16.msra.mxu0 0
      %2959 = vmatpush.bf16.msra.mxu0 0
      %2960 = vmatpush.bf16.msra.mxu0 0
      %2961 = vmatpush.bf16.msra.mxu0 0
      %2962 = vmatpush.bf16.msra.mxu0 0
      %2963 = vmatpush.bf16.msra.mxu0 %v2930
      %2964 = vmatpush.bf16.msra.mxu0 %v2929
      %2965 = vmatmul.bf16.gmra.mxu0 %v2934
      %v2966 = vpop.f32.mrf.mxu0
      %v2967 = vadd.f32 0.0, %v2966
      %v2968 = vpop.f32.mrf.mxu0
      %v2969 = vadd.f32 0.0, %v2968
      %2970 = vmatmul.bf16.gmra.mxu0 %v2937
      %v2971 = vpop.f32.mrf.mxu0
      %v2972 = vadd.f32 0.0, %v2971
      %v2973 = vpop.f32.mrf.mxu0
      %v2974 = vadd.f32 0.0, %v2973
      %2975 = vmatmul.bf16.gmra.mxu0 %v2940
      %v2976 = vpop.f32.mrf.mxu0
      %v2977 = vadd.f32 0.0, %v2976
      %v2978 = vpop.f32.mrf.mxu0
      %v2979 = vadd.f32 0.0, %v2978
      %2980 = vmatmul.bf16.gmra.mxu0 %v2943
      %v2981 = vpop.f32.mrf.mxu0
      %v2982 = vadd.f32 0.0, %v2981
      %v2983 = vpop.f32.mrf.mxu0
      %v2984 = vadd.f32 0.0, %v2983
      %2985 = vmatmul.bf16.gmra.mxu0 %v2946
      %v2986 = vpop.f32.mrf.mxu0
      %v2987 = vadd.f32 0.0, %v2986
      %v2988 = vpop.f32.mrf.mxu0
      %v2989 = vadd.f32 0.0, %v2988
      %2990 = vmatmul.bf16.gmra.mxu0 %v2949
      %v2991 = vpop.f32.mrf.mxu0
      %v2992 = vadd.f32 0.0, %v2991
      %v2993 = vpop.f32.mrf.mxu0
      %v2994 = vadd.f32 0.0, %v2993
      %2995 = vmatmul.bf16.gmra.mxu0 %v2952
      %v2996 = vpop.f32.mrf.mxu0
      %v2997 = vadd.f32 0.0, %v2996
      %v2998 = vpop.f32.mrf.mxu0
      %v2999 = vadd.f32 0.0, %v2998
      %3000 = vmatmul.bf16.gmra.mxu0 %v2955
      %v3001 = vpop.f32.mrf.mxu0
      %v3002 = vadd.f32 0.0, %v3001
      %v3003 = vpop.f32.mrf.mxu0
      %v3004 = vadd.f32 0.0, %v3003
      %3005 = vdwg.mxu0
      %v3006 = vadd.f32 %v2892, %v2967
      %v3007 = vadd.f32 %v2893, %v2969
      %v3008 = vadd.f32 %v2894, %v2972
      %v3009 = vadd.f32 %v2895, %v2974
      %v3010 = vadd.f32 %v2896, %v2977
      %v3011 = vadd.f32 %v2897, %v2979
      %v3012 = vadd.f32 %v2898, %v2982
      %v3013 = vadd.f32 %v2899, %v2984
      %v3014 = vadd.f32 %v2900, %v2987
      %v3015 = vadd.f32 %v2901, %v2989
      %v3016 = vadd.f32 %v2902, %v2992
      %v3017 = vadd.f32 %v2903, %v2994
      %v3018 = vadd.f32 %v2904, %v2997
      %v3019 = vadd.f32 %v2905, %v2999
      %v3020 = vadd.f32 %v2906, %v3002
      %v3021 = vadd.f32 %v2907, %v3004
      %v3022 = vld [vmem:[%s8] sm:$0xff]
      %v3023 = vld [vmem:[%s8 + $0x8] sm:$0xff]
      %v3024 = vld [vmem:[%s8 + $0x10] sm:$0xff]
      %v3025 = vld [vmem:[%s8 + $0x18] sm:$0xff]
      %v3026 = vld [vmem:[%s8 + $0x20] sm:$0x1]
      %v3027 = vld [vmem:[%s9] sm:$0xff]
      %v3028 = vld [vmem:[%s9 + $0x8] sm:$0xff]
      %v3029 = vld [vmem:[%s9 + $0x10] sm:$0xff]
      %v3030 = vld [vmem:[%s9 + $0x18] sm:$0xff]
      %v3031 = vld [vmem:[%s9 + $0x20] sm:$0xff]
      %v3032 = vld [vmem:[%s9 + $0x28] sm:$0xff]
      %v3033 = vld [vmem:[%s9 + $0x30] sm:$0xff]
      %v3034 = vld [vmem:[%s9 + $0x38] sm:$0xff]
      %v3035 = vld [vmem:[%s9 + $0x40] sm:$0xff]
      %v3036 = vld [vmem:[%s9 + $0x48] sm:$0xff]
      %v3037 = vld [vmem:[%s9 + $0x50] sm:$0xff]
      %v3038 = vld [vmem:[%s9 + $0x58] sm:$0xff]
      %v3039 = vld [vmem:[%s9 + $0x60] sm:$0x1f]
      %v3040 = vpack.c.bf16 %v3023, %v3022
      %v3041 = vpack.c.bf16 %v3025, %v3024
      %v3042 = vpack.c.bf16 %v3028, %v3027
      %v3043 = vpack.c.bf16 %v3030, %v3029
      %v3044 = vpack.c.bf16 %v3032, %v3031
      %v3045 = vpack.c.bf16 %v3034, %v3033
      %v3046 = vpack.c.bf16 %v3036, %v3035
      %v3047 = vpack.c.bf16 %v3038, %v3037
      %v3048 = vpack.c.bf16 %v3039, %v3039
      %v3049 = vpack.c.bf16 %v3007, %v3006
      %v3050 = vpack.c.bf16 %v3009, %v3008
      %v3051 = vpack.c.bf16 %v3011, %v3010
      %v3052 = vpack.c.bf16 %v3013, %v3012
      %v3053 = vpack.c.bf16 %v3015, %v3014
      %v3054 = vpack.c.bf16 %v3017, %v3016
      %v3055 = vpack.c.bf16 %v3019, %v3018
      %v3056 = vpack.c.bf16 %v3021, %v3020
      %v3057 = vperm.slane %v3026, 0
      %3060 = vrot.lane.b32.xlu0 %v3040, 28
      %v3061 = vpop.permute.xlu0 %3060
      %3062 = vrot.lane.b32.xlu0 %v3041, 28
      %v3063 = vpop.permute.xlu0 %3062
      %3067 = vrot.lane.b32.xlu0 %v3057, 28
      %v3068 = vpop.permute.xlu0 %3067
      %v3071 = vsel %vm1045, %v3049, 0
      %v3074 = vsel %vm1045, %v3050, 0
      %v3077 = vsel %vm1045, %v3051, 0
      %v3080 = vsel %vm1045, %v3052, 0
      %v3083 = vsel %vm1045, %v3053, 0
      %v3086 = vsel %vm1045, %v3054, 0
      %v3089 = vsel %vm1045, %v3055, 0
      %v3092 = vsel %vm1045, %v3056, 0
      %3094 = vmatpush.bf16.msra.mxu0 0
      %3095 = vmatpush.bf16.msra.mxu0 0
      %3096 = vmatpush.bf16.msra.mxu0 0
      %3097 = vmatpush.bf16.msra.mxu0 0
      %3098 = vmatpush.bf16.msra.mxu0 0
      %3099 = vmatpush.bf16.msra.mxu0 0
      %3100 = vmatpush.bf16.msra.mxu0 %v3063
      %3101 = vmatpush.bf16.msra.mxu0 %v3061
      %3102 = vmatmul.bf16.gmra.mxu0 %v3071
      %v3103 = vpop.f32.mrf.mxu0
      %v3104 = vadd.f32 %v3068, %v3103
      %v3105 = vpop.f32.mrf.mxu0
      %v3106 = vadd.f32 %v3068, %v3105
      %3107 = vmatmul.bf16.gmra.mxu0 %v3074
      %v3108 = vpop.f32.mrf.mxu0
      %v3109 = vadd.f32 %v3068, %v3108
      %v3110 = vpop.f32.mrf.mxu0
      %v3111 = vadd.f32 %v3068, %v3110
      %3112 = vmatmul.bf16.gmra.mxu0 %v3077
      %v3113 = vpop.f32.mrf.mxu0
      %v3114 = vadd.f32 %v3068, %v3113
      %v3115 = vpop.f32.mrf.mxu0
      %v3116 = vadd.f32 %v3068, %v3115
      %3117 = vmatmul.bf16.gmra.mxu0 %v3080
      %v3118 = vpop.f32.mrf.mxu0
      %v3119 = vadd.f32 %v3068, %v3118
      %v3120 = vpop.f32.mrf.mxu0
      %v3121 = vadd.f32 %v3068, %v3120
      %3122 = vmatmul.bf16.gmra.mxu0 %v3083
      %v3123 = vpop.f32.mrf.mxu0
      %v3124 = vadd.f32 %v3068, %v3123
      %v3125 = vpop.f32.mrf.mxu0
      %v3126 = vadd.f32 %v3068, %v3125
      %3127 = vmatmul.bf16.gmra.mxu0 %v3086
      %v3128 = vpop.f32.mrf.mxu0
      %v3129 = vadd.f32 %v3068, %v3128
      %v3130 = vpop.f32.mrf.mxu0
      %v3131 = vadd.f32 %v3068, %v3130
      %3132 = vmatmul.bf16.gmra.mxu0 %v3089
      %v3133 = vpop.f32.mrf.mxu0
      %v3134 = vadd.f32 %v3068, %v3133
      %v3135 = vpop.f32.mrf.mxu0
      %v3136 = vadd.f32 %v3068, %v3135
      %3137 = vmatmul.bf16.gmra.mxu0 %v3092
      %v3138 = vpop.f32.mrf.mxu0
      %v3139 = vadd.f32 %v3068, %v3138
      %v3140 = vpop.f32.mrf.mxu0
      %v3141 = vadd.f32 %v3068, %v3140
      %3142 = vdwg.mxu0
      %vm3143 = vcmask 7168
      %v3144 = vsel %vm3143, %v3104, -inf
      %v3145 = vsel %vm3143, %v3106, -inf
      %v3146 = vmax.f32 %v3144, %v3145
      %v3147 = vrot.slane %v3146, 4
      %v3148 = vmax.f32 %v3146, %v3147
      %v3149 = vrot.slane %v3148, 2
      %v3150 = vmax.f32 %v3148, %v3149
      %v3151 = vrot.slane %v3150, 1
      %v3152 = vmax.f32 %v3150, %v3151
      %v3153 = vsel %vm3143, %v3109, -inf
      %v3154 = vsel %vm3143, %v3111, -inf
      %v3155 = vmax.f32 %v3153, %v3154
      %v3156 = vrot.slane %v3155, 4
      %v3157 = vmax.f32 %v3155, %v3156
      %v3158 = vrot.slane %v3157, 2
      %v3159 = vmax.f32 %v3157, %v3158
      %v3160 = vrot.slane %v3159, 1
      %v3161 = vmax.f32 %v3159, %v3160
      %v3162 = vsel %vm3143, %v3114, -inf
      %v3163 = vsel %vm3143, %v3116, -inf
      %v3164 = vmax.f32 %v3162, %v3163
      %v3165 = vrot.slane %v3164, 4
      %v3166 = vmax.f32 %v3164, %v3165
      %v3167 = vrot.slane %v3166, 2
      %v3168 = vmax.f32 %v3166, %v3167
      %v3169 = vrot.slane %v3168, 1
      %v3170 = vmax.f32 %v3168, %v3169
      %v3171 = vsel %vm3143, %v3119, -inf
      %v3172 = vsel %vm3143, %v3121, -inf
      %v3173 = vmax.f32 %v3171, %v3172
      %v3174 = vrot.slane %v3173, 4
      %v3175 = vmax.f32 %v3173, %v3174
      %v3176 = vrot.slane %v3175, 2
      %v3177 = vmax.f32 %v3175, %v3176
      %v3178 = vrot.slane %v3177, 1
      %v3179 = vmax.f32 %v3177, %v3178
      %v3180 = vsel %vm3143, %v3124, -inf
      %v3181 = vsel %vm3143, %v3126, -inf
      %v3182 = vmax.f32 %v3180, %v3181
      %v3183 = vrot.slane %v3182, 4
      %v3184 = vmax.f32 %v3182, %v3183
      %v3185 = vrot.slane %v3184, 2
      %v3186 = vmax.f32 %v3184, %v3185
      %v3187 = vrot.slane %v3186, 1
      %v3188 = vmax.f32 %v3186, %v3187
      %v3189 = vsel %vm3143, %v3129, -inf
      %v3190 = vsel %vm3143, %v3131, -inf
      %v3191 = vmax.f32 %v3189, %v3190
      %v3192 = vrot.slane %v3191, 4
      %v3193 = vmax.f32 %v3191, %v3192
      %v3194 = vrot.slane %v3193, 2
      %v3195 = vmax.f32 %v3193, %v3194
      %v3196 = vrot.slane %v3195, 1
      %v3197 = vmax.f32 %v3195, %v3196
      %v3198 = vsel %vm3143, %v3134, -inf
      %v3199 = vsel %vm3143, %v3136, -inf
      %v3200 = vmax.f32 %v3198, %v3199
      %v3201 = vrot.slane %v3200, 4
      %v3202 = vmax.f32 %v3200, %v3201
      %v3203 = vrot.slane %v3202, 2
      %v3204 = vmax.f32 %v3202, %v3203
      %v3205 = vrot.slane %v3204, 1
      %v3206 = vmax.f32 %v3204, %v3205
      %v3207 = vsel %vm3143, %v3139, -inf
      %v3208 = vsel %vm3143, %v3141, -inf
      %v3209 = vmax.f32 %v3207, %v3208
      %v3210 = vrot.slane %v3209, 4
      %v3211 = vmax.f32 %v3209, %v3210
      %v3212 = vrot.slane %v3211, 2
      %v3213 = vmax.f32 %v3211, %v3212
      %v3214 = vrot.slane %v3213, 1
      %v3215 = vmax.f32 %v3213, %v3214
      %v3216 = vsub.f32 %v3104, %v3152
      %v3217 = vsub.f32 %v3106, %v3152
      %v3218 = vsub.f32 %v3109, %v3161
      %v3219 = vsub.f32 %v3111, %v3161
      %v3220 = vsub.f32 %v3114, %v3170
      %v3221 = vsub.f32 %v3116, %v3170
      %v3222 = vsub.f32 %v3119, %v3179
      %v3223 = vsub.f32 %v3121, %v3179
      %v3224 = vsub.f32 %v3124, %v3188
      %v3225 = vsub.f32 %v3126, %v3188
      %v3226 = vsub.f32 %v3129, %v3197
      %v3227 = vsub.f32 %v3131, %v3197
      %v3228 = vsub.f32 %v3134, %v3206
      %v3229 = vsub.f32 %v3136, %v3206
      %v3230 = vsub.f32 %v3139, %v3215
      %v3231 = vsub.f32 %v3141, %v3215
      %v3232 = vmul.f32 %v3216, 1.442695
      %v3233 = vpow.pop %v3232
      %v3234 = vmul.f32 %v3217, 1.442695
      %v3235 = vpow.pop %v3234
      %v3236 = vmul.f32 %v3218, 1.442695
      %v3237 = vpow.pop %v3236
      %v3238 = vmul.f32 %v3219, 1.442695
      %v3239 = vpow.pop %v3238
      %v3240 = vmul.f32 %v3220, 1.442695
      %v3241 = vpow.pop %v3240
      %v3242 = vmul.f32 %v3221, 1.442695
      %v3243 = vpow.pop %v3242
      %v3244 = vmul.f32 %v3222, 1.442695
      %v3245 = vpow.pop %v3244
      %v3246 = vmul.f32 %v3223, 1.442695
      %v3247 = vpow.pop %v3246
      %v3248 = vmul.f32 %v3224, 1.442695
      %v3249 = vpow.pop %v3248
      %v3250 = vmul.f32 %v3225, 1.442695
      %v3251 = vpow.pop %v3250
      %v3252 = vmul.f32 %v3226, 1.442695
      %v3253 = vpow.pop %v3252
      %v3254 = vmul.f32 %v3227, 1.442695
      %v3255 = vpow.pop %v3254
      %v3256 = vmul.f32 %v3228, 1.442695
      %v3257 = vpow.pop %v3256
      %v3258 = vmul.f32 %v3229, 1.442695
      %v3259 = vpow.pop %v3258
      %v3260 = vmul.f32 %v3230, 1.442695
      %v3261 = vpow.pop %v3260
      %v3262 = vmul.f32 %v3231, 1.442695
      %v3263 = vpow.pop %v3262
      %v3264 = vsel %vm3143, %v3233, 0.0
      %v3265 = vsel %vm3143, %v3235, 0.0
      %v3266 = vadd.f32 %v3264, %v3265
      %v3267 = vrot.slane %v3266, 4
      %v3268 = vadd.f32 %v3266, %v3267
      %v3269 = vrot.slane %v3268, 2
      %v3270 = vadd.f32 %v3268, %v3269
      %v3271 = vrot.slane %v3270, 1
      %v3272 = vadd.f32 %v3270, %v3271
      %v3273 = vsel %vm3143, %v3237, 0.0
      %v3274 = vsel %vm3143, %v3239, 0.0
      %v3275 = vadd.f32 %v3273, %v3274
      %v3276 = vrot.slane %v3275, 4
      %v3277 = vadd.f32 %v3275, %v3276
      %v3278 = vrot.slane %v3277, 2
      %v3279 = vadd.f32 %v3277, %v3278
      %v3280 = vrot.slane %v3279, 1
      %v3281 = vadd.f32 %v3279, %v3280
      %v3282 = vsel %vm3143, %v3241, 0.0
      %v3283 = vsel %vm3143, %v3243, 0.0
      %v3284 = vadd.f32 %v3282, %v3283
      %v3285 = vrot.slane %v3284, 4
      %v3286 = vadd.f32 %v3284, %v3285
      %v3287 = vrot.slane %v3286, 2
      %v3288 = vadd.f32 %v3286, %v3287
      %v3289 = vrot.slane %v3288, 1
      %v3290 = vadd.f32 %v3288, %v3289
      %v3291 = vsel %vm3143, %v3245, 0.0
      %v3292 = vsel %vm3143, %v3247, 0.0
      %v3293 = vadd.f32 %v3291, %v3292
      %v3294 = vrot.slane %v3293, 4
      %v3295 = vadd.f32 %v3293, %v3294
      %v3296 = vrot.slane %v3295, 2
      %v3297 = vadd.f32 %v3295, %v3296
      %v3298 = vrot.slane %v3297, 1
      %v3299 = vadd.f32 %v3297, %v3298
      %v3300 = vsel %vm3143, %v3249, 0.0
      %v3301 = vsel %vm3143, %v3251, 0.0
      %v3302 = vadd.f32 %v3300, %v3301
      %v3303 = vrot.slane %v3302, 4
      %v3304 = vadd.f32 %v3302, %v3303
      %v3305 = vrot.slane %v3304, 2
      %v3306 = vadd.f32 %v3304, %v3305
      %v3307 = vrot.slane %v3306, 1
      %v3308 = vadd.f32 %v3306, %v3307
      %v3309 = vsel %vm3143, %v3253, 0.0
      %v3310 = vsel %vm3143, %v3255, 0.0
      %v3311 = vadd.f32 %v3309, %v3310
      %v3312 = vrot.slane %v3311, 4
      %v3313 = vadd.f32 %v3311, %v3312
      %v3314 = vrot.slane %v3313, 2
      %v3315 = vadd.f32 %v3313, %v3314
      %v3316 = vrot.slane %v3315, 1
      %v3317 = vadd.f32 %v3315, %v3316
      %v3318 = vsel %vm3143, %v3257, 0.0
      %v3319 = vsel %vm3143, %v3259, 0.0
      %v3320 = vadd.f32 %v3318, %v3319
      %v3321 = vrot.slane %v3320, 4
      %v3322 = vadd.f32 %v3320, %v3321
      %v3323 = vrot.slane %v3322, 2
      %v3324 = vadd.f32 %v3322, %v3323
      %v3325 = vrot.slane %v3324, 1
      %v3326 = vadd.f32 %v3324, %v3325
      %v3327 = vsel %vm3143, %v3261, 0.0
      %v3328 = vsel %vm3143, %v3263, 0.0
      %v3329 = vadd.f32 %v3327, %v3328
      %v3330 = vrot.slane %v3329, 4
      %v3331 = vadd.f32 %v3329, %v3330
      %v3332 = vrot.slane %v3331, 2
      %v3333 = vadd.f32 %v3331, %v3332
      %v3334 = vrot.slane %v3333, 1
      %v3335 = vadd.f32 %v3333, %v3334
      %v3336 = vrcp.pop %v3272
      %v3337 = vrcp.pop %v3281
      %v3338 = vrcp.pop %v3290
      %v3339 = vrcp.pop %v3299
      %v3340 = vrcp.pop %v3308
      %v3341 = vrcp.pop %v3317
      %v3342 = vrcp.pop %v3326
      %v3343 = vrcp.pop %v3335
      %v3344 = vmul.f32 %v3233, %v3336
      %v3345 = vmul.f32 %v3235, %v3336
      %v3346 = vmul.f32 %v3237, %v3337
      %v3347 = vmul.f32 %v3239, %v3337
      %v3348 = vmul.f32 %v3241, %v3338
      %v3349 = vmul.f32 %v3243, %v3338
      %v3350 = vmul.f32 %v3245, %v3339
      %v3351 = vmul.f32 %v3247, %v3339
      %v3352 = vmul.f32 %v3249, %v3340
      %v3353 = vmul.f32 %v3251, %v3340
      %v3354 = vmul.f32 %v3253, %v3341
      %v3355 = vmul.f32 %v3255, %v3341
      %v3356 = vmul.f32 %v3257, %v3342
      %v3357 = vmul.f32 %v3259, %v3342
      %v3358 = vmul.f32 %v3261, %v3343
      %v3359 = vmul.f32 %v3263, %v3343
      %3361 = vset.pattern.permute.xlu0 0
      %3362 = vperm.xlu0 %3361, %v3344
      %v3363 = vpop.permute.xlu0 %3362
      %3366 = vset.pattern.permute.xlu0 0
      %3367 = vperm.xlu0 %3366, %v3345
      %v3368 = vpop.permute.xlu0 %3367
      %3371 = vset.pattern.permute.xlu0 0
      %3372 = vperm.xlu0 %3371, %v3346
      %v3373 = vpop.permute.xlu0 %3372
      %3376 = vset.pattern.permute.xlu0 0
      %3377 = vperm.xlu0 %3376, %v3347
      %v3378 = vpop.permute.xlu0 %3377
      %3381 = vset.pattern.permute.xlu0 0
      %3382 = vperm.xlu0 %3381, %v3348
      %v3383 = vpop.permute.xlu0 %3382
      %3386 = vset.pattern.permute.xlu0 0
      %3387 = vperm.xlu0 %3386, %v3349
      %v3388 = vpop.permute.xlu0 %3387
      %3391 = vset.pattern.permute.xlu0 0
      %3392 = vperm.xlu0 %3391, %v3350
      %v3393 = vpop.permute.xlu0 %3392
      %3396 = vset.pattern.permute.xlu0 0
      %3397 = vperm.xlu0 %3396, %v3351
      %v3398 = vpop.permute.xlu0 %3397
      %3401 = vset.pattern.permute.xlu0 0
      %3402 = vperm.xlu0 %3401, %v3352
      %v3403 = vpop.permute.xlu0 %3402
      %3406 = vset.pattern.permute.xlu0 0
      %3407 = vperm.xlu0 %3406, %v3353
      %v3408 = vpop.permute.xlu0 %3407
      %3411 = vset.pattern.permute.xlu0 0
      %3412 = vperm.xlu0 %3411, %v3354
      %v3413 = vpop.permute.xlu0 %3412
      %3416 = vset.pattern.permute.xlu0 0
      %3417 = vperm.xlu0 %3416, %v3355
      %v3418 = vpop.permute.xlu0 %3417
      %3421 = vset.pattern.permute.xlu0 0
      %3422 = vperm.xlu0 %3421, %v3356
      %v3423 = vpop.permute.xlu0 %3422
      %3426 = vset.pattern.permute.xlu0 0
      %3427 = vperm.xlu0 %3426, %v3357
      %v3428 = vpop.permute.xlu0 %3427
      %3431 = vset.pattern.permute.xlu0 0
      %3432 = vperm.xlu0 %3431, %v3358
      %v3433 = vpop.permute.xlu0 %3432
      %3436 = vset.pattern.permute.xlu0 0
      %3437 = vperm.xlu0 %3436, %v3359
      %v3438 = vpop.permute.xlu0 %3437
      %v3440 = vmul.f32 %v3006, %v3363
      %v3441 = vmul.f32 %v3007, %v3368
      %v3442 = vmul.f32 %v3008, %v3373
      %v3443 = vmul.f32 %v3009, %v3378
      %v3444 = vmul.f32 %v3010, %v3383
      %v3445 = vmul.f32 %v3011, %v3388
      %v3446 = vmul.f32 %v3012, %v3393
      %v3447 = vmul.f32 %v3013, %v3398
      %v3448 = vmul.f32 %v3014, %v3403
      %v3449 = vmul.f32 %v3015, %v3408
      %v3450 = vmul.f32 %v3016, %v3413
      %v3451 = vmul.f32 %v3017, %v3418
      %v3452 = vmul.f32 %v3018, %v3423
      %v3453 = vmul.f32 %v3019, %v3428
      %v3454 = vmul.f32 %v3020, %v3433
      %v3455 = vmul.f32 %v3021, %v3438
      %v3456 = vsel %vm1045, %v3440, 0.0
      %v3457 = vsel %vm1045, %v3441, 0.0
      %v3458 = vadd.f32 %v3456, %v3457
      %v3459 = vrot.slane %v3458, 4
      %v3460 = vadd.f32 %v3458, %v3459
      %v3461 = vrot.slane %v3460, 2
      %v3462 = vadd.f32 %v3460, %v3461
      %v3463 = vrot.slane %v3462, 1
      %v3464 = vadd.f32 %v3462, %v3463
      %v3465 = vsel %vm1045, %v3442, 0.0
      %v3466 = vsel %vm1045, %v3443, 0.0
      %v3467 = vadd.f32 %v3465, %v3466
      %v3468 = vrot.slane %v3467, 4
      %v3469 = vadd.f32 %v3467, %v3468
      %v3470 = vrot.slane %v3469, 2
      %v3471 = vadd.f32 %v3469, %v3470
      %v3472 = vrot.slane %v3471, 1
      %v3473 = vadd.f32 %v3471, %v3472
      %v3474 = vsel %vm1045, %v3444, 0.0
      %v3475 = vsel %vm1045, %v3445, 0.0
      %v3476 = vadd.f32 %v3474, %v3475
      %v3477 = vrot.slane %v3476, 4
      %v3478 = vadd.f32 %v3476, %v3477
      %v3479 = vrot.slane %v3478, 2
      %v3480 = vadd.f32 %v3478, %v3479
      %v3481 = vrot.slane %v3480, 1
      %v3482 = vadd.f32 %v3480, %v3481
      %v3483 = vsel %vm1045, %v3446, 0.0
      %v3484 = vsel %vm1045, %v3447, 0.0
      %v3485 = vadd.f32 %v3483, %v3484
      %v3486 = vrot.slane %v3485, 4
      %v3487 = vadd.f32 %v3485, %v3486
      %v3488 = vrot.slane %v3487, 2
      %v3489 = vadd.f32 %v3487, %v3488
      %v3490 = vrot.slane %v3489, 1
      %v3491 = vadd.f32 %v3489, %v3490
      %v3492 = vsel %vm1045, %v3448, 0.0
      %v3493 = vsel %vm1045, %v3449, 0.0
      %v3494 = vadd.f32 %v3492, %v3493
      %v3495 = vrot.slane %v3494, 4
      %v3496 = vadd.f32 %v3494, %v3495
      %v3497 = vrot.slane %v3496, 2
      %v3498 = vadd.f32 %v3496, %v3497
      %v3499 = vrot.slane %v3498, 1
      %v3500 = vadd.f32 %v3498, %v3499
      %v3501 = vsel %vm1045, %v3450, 0.0
      %v3502 = vsel %vm1045, %v3451, 0.0
      %v3503 = vadd.f32 %v3501, %v3502
      %v3504 = vrot.slane %v3503, 4
      %v3505 = vadd.f32 %v3503, %v3504
      %v3506 = vrot.slane %v3505, 2
      %v3507 = vadd.f32 %v3505, %v3506
      %v3508 = vrot.slane %v3507, 1
      %v3509 = vadd.f32 %v3507, %v3508
      %v3510 = vsel %vm1045, %v3452, 0.0
      %v3511 = vsel %vm1045, %v3453, 0.0
      %v3512 = vadd.f32 %v3510, %v3511
      %v3513 = vrot.slane %v3512, 4
      %v3514 = vadd.f32 %v3512, %v3513
      %v3515 = vrot.slane %v3514, 2
      %v3516 = vadd.f32 %v3514, %v3515
      %v3517 = vrot.slane %v3516, 1
      %v3518 = vadd.f32 %v3516, %v3517
      %v3519 = vsel %vm1045, %v3454, 0.0
      %v3520 = vsel %vm1045, %v3455, 0.0
      %v3521 = vadd.f32 %v3519, %v3520
      %v3522 = vrot.slane %v3521, 4
      %v3523 = vadd.f32 %v3521, %v3522
      %v3524 = vrot.slane %v3523, 2
      %v3525 = vadd.f32 %v3523, %v3524
      %v3526 = vrot.slane %v3525, 1
      %v3527 = vadd.f32 %v3525, %v3526
      %v3528 = vpack.c.bf16 %v3464, %v3464
      %v3529 = vpack.c.bf16 %v3473, %v3473
      %v3530 = vpack.c.bf16 %v3482, %v3482
      %v3531 = vpack.c.bf16 %v3491, %v3491
      %v3532 = vpack.c.bf16 %v3500, %v3500
      %v3533 = vpack.c.bf16 %v3509, %v3509
      %v3534 = vpack.c.bf16 %v3518, %v3518
      %v3535 = vpack.c.bf16 %v3527, %v3527
      %v3544 = vunpack.c.l.b16 %v3528
      %v3545 = vunpack.c.l.b16 %v3529
      %v3546 = vunpack.c.l.b16 %v3530
      %v3547 = vunpack.c.l.b16 %v3531
      %v3548 = vunpack.c.l.b16 %v3532
      %v3549 = vunpack.c.l.b16 %v3533
      %v3550 = vunpack.c.l.b16 %v3534
      %v3551 = vunpack.c.l.b16 %v3535
      %vm3552 = vcmask 1041409
      %v3553 = vsel %vm3552, %v3545, %v3544
      %vm3554 = vcmask 1042434
      %v3555 = vsel %vm3554, %v3546, %v3553
      %vm3556 = vcmask 1043459
      %v3557 = vsel %vm3556, %v3547, %v3555
      %vm3558 = vcmask 1044484
      %v3559 = vsel %vm3558, %v3548, %v3557
      %vm3560 = vcmask 1045509
      %v3561 = vsel %vm3560, %v3549, %v3559
      %vm3562 = vcmask 1046534
      %v3563 = vsel %vm3562, %v3550, %v3561
      %vm3564 = vcmask 1047559
      %v3565 = vsel %vm3564, %v3551, %v3563
      %v3566 = vpack.c.b16 %v3565, %v3565
      %v3568 = vsel %vm1045, %v3566, 0
      %3570 = vmatpush.bf16.msra.mxu0 0
      %3571 = vmatpush.bf16.msra.mxu0 0
      %3572 = vmatpush.bf16.msra.mxu0 0
      %3573 = vmatpush.bf16.msra.mxu0 0
      %3574 = vmatpush.bf16.msra.mxu0 0
      %3575 = vmatpush.bf16.msra.mxu0 0
      %3576 = vmatpush.bf16.msra.mxu0 %v3041
      %3577 = vmatpush.bf16.msra.mxu0 %v3040
      %3578 = vmatmul.bf16.gmra.mxu0 %v3568
      %v3579 = vpop.f32.mrf.mxu0
      %v3580 = vadd.f32 %v3057, %v3579
      %v3581 = vpop.f32.mrf.mxu0
      %3582 = vdwg.mxu0
      %v3583 = vmax.f32 %v3580, 0.0
      %v3584 = vpack.c.bf16 %v3583, %v3583
      %v3585 = vperm.slane %v3039, 4
      %vm3586 = vcmask 818176
      %v3588 = vsel %vm3586, %v3584, 0
      %vm3590 = vcmask 1041408
      %v3592 = vsel %vm3590, %v3048, 0
      %3594 = vmatpush.bf16.msra.mxu0 0
      %3595 = vmatpush.bf16.msra.mxu0 %v3592
      %3596 = vmatpush.bf16.msra.mxu0 %v3047
      %3597 = vmatpush.bf16.msra.mxu0 %v3046
      %3598 = vmatpush.bf16.msra.mxu0 %v3045
      %3599 = vmatpush.bf16.msra.mxu0 %v3044
      %3600 = vmatpush.bf16.msra.mxu0 %v3043
      %3601 = vmatpush.bf16.msra.mxu0 %v3042
      %3602 = vmatmul.bf16.gmra.mxu0 %v3588
      %v3603 = vpop.f32.mrf.mxu0
      %v3604 = vadd.f32 %v3585, %v3603
      %v3605 = vpop.f32.mrf.mxu0
      %3606 = vdwg.mxu0
      %v3607 = vmax.f32 %v3604, 0.0
      %v3608 = vpack.c.bf16 %v3607, %v3607
      %3613 = vrot.lane.b32.xlu0 %v3042, 64
      %v3614 = vpop.permute.xlu0 %3613
      %3615 = vrot.lane.b32.xlu0 %v3043, 64
      %v3616 = vpop.permute.xlu0 %3615
      %3617 = vrot.lane.b32.xlu0 %v3044, 64
      %v3618 = vpop.permute.xlu0 %3617
      %3619 = vrot.lane.b32.xlu0 %v3045, 64
      %v3620 = vpop.permute.xlu0 %3619
      %3626 = vrot.lane.b32.xlu0 %v3585, 64
      %v3627 = vpop.permute.xlu0 %3626
      %vm3629 = vcmask 523264
      %v3631 = vsel %vm3629, %v3608, 0
      %3633 = vmatpush.bf16.msra.mxu0 0
      %3634 = vmatpush.bf16.msra.mxu0 0
      %3635 = vmatpush.bf16.msra.mxu0 0
      %3636 = vmatpush.bf16.msra.mxu0 0
      %3637 = vmatpush.bf16.msra.mxu0 %v3620
      %3638 = vmatpush.bf16.msra.mxu0 %v3618
      %3639 = vmatpush.bf16.msra.mxu0 %v3616
      %3640 = vmatpush.bf16.msra.mxu0 %v3614
      %3641 = vmatmul.bf16.gmra.mxu0 %v3631
      %v3642 = vpop.f32.mrf.mxu0
      %v3643 = vadd.f32 %v3627, %v3642
      %v3644 = vpop.f32.mrf.mxu0
      %3645 = vdwg.mxu0
      %v3646 = vand.u32 2147483647, %v3643
      %v3647 = vsub.f32 0.0, %v3646
      %v3648 = vmul.f32 %v3647, 1.442695
      %v3649 = vpow.pop %v3648
      %vm3650 = vcmp.ge.f32.partialorder %v3643, 0.0
      %v3651 = vadd.f32 %v3649, 1.0
      %v3652 = vrcp.pop %v3651
      %v3653 = vmul.f32 %v3651, %v3652
      %v3654 = vsub.f32 1.0, %v3653
      %v3655 = vmul.f32 %v3652, %v3654
      %v3656 = vadd.f32 %v3652, %v3655
      %vm3657 = vweird.f32 %v3651
      %vm3658 = vweird.f32 %v3652
      %vm3659 = vmor %vm3657, %vm3658
      %v3660 = vsel %vm3659, %v3652, %v3656
      %v3661 = vand.u32 2147483647, %v3651
      %vm3662 = vcmp.eq.f32.partialorder %v3661, 8.507059e+37
      %v3663 = vand.u32 %v3651, 2147483648
      %v3664 = vor.u32 1.1754944e-38, %v3663
      %v3665 = vsel %vm3662, %v3664, %v3660
      %v3666 = vmul.f32 1.0, %v3665
      %v3667 = vmul.f32 %v3649, %v3665
      %v3668 = vsel %vm3650, %v3666, %v3667
      %3670 = vset.pattern.permute.xlu0 0
      %3671 = vperm.xlu0 %3670, %v3668
      %v3672 = vpop.permute.xlu0 %3671
      %v3673 = vlaneseq
      %v3674 = vand.u32 %v3673, 127
      %v3675 = vperm.slane %v3672, %v3674
      %vm3677 = vcmask 57344
      %3678 = vst.msk [vmem:[%s385] sm:$0x1] %vm3677, %v3675
      %p3679 = scmp.lt.s32.totalorder %s21, 1
      %s3680 = scalar_select %p3679, %s21, 1
      %s3681 = scalar_lea.vmem %s10, %s3680
      // Predicated region
      $region61: #{rel_graph_conv_model.1} parent=59 // pred_check
        %p3682 = pneg %p259
      $region62: #{rel_graph_conv_model.1} parent=59 // pred_check_branch
        %3684 = sbr.rel (%p3682) target = $region64
      $region63: #{rel_graph_conv_model.1} parent=59 // pred_region
        _
      $region64: #{rel_graph_conv_model.1} parent=59 // pred_fallthru
        _
    $region60: #{rel_graph_conv_model.1} parent=5 // pred_fallthru
      _
    %p3685 = scmp.le.s32.totalorder 2, %s16
    // Predicated region
    $region65: #{rel_graph_conv_model.1} parent=5 // pred_check
      %p3686 = pneg %p3685
    $region66: #{rel_graph_conv_model.1} parent=5 // pred_check_branch
      %3688 = sbr.rel (%p3686) target = $region68
    $region67: #{rel_graph_conv_model.1} parent=5 // pred_region
      %s3689 = ssub.s32 %s16, 2
      // Predicated region
      $region69: #{rel_graph_conv_model.1} parent=67 // pred_check
        %p3690 = pneg %p265
      $region70: #{rel_graph_conv_model.1} parent=67 // pred_check_branch
        %3692 = sbr.rel (%p3690) target = $region72
      $region71: #{rel_graph_conv_model.1} parent=67 // pred_region
        %p3693 = scmp.lt.s32.totalorder %s22, 1
        %s3694 = scalar_select %p3693, %s22, 1
        %s3695 = scalar_lea.vmem %s10, %s3694
      $region72: #{rel_graph_conv_model.1} parent=67 // pred_fallthru
        _
    $region68: #{rel_graph_conv_model.1} parent=5 // pred_fallthru
      _
  $region6: #{rel_graph_conv_model.1} parent=0 // loop_footer
    %s20 = sadd.s32 1, %s16
  $region7: #{rel_graph_conv_model.1} parent=0 // loop_footer_branch
    %15 = sbr.rel target = $region3
  $region8: #{rel_graph_conv_model.1} parent=0 // loop_exit
    _

</llo_original>
